<compile_context>
chip_gen: v6e
topology: v6e:2x2x1
jax: 0.10.0
libtpu: 0.0.40
codegen_flags: <defaults>
</compile_context>

<pallas_src>
import functools
import math

import jax
import jax.numpy as jnp
from jax import lax
from jax.experimental import pallas as pl
from jax.experimental.pallas import tpu as pltpu

BN_EPS = 1e-5
GN_EPS = 1e-5


def _round_up(x, m):
    return ((x + m - 1) // m) * m


def _vmem_limit_bytes():
    # Generation-aware scoped-VMEM limit: big window on 128 MiB parts (v5e/v6e),
    # conservative on v7x (64 MiB physical), safe default if the query fails.
    cap = None
    try:
        info = pltpu.get_tpu_info()
        cap = int(getattr(info, "vmem_capacity_bytes", 0)) or None
    except Exception:
        cap = None
    if cap is None:
        return 32 * 1024 * 1024
    if cap >= 128 * 1024 * 1024:
        return 100 * 1024 * 1024
    return 48 * 1024 * 1024


# ---------------------------------------------------------------------------
# Fused per-image kernel:
#   cv1 (1x1, BN folded) + ReLU
#   -> 3x depthwise (BN2 folded into taps) via lane-dense shifted slices
#   -> 3x cv3 (BN3 folded) + ReLU written into one (3*c1, HW) scratch
#   -> ONE cv4 matmul + bias
#   -> GroupNorm (two-pass f32 stats)
# Layout: channels on sublanes, H*W on lanes (lane-dense for c1, c4 << 128).
# ---------------------------------------------------------------------------
def _lkp_fused_kernel(x_ref, w1_ref, b1_ref, dw_ref, mx_ref, w3_ref, c3_ref,
                      w4_ref, b4_ref, gamma_ref, beta_ref, gmask_ref,
                      o_ref, xm_ref, z_ref,
                      *, H, W, c1, c4, G, Cg, ks, kmax, P, eps):
    HW = H * W
    padmax = (kmax - 1) // 2

    # ---- cv1 (BN1 folded) + ReLU: (c1, HW) = W1 @ X, spatial on lanes --------
    x1 = jnp.dot(w1_ref[...], x_ref[0], preferred_element_type=jnp.float32)
    x1 = jnp.maximum(x1 + b1_ref[...], 0.0)                     # (c1, HW) f32

    # ---- zero the halo strips of the shifted-read scratch.  Done every image
    #      (scratch is per-core; do NOT rely on a program_id==0 init). ---------
    zpad = jnp.zeros((c1, P), jnp.float32)
    xm_ref[:, :P] = zpad
    xm_ref[:, P + HW:] = zpad

    # ---- depthwise, 3 branches.  For each dx the column-wrap mask is applied
    #      once (hoisted); each (dy,dx) tap is a static lane-offset slice shared
    #      by all branches.  Tap weights are hoisted out of the loop. -----------
    dwv = [dw_ref[i] for i in range(3)]                         # (c1, kmax*kmax)
    d = [jnp.zeros((c1, HW), jnp.float32) for _ in range(3)]
    for jx in range(kmax):
        dx = jx - padmax
        # masked copy for this dx; halo stays zero so row under/overflow reads 0
        xm_ref[:, P:P + HW] = x1 * mx_ref[jx:jx + 1, :]
        for jy in range(kmax):
            dy = jy - padmax
            off = dy * W + dx
            v = xm_ref[:, P + off:P + off + HW]                 # (c1, HW)
            t = jy * kmax + jx
            for i, K in enumerate(ks):                          # static 3 branches
                r = (K - 1) // 2
                if abs(dx) <= r and abs(dy) <= r:               # tap in this kernel
                    d[i] = d[i] + v * dwv[i][:, t:t + 1]

    # ---- cv3 (BN folded) + ReLU per branch -> z scratch -> ONE cv4 matmul ----
    for i in range(3):
        z = jnp.dot(w3_ref[i], d[i].astype(jnp.bfloat16),
                    preferred_element_type=jnp.float32)
        z = jnp.maximum(z + c3_ref[i], 0.0)
        z_ref[i * c1:(i + 1) * c1, :] = z.astype(jnp.bfloat16)
    acc = jnp.dot(w4_ref[...], z_ref[...],
                  preferred_element_type=jnp.float32) + b4_ref[...]   # (c4, HW)

    # ---- GroupNorm: two-pass (subtract-mean) f32 stats, one-hot group columns -
    n = float(Cg * HW)
    ch_sum = jnp.sum(acc, axis=1, keepdims=True)                # (c4, 1)
    mean_c = jnp.zeros((c4, 1), jnp.float32)
    for g in range(G):                                          # static, tiny
        col = gmask_ref[:, g:g + 1]                             # (c4, 1)
        mean_c = mean_c + col * (jnp.sum(ch_sum * col) / n)
    cent = acc - mean_c
    ch_sq = jnp.sum(cent * cent, axis=1, keepdims=True)         # (c4, 1)
    inv_c = jnp.zeros((c4, 1), jnp.float32)
    for g in range(G):
        col = gmask_ref[:, g:g + 1]
        var_g = jnp.sum(ch_sq * col) / n                        # biased, as in torch
        inv_c = inv_c + col * lax.rsqrt(var_g + eps)
    o_ref[0, :, :] = cent * inv_c * gamma_ref[...] + beta_ref[...]


def _make_col_masks(W, HW, kmax):
    # mask[jx, g] == 1 iff the input flat position g (column g % W) is a legal
    # horizontal neighbour for shift dx = jx - padmax (kills row-wrap reads).
    padmax = (kmax - 1) // 2
    xin = jnp.arange(HW) % W
    dxs = jnp.arange(kmax) - padmax
    xout = xin[None, :] - dxs[:, None]
    return ((xout >= 0) & (xout < W)).astype(jnp.float32)       # (kmax, HW)


def lkp_fused(x_cf, fp, *, H, W, dim, c1, c4, G, Cg):
    # x_cf: (B, dim, H*W) bf16 (channels-first, spatial flattened on lanes)
    B = x_cf.shape[0]
    HW = H * W
    ks = fp["ks"]
    kmax = max(ks)
    padmax = (kmax - 1) // 2
    KK = kmax * kmax
    P = _round_up(padmax * (W + 1), 128)        # halo length; 128-aligned store
    HWe = HW + 2 * P
    mx = _make_col_masks(W, HW, kmax)

    kern = functools.partial(_lkp_fused_kernel, H=H, W=W, c1=c1, c4=c4, G=G,
                             Cg=Cg, ks=ks, kmax=kmax, P=P, eps=GN_EPS)
    return pl.pallas_call(
        kern,
        out_shape=jax.ShapeDtypeStruct((B, c4, HW), jnp.float32),
        grid_spec=pltpu.PrefetchScalarGridSpec(
            num_scalar_prefetch=0,
            grid=(B,),                            # parallel: >=2 images feed both
            in_specs=[                            # v7x TensorCores in the example
                pl.BlockSpec((1, dim, HW), lambda b: (b, 0, 0)),    # x (bf16)
                pl.BlockSpec((c1, dim), lambda b: (0, 0)),          # cv1 w (bf16)
                pl.BlockSpec((c1, 1), lambda b: (0, 0)),            # cv1 shift
                pl.BlockSpec((3, c1, KK), lambda b: (0, 0, 0)),     # dw taps
                pl.BlockSpec((kmax, HW), lambda b: (0, 0)),         # col masks
                pl.BlockSpec((3, c1, c1), lambda b: (0, 0, 0)),     # cv3 w (bf16)
                pl.BlockSpec((3, c1, 1), lambda b: (0, 0, 0)),      # cv3 shift
                pl.BlockSpec((c4, 3 * c1), lambda b: (0, 0)),       # cv4 w (bf16)
                pl.BlockSpec((c4, 1), lambda b: (0, 0)),            # cv4 bias
                pl.BlockSpec((c4, 1), lambda b: (0, 0)),            # GN gamma
                pl.BlockSpec((c4, 1), lambda b: (0, 0)),            # GN beta
                pl.BlockSpec((c4, G), lambda b: (0, 0)),            # group one-hots
            ],
            out_specs=pl.BlockSpec((1, c4, HW), lambda b: (b, 0, 0)),
            scratch_shapes=[
                pltpu.VMEM((c1, HWe), jnp.float32),      # zero-haloed shifted reads
                pltpu.VMEM((3 * c1, HW), jnp.bfloat16),  # concatenated cv4 input
            ],
        ),
        compiler_params=pltpu.CompilerParams(
            dimension_semantics=("parallel",),
            vmem_limit_bytes=_vmem_limit_bytes()),
    )(x_cf, fp["w1"], fp["b1"], fp["dw"], mx, fp["w3"], fp["c3"],
      fp["w4"], fp["b4"], fp["gamma"], fp["beta"], fp["gmask"])


# ---------------------------------------------------------------------------
# Parameter init (deterministic, synthetic, torch (out,in) orientation),
# BN folding and the LKP forward wrapper.
# ---------------------------------------------------------------------------
def init_lkp_params(key, dim, lks, sks, groups):
    c1 = dim // 2
    c4 = sks * sks * dim // groups
    keys = jax.random.split(key, 9)

    def bn(n):
        # eval-mode BN fold: weight=1, bias=0, running_mean=0, running_var=1
        scale = jnp.full((n,), 1.0 / math.sqrt(1.0 + BN_EPS), jnp.float32)
        shift = jnp.zeros((n,), jnp.float32)
        return scale, shift

    p = {}
    p["w_cv1"] = 0.1 * jax.random.normal(keys[0], (c1, dim), jnp.float32)
    p["bn_cv1"] = bn(c1)
    p["w_cv2"] = 0.1 * jax.random.normal(keys[1], (c1, lks, lks), jnp.float32)
    p["bn_cv2"] = bn(c1)
    p["w_cv2_"] = 0.1 * jax.random.normal(keys[2], (c1, lks + 2, lks + 2), jnp.float32)
    p["bn_cv2_"] = bn(c1)
    p["w_cv2__"] = 0.1 * jax.random.normal(keys[3], (c1, lks - 2, lks - 2), jnp.float32)
    p["bn_cv2__"] = bn(c1)
    p["w_cv31"] = 0.1 * jax.random.normal(keys[4], (c1, c1), jnp.float32)
    p["bn_cv31"] = bn(c1)
    p["w_cv32"] = 0.1 * jax.random.normal(keys[5], (c1, c1), jnp.float32)
    p["bn_cv32"] = bn(c1)
    p["w_cv33"] = 0.1 * jax.random.normal(keys[6], (c1, c1), jnp.float32)
    p["bn_cv33"] = bn(c1)
    p["w_cv4"] = 0.1 * jax.random.normal(keys[7], (c4, 3 * c1), jnp.float32)
    p["b_cv4"] = 0.01 * jax.random.normal(keys[8], (c4,), jnp.float32)
    p["gn_gamma"] = jnp.ones((c4,), jnp.float32)   # torch GroupNorm affine defaults
    p["gn_beta"] = jnp.zeros((c4,), jnp.float32)
    return p


def _fold_params(p, *, dim, sks, groups):
    c1 = dim // 2
    G = dim // groups
    Cg = sks * sks
    c4 = G * Cg
    ks = (p["w_cv2"].shape[-1], p["w_cv2_"].shape[-1], p["w_cv2__"].shape[-1])
    kmax = max(ks)

    s1, b1 = p["bn_cv1"]
    w1 = (p["w_cv1"] * s1[:, None]).astype(jnp.bfloat16)          # (c1, dim)
    b1c = b1.reshape(c1, 1)

    branch_keys = (("w_cv2", "bn_cv2", "w_cv31", "bn_cv31"),
                   ("w_cv2_", "bn_cv2_", "w_cv32", "bn_cv32"),
                   ("w_cv2__", "bn_cv2__", "w_cv33", "bn_cv33"))
    dw_l, w3_l, c3_l = [], [], []
    for wk_key, bn2_key, w3_key, bn3_key in branch_keys:
        s2, b2 = p[bn2_key]
        s3, b3 = p[bn3_key]
        wk = p[wk_key] * s2[:, None, None]            # BN2 scale folded into taps
        K = wk.shape[-1]
        off = (kmax - K) // 2                         # center inside kmax window
        wkc = jnp.pad(wk, ((0, 0), (off, kmax - K - off), (off, kmax - K - off)))
        dw_l.append(wkc.reshape(c1, kmax * kmax))
        a3 = p[w3_key] * s3[:, None]                  # BN3 scale folded into cv3
        w3_l.append(a3)
        c3_l.append((a3 @ b2 + b3).reshape(c1, 1))    # BN2 shift pushed through cv3
    dw = jnp.stack(dw_l)                              # (3, c1, kmax*kmax) f32
    w3 = jnp.stack(w3_l).astype(jnp.bfloat16)         # (3, c1, c1)
    c3 = jnp.stack(c3_l)                              # (3, c1, 1) f32
    w4 = p["w_cv4"].astype(jnp.bfloat16)              # (c4, 3*c1), un-split
    b4 = p["b_cv4"].reshape(c4, 1)
    gamma = p["gn_gamma"].reshape(c4, 1)
    beta = p["gn_beta"].reshape(c4, 1)
    gmask = (jnp.arange(c4)[:, None] // Cg ==
             jnp.arange(G)[None, :]).astype(jnp.float32)          # (c4, G)
    return dict(w1=w1, b1=b1c, dw=dw, w3=w3, c3=c3, w4=w4, b4=b4,
                gamma=gamma, beta=beta, gmask=gmask, ks=ks)


def lkp_forward(params, x_nchw, *, dim, sks, groups):
    B, C, H, W = x_nchw.shape
    assert C == dim
    c1 = dim // 2
    G = dim // groups            # GroupNorm num_groups (= leading dim of the view)
    Cg = sks * sks               # channels per GroupNorm group
    c4 = G * Cg

    fp = _fold_params(params, dim=dim, sks=sks, groups=groups)

    # NCHW is already channels-first: only flatten spatial onto the lane axis and
    # cast to bf16 once in the wrapper (halves input DMA bytes, no transpose).
    x_cf = x_nchw.reshape(B, dim, H * W).astype(jnp.bfloat16)

    out = lkp_fused(x_cf, fp, H=H, W=W, dim=dim, c1=c1, c4=c4, G=G, Cg=Cg)

    # (B, c4, HW) is exactly torch's NCHW memory layout of `w`; the original
    # view(b, dim//groups, sks**2, h, w) is therefore a pure reshape.
    return out.reshape(B, G, Cg, H, W)


if __name__ == "__main__":
    dim, lks, sks, groups = 16, 7, 3, 4
    B, H, W = 2, 16, 16

    key = jax.random.PRNGKey(0)
    kx, kp = jax.random.split(key)
    x = jax.random.normal(kx, (B, dim, H, W), jnp.float32)        # NCHW, like PyTorch
    params = init_lkp_params(kp, dim, lks, sks, groups)

    out = lkp_forward(params, x, dim=dim, sks=sks, groups=groups)
    out = jax.block_until_ready(out)

    assert out.shape == (B, dim // groups, sks * sks, H, W), out.shape
    assert bool(jnp.all(jnp.isfinite(out)))
    print("KERNEL_OK")
</pallas_src>

<mosaic_0001>
module attributes {stable_mosaic.version = 11 : i64} {
  func.func @_lkp_fused_kernel(%arg0: i32, %arg1: memref<1x16x256xbf16, #tpu.memory_space<vmem>>, %arg2: memref<8x16xbf16, #tpu.memory_space<vmem>>, %arg3: memref<8x1xf32, #tpu.memory_space<vmem>>, %arg4: memref<3x8x81xf32, #tpu.memory_space<vmem>>, %arg5: memref<9x256xf32, #tpu.memory_space<vmem>>, %arg6: memref<3x8x8xbf16, #tpu.memory_space<vmem>>, %arg7: memref<3x8x1xf32, #tpu.memory_space<vmem>>, %arg8: memref<36x24xbf16, #tpu.memory_space<vmem>>, %arg9: memref<36x1xf32, #tpu.memory_space<vmem>>, %arg10: memref<36x1xf32, #tpu.memory_space<vmem>>, %arg11: memref<36x1xf32, #tpu.memory_space<vmem>>, %arg12: memref<36x4xf32, #tpu.memory_space<vmem>>, %arg13: memref<1x36x256xf32, #tpu.memory_space<vmem>>, %arg14: memref<8x512xf32, #tpu.memory_space<vmem>>, %arg15: memref<24x256xbf16, #tpu.memory_space<vmem>>) attributes {dimension_semantics = [#tpu.dimension_semantics<parallel>], iteration_bounds = array<i64: 2>, scalar_prefetch = 0 : i64, scratch_operands = 2 : i64, tpu.core_type = #tpu.core_type<tc>, window_params = [{transform_indices = @transform_0, window_bounds = array<i64: 1, 16, 256>}, {pipeline_mode = #tpu.pipeline_mode<synchronous>, transform_indices = @transform_1, window_bounds = array<i64: 8, 16>}, {pipeline_mode = #tpu.pipeline_mode<synchronous>, transform_indices = @transform_2, window_bounds = array<i64: 8, 1>}, {pipeline_mode = #tpu.pipeline_mode<synchronous>, transform_indices = @transform_3, window_bounds = array<i64: 3, 8, 81>}, {pipeline_mode = #tpu.pipeline_mode<synchronous>, transform_indices = @transform_4, window_bounds = array<i64: 9, 256>}, {pipeline_mode = #tpu.pipeline_mode<synchronous>, transform_indices = @transform_5, window_bounds = array<i64: 3, 8, 8>}, {pipeline_mode = #tpu.pipeline_mode<synchronous>, transform_indices = @transform_6, window_bounds = array<i64: 3, 8, 1>}, {pipeline_mode = #tpu.pipeline_mode<synchronous>, transform_indices = @transform_7, window_bounds = array<i64: 36, 24>}, {pipeline_mode = #tpu.pipeline_mode<synchronous>, transform_indices = @transform_8, window_bounds = array<i64: 36, 1>}, {pipeline_mode = #tpu.pipeline_mode<synchronous>, transform_indices = @transform_9, window_bounds = array<i64: 36, 1>}, {pipeline_mode = #tpu.pipeline_mode<synchronous>, transform_indices = @transform_10, window_bounds = array<i64: 36, 1>}, {pipeline_mode = #tpu.pipeline_mode<synchronous>, transform_indices = @transform_11, window_bounds = array<i64: 36, 4>}, {transform_indices = @transform_12, window_bounds = array<i64: 1, 36, 256>}]} {
    %c0 = arith.constant 0 : index
    %c0_0 = arith.constant 0 : index
    %0 = vector.load %arg2[%c0, %c0_0] : memref<8x16xbf16, #tpu.memory_space<vmem>>, vector<8x16xbf16>
    %c0_1 = arith.constant 0 : index
    %c0_2 = arith.constant 0 : index
    %c0_3 = arith.constant 0 : index
    %1 = vector.load %arg1[%c0_1, %c0_2, %c0_3] : memref<1x16x256xbf16, #tpu.memory_space<vmem>>, vector<1x16x256xbf16>
    %2 = vector.shape_cast %1 : vector<1x16x256xbf16> to vector<16x256xbf16>
    %cst = arith.constant dense<0.000000e+00> : vector<8x256xf32>
    %3 = tpu.matmul %0, %2, %cst {dimension_numbers = #tpu.dot_dimension_numbers<[1], [0], [0], [1], [0, 0, 1, 1], [], []>} : vector<8x16xbf16>, vector<16x256xbf16>, vector<8x256xf32> -> vector<8x256xf32>
    %c0_4 = arith.constant 0 : index
    %c0_5 = arith.constant 0 : index
    %4 = vector.load %arg3[%c0_4, %c0_5] : memref<8x1xf32, #tpu.memory_space<vmem>>, vector<8x1xf32>
    %5 = vector.broadcast %4 : vector<8x1xf32> to vector<8x256xf32>
    %6 = arith.addf %3, %5 : vector<8x256xf32>
    %cst_6 = arith.constant 0.000000e+00 : f32
    %7 = vector.broadcast %cst_6 : f32 to vector<8x256xf32>
    %8 = arith.maximumf %6, %7 : vector<8x256xf32>
    %cst_7 = arith.constant 0.000000e+00 : f32
    %9 = vector.broadcast %cst_7 : f32 to vector<8x128xf32>
    %c0_8 = arith.constant 0 : index
    %c0_9 = arith.constant 0 : index
    %10 = vector.load %arg14[%c0_8, %c0_9] : memref<8x512xf32, #tpu.memory_space<vmem>>, vector<8x128xf32>
    tpu.vector_store %arg14[%c0_8, %c0_9], %9 {strides = array<i32>} : memref<8x512xf32, #tpu.memory_space<vmem>>, vector<8x128xf32>,
    %c0_10 = arith.constant 0 : index
    %c384 = arith.constant 384 : index
    %11 = vector.load %arg14[%c0_10, %c384] : memref<8x512xf32, #tpu.memory_space<vmem>>, vector<8x128xf32>
    tpu.vector_store %arg14[%c0_10, %c384], %9 {strides = array<i32>} : memref<8x512xf32, #tpu.memory_space<vmem>>, vector<8x128xf32>,
    %c0_11 = arith.constant 0 : index
    %c0_12 = arith.constant 0 : index
    %c0_13 = arith.constant 0 : index
    %12 = vector.load %arg4[%c0_11, %c0_12, %c0_13] : memref<3x8x81xf32, #tpu.memory_space<vmem>>, vector<1x8x81xf32>
    %13 = vector.shape_cast %12 : vector<1x8x81xf32> to vector<8x81xf32>
    %c1 = arith.constant 1 : index
    %c0_14 = arith.constant 0 : index
    %c0_15 = arith.constant 0 : index
    %14 = vector.load %arg4[%c1, %c0_14, %c0_15] : memref<3x8x81xf32, #tpu.memory_space<vmem>>, vector<1x8x81xf32>
    %15 = vector.shape_cast %14 : vector<1x8x81xf32> to vector<8x81xf32>
    %c2 = arith.constant 2 : index
    %c0_16 = arith.constant 0 : index
    %c0_17 = arith.constant 0 : index
    %16 = vector.load %arg4[%c2, %c0_16, %c0_17] : memref<3x8x81xf32, #tpu.memory_space<vmem>>, vector<1x8x81xf32>
    %17 = vector.shape_cast %16 : vector<1x8x81xf32> to vector<8x81xf32>
    %cst_18 = arith.constant 0.000000e+00 : f32
    %18 = vector.broadcast %cst_18 : f32 to vector<8x256xf32>
    %cst_19 = arith.constant 0.000000e+00 : f32
    %19 = vector.broadcast %cst_19 : f32 to vector<8x256xf32>
    %cst_20 = arith.constant 0.000000e+00 : f32
    %20 = vector.broadcast %cst_20 : f32 to vector<8x256xf32>
    %c0_21 = arith.constant 0 : index
    %c0_22 = arith.constant 0 : index
    %21 = vector.load %arg5[%c0_21, %c0_22] : memref<9x256xf32, #tpu.memory_space<vmem>>, vector<1x256xf32>
    %22 = vector.broadcast %21 : vector<1x256xf32> to vector<8x256xf32>
    %23 = arith.mulf %8, %22 : vector<8x256xf32>
    %c0_23 = arith.constant 0 : index
    %c128 = arith.constant 128 : index
    %24 = vector.load %arg14[%c0_23, %c128] : memref<8x512xf32, #tpu.memory_space<vmem>>, vector<8x256xf32>
    tpu.vector_store %arg14[%c0_23, %c128], %23 {strides = array<i32>} : memref<8x512xf32, #tpu.memory_space<vmem>>, vector<8x256xf32>,
    %c0_24 = arith.constant 0 : index
    %c60 = arith.constant 60 : index
    %25 = vector.load %arg14[%c0_24, %c60] : memref<8x512xf32, #tpu.memory_space<vmem>>, vector<8x256xf32>
    %26 = vector.extract_strided_slice %15 {offsets = [0, 0], sizes = [8, 1], strides = [1, 1]} : vector<8x81xf32> to vector<8x1xf32>
    %27 = vector.broadcast %26 : vector<8x1xf32> to vector<8x256xf32>
    %28 = arith.mulf %25, %27 : vector<8x256xf32>
    %29 = arith.addf %19, %28 : vector<8x256xf32>
    %c0_25 = arith.constant 0 : index
    %c76 = arith.constant 76 : index
    %30 = vector.load %arg14[%c0_25, %c76] : memref<8x512xf32, #tpu.memory_space<vmem>>, vector<8x256xf32>
    %31 = vector.extract_strided_slice %15 {offsets = [0, 9], sizes = [8, 1], strides = [1, 1]} : vector<8x81xf32> to vector<8x1xf32>
    %32 = vector.broadcast %31 : vector<8x1xf32> to vector<8x256xf32>
    %33 = arith.mulf %30, %32 : vector<8x256xf32>
    %34 = arith.addf %29, %33 : vector<8x256xf32>
    %c0_26 = arith.constant 0 : index
    %c92 = arith.constant 92 : index
    %35 = vector.load %arg14[%c0_26, %c92] : memref<8x512xf32, #tpu.memory_space<vmem>>, vector<8x256xf32>
    %36 = vector.extract_strided_slice %15 {offsets = [0, 18], sizes = [8, 1], strides = [1, 1]} : vector<8x81xf32> to vector<8x1xf32>
    %37 = vector.broadcast %36 : vector<8x1xf32> to vector<8x256xf32>
    %38 = arith.mulf %35, %37 : vector<8x256xf32>
    %39 = arith.addf %34, %38 : vector<8x256xf32>
    %c0_27 = arith.constant 0 : index
    %c108 = arith.constant 108 : index
    %40 = vector.load %arg14[%c0_27, %c108] : memref<8x512xf32, #tpu.memory_space<vmem>>, vector<8x256xf32>
    %41 = vector.extract_strided_slice %15 {offsets = [0, 27], sizes = [8, 1], strides = [1, 1]} : vector<8x81xf32> to vector<8x1xf32>
    %42 = vector.broadcast %41 : vector<8x1xf32> to vector<8x256xf32>
    %43 = arith.mulf %40, %42 : vector<8x256xf32>
    %44 = arith.addf %39, %43 : vector<8x256xf32>
    %c0_28 = arith.constant 0 : index
    %c124 = arith.constant 124 : index
    %45 = vector.load %arg14[%c0_28, %c124] : memref<8x512xf32, #tpu.memory_space<vmem>>, vector<8x256xf32>
    %46 = vector.extract_strided_slice %15 {offsets = [0, 36], sizes = [8, 1], strides = [1, 1]} : vector<8x81xf32> to vector<8x1xf32>
    %47 = vector.broadcast %46 : vector<8x1xf32> to vector<8x256xf32>
    %48 = arith.mulf %45, %47 : vector<8x256xf32>
    %49 = arith.addf %44, %48 : vector<8x256xf32>
    %c0_29 = arith.constant 0 : index
    %c140 = arith.constant 140 : index
    %50 = vector.load %arg14[%c0_29, %c140] : memref<8x512xf32, #tpu.memory_space<vmem>>, vector<8x256xf32>
    %51 = vector.extract_strided_slice %15 {offsets = [0, 45], sizes = [8, 1], strides = [1, 1]} : vector<8x81xf32> to vector<8x1xf32>
    %52 = vector.broadcast %51 : vector<8x1xf32> to vector<8x256xf32>
    %53 = arith.mulf %50, %52 : vector<8x256xf32>
    %54 = arith.addf %49, %53 : vector<8x256xf32>
    %c0_30 = arith.constant 0 : index
    %c156 = arith.constant 156 : index
    %55 = vector.load %arg14[%c0_30, %c156] : memref<8x512xf32, #tpu.memory_space<vmem>>, vector<8x256xf32>
    %56 = vector.extract_strided_slice %15 {offsets = [0, 54], sizes = [8, 1], strides = [1, 1]} : vector<8x81xf32> to vector<8x1xf32>
    %57 = vector.broadcast %56 : vector<8x1xf32> to vector<8x256xf32>
    %58 = arith.mulf %55, %57 : vector<8x256xf32>
    %59 = arith.addf %54, %58 : vector<8x256xf32>
    %c0_31 = arith.constant 0 : index
    %c172 = arith.constant 172 : index
    %60 = vector.load %arg14[%c0_31, %c172] : memref<8x512xf32, #tpu.memory_space<vmem>>, vector<8x256xf32>
    %61 = vector.extract_strided_slice %15 {offsets = [0, 63], sizes = [8, 1], strides = [1, 1]} : vector<8x81xf32> to vector<8x1xf32>
    %62 = vector.broadcast %61 : vector<8x1xf32> to vector<8x256xf32>
    %63 = arith.mulf %60, %62 : vector<8x256xf32>
    %64 = arith.addf %59, %63 : vector<8x256xf32>
    %c0_32 = arith.constant 0 : index
    %c188 = arith.constant 188 : index
    %65 = vector.load %arg14[%c0_32, %c188] : memref<8x512xf32, #tpu.memory_space<vmem>>, vector<8x256xf32>
    %66 = vector.extract_strided_slice %15 {offsets = [0, 72], sizes = [8, 1], strides = [1, 1]} : vector<8x81xf32> to vector<8x1xf32>
    %67 = vector.broadcast %66 : vector<8x1xf32> to vector<8x256xf32>
    %68 = arith.mulf %65, %67 : vector<8x256xf32>
    %69 = arith.addf %64, %68 : vector<8x256xf32>
    %c1_33 = arith.constant 1 : index
    %c0_34 = arith.constant 0 : index
    %70 = vector.load %arg5[%c1_33, %c0_34] : memref<9x256xf32, #tpu.memory_space<vmem>>, vector<1x256xf32>
    %71 = vector.broadcast %70 : vector<1x256xf32> to vector<8x256xf32>
    %72 = arith.mulf %8, %71 : vector<8x256xf32>
    %c0_35 = arith.constant 0 : index
    %c128_36 = arith.constant 128 : index
    %73 = vector.load %arg14[%c0_35, %c128_36] : memref<8x512xf32, #tpu.memory_space<vmem>>, vector<8x256xf32>
    tpu.vector_store %arg14[%c0_35, %c128_36], %72 {strides = array<i32>} : memref<8x512xf32, #tpu.memory_space<vmem>>, vector<8x256xf32>,
    %c0_37 = arith.constant 0 : index
    %c61 = arith.constant 61 : index
    %74 = vector.load %arg14[%c0_37, %c61] : memref<8x512xf32, #tpu.memory_space<vmem>>, vector<8x256xf32>
    %75 = vector.extract_strided_slice %15 {offsets = [0, 1], sizes = [8, 1], strides = [1, 1]} : vector<8x81xf32> to vector<8x1xf32>
    %76 = vector.broadcast %75 : vector<8x1xf32> to vector<8x256xf32>
    %77 = arith.mulf %74, %76 : vector<8x256xf32>
    %78 = arith.addf %69, %77 : vector<8x256xf32>
    %c0_38 = arith.constant 0 : index
    %c77 = arith.constant 77 : index
    %79 = vector.load %arg14[%c0_38, %c77] : memref<8x512xf32, #tpu.memory_space<vmem>>, vector<8x256xf32>
    %80 = vector.extract_strided_slice %13 {offsets = [0, 10], sizes = [8, 1], strides = [1, 1]} : vector<8x81xf32> to vector<8x1xf32>
    %81 = vector.broadcast %80 : vector<8x1xf32> to vector<8x256xf32>
    %82 = arith.mulf %79, %81 : vector<8x256xf32>
    %83 = arith.addf %18, %82 : vector<8x256xf32>
    %84 = vector.extract_strided_slice %15 {offsets = [0, 10], sizes = [8, 1], strides = [1, 1]} : vector<8x81xf32> to vector<8x1xf32>
    %85 = vector.broadcast %84 : vector<8x1xf32> to vector<8x256xf32>
    %86 = arith.mulf %79, %85 : vector<8x256xf32>
    %87 = arith.addf %78, %86 : vector<8x256xf32>
    %c0_39 = arith.constant 0 : index
    %c93 = arith.constant 93 : index
    %88 = vector.load %arg14[%c0_39, %c93] : memref<8x512xf32, #tpu.memory_space<vmem>>, vector<8x256xf32>
    %89 = vector.extract_strided_slice %13 {offsets = [0, 19], sizes = [8, 1], strides = [1, 1]} : vector<8x81xf32> to vector<8x1xf32>
    %90 = vector.broadcast %89 : vector<8x1xf32> to vector<8x256xf32>
    %91 = arith.mulf %88, %90 : vector<8x256xf32>
    %92 = arith.addf %83, %91 : vector<8x256xf32>
    %93 = vector.extract_strided_slice %15 {offsets = [0, 19], sizes = [8, 1], strides = [1, 1]} : vector<8x81xf32> to vector<8x1xf32>
    %94 = vector.broadcast %93 : vector<8x1xf32> to vector<8x256xf32>
    %95 = arith.mulf %88, %94 : vector<8x256xf32>
    %96 = arith.addf %87, %95 : vector<8x256xf32>
    %c0_40 = arith.constant 0 : index
    %c109 = arith.constant 109 : index
    %97 = vector.load %arg14[%c0_40, %c109] : memref<8x512xf32, #tpu.memory_space<vmem>>, vector<8x256xf32>
    %98 = vector.extract_strided_slice %13 {offsets = [0, 28], sizes = [8, 1], strides = [1, 1]} : vector<8x81xf32> to vector<8x1xf32>
    %99 = vector.broadcast %98 : vector<8x1xf32> to vector<8x256xf32>
    %100 = arith.mulf %97, %99 : vector<8x256xf32>
    %101 = arith.addf %92, %100 : vector<8x256xf32>
    %102 = vector.extract_strided_slice %15 {offsets = [0, 28], sizes = [8, 1], strides = [1, 1]} : vector<8x81xf32> to vector<8x1xf32>
    %103 = vector.broadcast %102 : vector<8x1xf32> to vector<8x256xf32>
    %104 = arith.mulf %97, %103 : vector<8x256xf32>
    %105 = arith.addf %96, %104 : vector<8x256xf32>
    %c0_41 = arith.constant 0 : index
    %c125 = arith.constant 125 : index
    %106 = vector.load %arg14[%c0_41, %c125] : memref<8x512xf32, #tpu.memory_space<vmem>>, vector<8x256xf32>
    %107 = vector.extract_strided_slice %13 {offsets = [0, 37], sizes = [8, 1], strides = [1, 1]} : vector<8x81xf32> to vector<8x1xf32>
    %108 = vector.broadcast %107 : vector<8x1xf32> to vector<8x256xf32>
    %109 = arith.mulf %106, %108 : vector<8x256xf32>
    %110 = arith.addf %101, %109 : vector<8x256xf32>
    %111 = vector.extract_strided_slice %15 {offsets = [0, 37], sizes = [8, 1], strides = [1, 1]} : vector<8x81xf32> to vector<8x1xf32>
    %112 = vector.broadcast %111 : vector<8x1xf32> to vector<8x256xf32>
    %113 = arith.mulf %106, %112 : vector<8x256xf32>
    %114 = arith.addf %105, %113 : vector<8x256xf32>
    %c0_42 = arith.constant 0 : index
    %c141 = arith.constant 141 : index
    %115 = vector.load %arg14[%c0_42, %c141] : memref<8x512xf32, #tpu.memory_space<vmem>>, vector<8x256xf32>
    %116 = vector.extract_strided_slice %13 {offsets = [0, 46], sizes = [8, 1], strides = [1, 1]} : vector<8x81xf32> to vector<8x1xf32>
    %117 = vector.broadcast %116 : vector<8x1xf32> to vector<8x256xf32>
    %118 = arith.mulf %115, %117 : vector<8x256xf32>
    %119 = arith.addf %110, %118 : vector<8x256xf32>
    %120 = vector.extract_strided_slice %15 {offsets = [0, 46], sizes = [8, 1], strides = [1, 1]} : vector<8x81xf32> to vector<8x1xf32>
    %121 = vector.broadcast %120 : vector<8x1xf32> to vector<8x256xf32>
    %122 = arith.mulf %115, %121 : vector<8x256xf32>
    %123 = arith.addf %114, %122 : vector<8x256xf32>
    %c0_43 = arith.constant 0 : index
    %c157 = arith.constant 157 : index
    %124 = vector.load %arg14[%c0_43, %c157] : memref<8x512xf32, #tpu.memory_space<vmem>>, vector<8x256xf32>
    %125 = vector.extract_strided_slice %13 {offsets = [0, 55], sizes = [8, 1], strides = [1, 1]} : vector<8x81xf32> to vector<8x1xf32>
    %126 = vector.broadcast %125 : vector<8x1xf32> to vector<8x256xf32>
    %127 = arith.mulf %124, %126 : vector<8x256xf32>
    %128 = arith.addf %119, %127 : vector<8x256xf32>
    %129 = vector.extract_strided_slice %15 {offsets = [0, 55], sizes = [8, 1], strides = [1, 1]} : vector<8x81xf32> to vector<8x1xf32>
    %130 = vector.broadcast %129 : vector<8x1xf32> to vector<8x256xf32>
    %131 = arith.mulf %124, %130 : vector<8x256xf32>
    %132 = arith.addf %123, %131 : vector<8x256xf32>
    %c0_44 = arith.constant 0 : index
    %c173 = arith.constant 173 : index
    %133 = vector.load %arg14[%c0_44, %c173] : memref<8x512xf32, #tpu.memory_space<vmem>>, vector<8x256xf32>
    %134 = vector.extract_strided_slice %13 {offsets = [0, 64], sizes = [8, 1], strides = [1, 1]} : vector<8x81xf32> to vector<8x1xf32>
    %135 = vector.broadcast %134 : vector<8x1xf32> to vector<8x256xf32>
    %136 = arith.mulf %133, %135 : vector<8x256xf32>
    %137 = arith.addf %128, %136 : vector<8x256xf32>
    %138 = vector.extract_strided_slice %15 {offsets = [0, 64], sizes = [8, 1], strides = [1, 1]} : vector<8x81xf32> to vector<8x1xf32>
    %139 = vector.broadcast %138 : vector<8x1xf32> to vector<8x256xf32>
    %140 = arith.mulf %133, %139 : vector<8x256xf32>
    %141 = arith.addf %132, %140 : vector<8x256xf32>
    %c0_45 = arith.constant 0 : index
    %c189 = arith.constant 189 : index
    %142 = vector.load %arg14[%c0_45, %c189] : memref<8x512xf32, #tpu.memory_space<vmem>>, vector<8x256xf32>
    %143 = vector.extract_strided_slice %15 {offsets = [0, 73], sizes = [8, 1], strides = [1, 1]} : vector<8x81xf32> to vector<8x1xf32>
    %144 = vector.broadcast %143 : vector<8x1xf32> to vector<8x256xf32>
    %145 = arith.mulf %142, %144 : vector<8x256xf32>
    %146 = arith.addf %141, %145 : vector<8x256xf32>
    %c2_46 = arith.constant 2 : index
    %c0_47 = arith.constant 0 : index
    %147 = vector.load %arg5[%c2_46, %c0_47] : memref<9x256xf32, #tpu.memory_space<vmem>>, vector<1x256xf32>
    %148 = vector.broadcast %147 : vector<1x256xf32> to vector<8x256xf32>
    %149 = arith.mulf %8, %148 : vector<8x256xf32>
    %c0_48 = arith.constant 0 : index
    %c128_49 = arith.constant 128 : index
    %150 = vector.load %arg14[%c0_48, %c128_49] : memref<8x512xf32, #tpu.memory_space<vmem>>, vector<8x256xf32>
    tpu.vector_store %arg14[%c0_48, %c128_49], %149 {strides = array<i32>} : memref<8x512xf32, #tpu.memory_space<vmem>>, vector<8x256xf32>,
    %c0_50 = arith.constant 0 : index
    %c62 = arith.constant 62 : index
    %151 = vector.load %arg14[%c0_50, %c62] : memref<8x512xf32, #tpu.memory_space<vmem>>, vector<8x256xf32>
    %152 = vector.extract_strided_slice %15 {offsets = [0, 2], sizes = [8, 1], strides = [1, 1]} : vector<8x81xf32> to vector<8x1xf32>
    %153 = vector.broadcast %152 : vector<8x1xf32> to vector<8x256xf32>
    %154 = arith.mulf %151, %153 : vector<8x256xf32>
    %155 = arith.addf %146, %154 : vector<8x256xf32>
    %c0_51 = arith.constant 0 : index
    %c78 = arith.constant 78 : index
    %156 = vector.load %arg14[%c0_51, %c78] : memref<8x512xf32, #tpu.memory_space<vmem>>, vector<8x256xf32>
    %157 = vector.extract_strided_slice %13 {offsets = [0, 11], sizes = [8, 1], strides = [1, 1]} : vector<8x81xf32> to vector<8x1xf32>
    %158 = vector.broadcast %157 : vector<8x1xf32> to vector<8x256xf32>
    %159 = arith.mulf %156, %158 : vector<8x256xf32>
    %160 = arith.addf %137, %159 : vector<8x256xf32>
    %161 = vector.extract_strided_slice %15 {offsets = [0, 11], sizes = [8, 1], strides = [1, 1]} : vector<8x81xf32> to vector<8x1xf32>
    %162 = vector.broadcast %161 : vector<8x1xf32> to vector<8x256xf32>
    %163 = arith.mulf %156, %162 : vector<8x256xf32>
    %164 = arith.addf %155, %163 : vector<8x256xf32>
    %c0_52 = arith.constant 0 : index
    %c94 = arith.constant 94 : index
    %165 = vector.load %arg14[%c0_52, %c94] : memref<8x512xf32, #tpu.memory_space<vmem>>, vector<8x256xf32>
    %166 = vector.extract_strided_slice %13 {offsets = [0, 20], sizes = [8, 1], strides = [1, 1]} : vector<8x81xf32> to vector<8x1xf32>
    %167 = vector.broadcast %166 : vector<8x1xf32> to vector<8x256xf32>
    %168 = arith.mulf %165, %167 : vector<8x256xf32>
    %169 = arith.addf %160, %168 : vector<8x256xf32>
    %170 = vector.extract_strided_slice %15 {offsets = [0, 20], sizes = [8, 1], strides = [1, 1]} : vector<8x81xf32> to vector<8x1xf32>
    %171 = vector.broadcast %170 : vector<8x1xf32> to vector<8x256xf32>
    %172 = arith.mulf %165, %171 : vector<8x256xf32>
    %173 = arith.addf %164, %172 : vector<8x256xf32>
    %174 = vector.extract_strided_slice %17 {offsets = [0, 20], sizes = [8, 1], strides = [1, 1]} : vector<8x81xf32> to vector<8x1xf32>
    %175 = vector.broadcast %174 : vector<8x1xf32> to vector<8x256xf32>
    %176 = arith.mulf %165, %175 : vector<8x256xf32>
    %177 = arith.addf %20, %176 : vector<8x256xf32>
    %c0_53 = arith.constant 0 : index
    %c110 = arith.constant 110 : index
    %178 = vector.load %arg14[%c0_53, %c110] : memref<8x512xf32, #tpu.memory_space<vmem>>, vector<8x256xf32>
    %179 = vector.extract_strided_slice %13 {offsets = [0, 29], sizes = [8, 1], strides = [1, 1]} : vector<8x81xf32> to vector<8x1xf32>
    %180 = vector.broadcast %179 : vector<8x1xf32> to vector<8x256xf32>
    %181 = arith.mulf %178, %180 : vector<8x256xf32>
    %182 = arith.addf %169, %181 : vector<8x256xf32>
    %183 = vector.extract_strided_slice %15 {offsets = [0, 29], sizes = [8, 1], strides = [1, 1]} : vector<8x81xf32> to vector<8x1xf32>
    %184 = vector.broadcast %183 : vector<8x1xf32> to vector<8x256xf32>
    %185 = arith.mulf %178, %184 : vector<8x256xf32>
    %186 = arith.addf %173, %185 : vector<8x256xf32>
    %187 = vector.extract_strided_slice %17 {offsets = [0, 29], sizes = [8, 1], strides = [1, 1]} : vector<8x81xf32> to vector<8x1xf32>
    %188 = vector.broadcast %187 : vector<8x1xf32> to vector<8x256xf32>
    %189 = arith.mulf %178, %188 : vector<8x256xf32>
    %190 = arith.addf %177, %189 : vector<8x256xf32>
    %c0_54 = arith.constant 0 : index
    %c126 = arith.constant 126 : index
    %191 = vector.load %arg14[%c0_54, %c126] : memref<8x512xf32, #tpu.memory_space<vmem>>, vector<8x256xf32>
    %192 = vector.extract_strided_slice %13 {offsets = [0, 38], sizes = [8, 1], strides = [1, 1]} : vector<8x81xf32> to vector<8x1xf32>
    %193 = vector.broadcast %192 : vector<8x1xf32> to vector<8x256xf32>
    %194 = arith.mulf %191, %193 : vector<8x256xf32>
    %195 = arith.addf %182, %194 : vector<8x256xf32>
    %196 = vector.extract_strided_slice %15 {offsets = [0, 38], sizes = [8, 1], strides = [1, 1]} : vector<8x81xf32> to vector<8x1xf32>
    %197 = vector.broadcast %196 : vector<8x1xf32> to vector<8x256xf32>
    %198 = arith.mulf %191, %197 : vector<8x256xf32>
    %199 = arith.addf %186, %198 : vector<8x256xf32>
    %200 = vector.extract_strided_slice %17 {offsets = [0, 38], sizes = [8, 1], strides = [1, 1]} : vector<8x81xf32> to vector<8x1xf32>
    %201 = vector.broadcast %200 : vector<8x1xf32> to vector<8x256xf32>
    %202 = arith.mulf %191, %201 : vector<8x256xf32>
    %203 = arith.addf %190, %202 : vector<8x256xf32>
    %c0_55 = arith.constant 0 : index
    %c142 = arith.constant 142 : index
    %204 = vector.load %arg14[%c0_55, %c142] : memref<8x512xf32, #tpu.memory_space<vmem>>, vector<8x256xf32>
    %205 = vector.extract_strided_slice %13 {offsets = [0, 47], sizes = [8, 1], strides = [1, 1]} : vector<8x81xf32> to vector<8x1xf32>
    %206 = vector.broadcast %205 : vector<8x1xf32> to vector<8x256xf32>
    %207 = arith.mulf %204, %206 : vector<8x256xf32>
    %208 = arith.addf %195, %207 : vector<8x256xf32>
    %209 = vector.extract_strided_slice %15 {offsets = [0, 47], sizes = [8, 1], strides = [1, 1]} : vector<8x81xf32> to vector<8x1xf32>
    %210 = vector.broadcast %209 : vector<8x1xf32> to vector<8x256xf32>
    %211 = arith.mulf %204, %210 : vector<8x256xf32>
    %212 = arith.addf %199, %211 : vector<8x256xf32>
    %213 = vector.extract_strided_slice %17 {offsets = [0, 47], sizes = [8, 1], strides = [1, 1]} : vector<8x81xf32> to vector<8x1xf32>
    %214 = vector.broadcast %213 : vector<8x1xf32> to vector<8x256xf32>
    %215 = arith.mulf %204, %214 : vector<8x256xf32>
    %216 = arith.addf %203, %215 : vector<8x256xf32>
    %c0_56 = arith.constant 0 : index
    %c158 = arith.constant 158 : index
    %217 = vector.load %arg14[%c0_56, %c158] : memref<8x512xf32, #tpu.memory_space<vmem>>, vector<8x256xf32>
    %218 = vector.extract_strided_slice %13 {offsets = [0, 56], sizes = [8, 1], strides = [1, 1]} : vector<8x81xf32> to vector<8x1xf32>
    %219 = vector.broadcast %218 : vector<8x1xf32> to vector<8x256xf32>
    %220 = arith.mulf %217, %219 : vector<8x256xf32>
    %221 = arith.addf %208, %220 : vector<8x256xf32>
    %222 = vector.extract_strided_slice %15 {offsets = [0, 56], sizes = [8, 1], strides = [1, 1]} : vector<8x81xf32> to vector<8x1xf32>
    %223 = vector.broadcast %222 : vector<8x1xf32> to vector<8x256xf32>
    %224 = arith.mulf %217, %223 : vector<8x256xf32>
    %225 = arith.addf %212, %224 : vector<8x256xf32>
    %226 = vector.extract_strided_slice %17 {offsets = [0, 56], sizes = [8, 1], strides = [1, 1]} : vector<8x81xf32> to vector<8x1xf32>
    %227 = vector.broadcast %226 : vector<8x1xf32> to vector<8x256xf32>
    %228 = arith.mulf %217, %227 : vector<8x256xf32>
    %229 = arith.addf %216, %228 : vector<8x256xf32>
    %c0_57 = arith.constant 0 : index
    %c174 = arith.constant 174 : index
    %230 = vector.load %arg14[%c0_57, %c174] : memref<8x512xf32, #tpu.memory_space<vmem>>, vector<8x256xf32>
    %231 = vector.extract_strided_slice %13 {offsets = [0, 65], sizes = [8, 1], strides = [1, 1]} : vector<8x81xf32> to vector<8x1xf32>
    %232 = vector.broadcast %231 : vector<8x1xf32> to vector<8x256xf32>
    %233 = arith.mulf %230, %232 : vector<8x256xf32>
    %234 = arith.addf %221, %233 : vector<8x256xf32>
    %235 = vector.extract_strided_slice %15 {offsets = [0, 65], sizes = [8, 1], strides = [1, 1]} : vector<8x81xf32> to vector<8x1xf32>
    %236 = vector.broadcast %235 : vector<8x1xf32> to vector<8x256xf32>
    %237 = arith.mulf %230, %236 : vector<8x256xf32>
    %238 = arith.addf %225, %237 : vector<8x256xf32>
    %c0_58 = arith.constant 0 : index
    %c190 = arith.constant 190 : index
    %239 = vector.load %arg14[%c0_58, %c190] : memref<8x512xf32, #tpu.memory_space<vmem>>, vector<8x256xf32>
    %240 = vector.extract_strided_slice %15 {offsets = [0, 74], sizes = [8, 1], strides = [1, 1]} : vector<8x81xf32> to vector<8x1xf32>
    %241 = vector.broadcast %240 : vector<8x1xf32> to vector<8x256xf32>
    %242 = arith.mulf %239, %241 : vector<8x256xf32>
    %243 = arith.addf %238, %242 : vector<8x256xf32>
    %c3 = arith.constant 3 : index
    %c0_59 = arith.constant 0 : index
    %244 = vector.load %arg5[%c3, %c0_59] : memref<9x256xf32, #tpu.memory_space<vmem>>, vector<1x256xf32>
    %245 = vector.broadcast %244 : vector<1x256xf32> to vector<8x256xf32>
    %246 = arith.mulf %8, %245 : vector<8x256xf32>
    %c0_60 = arith.constant 0 : index
    %c128_61 = arith.constant 128 : index
    %247 = vector.load %arg14[%c0_60, %c128_61] : memref<8x512xf32, #tpu.memory_space<vmem>>, vector<8x256xf32>
    tpu.vector_store %arg14[%c0_60, %c128_61], %246 {strides = array<i32>} : memref<8x512xf32, #tpu.memory_space<vmem>>, vector<8x256xf32>,
    %c0_62 = arith.constant 0 : index
    %c63 = arith.constant 63 : index
    %248 = vector.load %arg14[%c0_62, %c63] : memref<8x512xf32, #tpu.memory_space<vmem>>, vector<8x256xf32>
    %249 = vector.extract_strided_slice %15 {offsets = [0, 3], sizes = [8, 1], strides = [1, 1]} : vector<8x81xf32> to vector<8x1xf32>
    %250 = vector.broadcast %249 : vector<8x1xf32> to vector<8x256xf32>
    %251 = arith.mulf %248, %250 : vector<8x256xf32>
    %252 = arith.addf %243, %251 : vector<8x256xf32>
    %c0_63 = arith.constant 0 : index
    %c79 = arith.constant 79 : index
    %253 = vector.load %arg14[%c0_63, %c79] : memref<8x512xf32, #tpu.memory_space<vmem>>, vector<8x256xf32>
    %254 = vector.extract_strided_slice %13 {offsets = [0, 12], sizes = [8, 1], strides = [1, 1]} : vector<8x81xf32> to vector<8x1xf32>
    %255 = vector.broadcast %254 : vector<8x1xf32> to vector<8x256xf32>
    %256 = arith.mulf %253, %255 : vector<8x256xf32>
    %257 = arith.addf %234, %256 : vector<8x256xf32>
    %258 = vector.extract_strided_slice %15 {offsets = [0, 12], sizes = [8, 1], strides = [1, 1]} : vector<8x81xf32> to vector<8x1xf32>
    %259 = vector.broadcast %258 : vector<8x1xf32> to vector<8x256xf32>
    %260 = arith.mulf %253, %259 : vector<8x256xf32>
    %261 = arith.addf %252, %260 : vector<8x256xf32>
    %c0_64 = arith.constant 0 : index
    %c95 = arith.constant 95 : index
    %262 = vector.load %arg14[%c0_64, %c95] : memref<8x512xf32, #tpu.memory_space<vmem>>, vector<8x256xf32>
    %263 = vector.extract_strided_slice %13 {offsets = [0, 21], sizes = [8, 1], strides = [1, 1]} : vector<8x81xf32> to vector<8x1xf32>
    %264 = vector.broadcast %263 : vector<8x1xf32> to vector<8x256xf32>
    %265 = arith.mulf %262, %264 : vector<8x256xf32>
    %266 = arith.addf %257, %265 : vector<8x256xf32>
    %267 = vector.extract_strided_slice %15 {offsets = [0, 21], sizes = [8, 1], strides = [1, 1]} : vector<8x81xf32> to vector<8x1xf32>
    %268 = vector.broadcast %267 : vector<8x1xf32> to vector<8x256xf32>
    %269 = arith.mulf %262, %268 : vector<8x256xf32>
    %270 = arith.addf %261, %269 : vector<8x256xf32>
    %271 = vector.extract_strided_slice %17 {offsets = [0, 21], sizes = [8, 1], strides = [1, 1]} : vector<8x81xf32> to vector<8x1xf32>
    %272 = vector.broadcast %271 : vector<8x1xf32> to vector<8x256xf32>
    %273 = arith.mulf %262, %272 : vector<8x256xf32>
    %274 = arith.addf %229, %273 : vector<8x256xf32>
    %c0_65 = arith.constant 0 : index
    %c111 = arith.constant 111 : index
    %275 = vector.load %arg14[%c0_65, %c111] : memref<8x512xf32, #tpu.memory_space<vmem>>, vector<8x256xf32>
    %276 = vector.extract_strided_slice %13 {offsets = [0, 30], sizes = [8, 1], strides = [1, 1]} : vector<8x81xf32> to vector<8x1xf32>
    %277 = vector.broadcast %276 : vector<8x1xf32> to vector<8x256xf32>
    %278 = arith.mulf %275, %277 : vector<8x256xf32>
    %279 = arith.addf %266, %278 : vector<8x256xf32>
    %280 = vector.extract_strided_slice %15 {offsets = [0, 30], sizes = [8, 1], strides = [1, 1]} : vector<8x81xf32> to vector<8x1xf32>
    %281 = vector.broadcast %280 : vector<8x1xf32> to vector<8x256xf32>
    %282 = arith.mulf %275, %281 : vector<8x256xf32>
    %283 = arith.addf %270, %282 : vector<8x256xf32>
    %284 = vector.extract_strided_slice %17 {offsets = [0, 30], sizes = [8, 1], strides = [1, 1]} : vector<8x81xf32> to vector<8x1xf32>
    %285 = vector.broadcast %284 : vector<8x1xf32> to vector<8x256xf32>
    %286 = arith.mulf %275, %285 : vector<8x256xf32>
    %287 = arith.addf %274, %286 : vector<8x256xf32>
    %c0_66 = arith.constant 0 : index
    %c127 = arith.constant 127 : index
    %288 = vector.load %arg14[%c0_66, %c127] : memref<8x512xf32, #tpu.memory_space<vmem>>, vector<8x256xf32>
    %289 = vector.extract_strided_slice %13 {offsets = [0, 39], sizes = [8, 1], strides = [1, 1]} : vector<8x81xf32> to vector<8x1xf32>
    %290 = vector.broadcast %289 : vector<8x1xf32> to vector<8x256xf32>
    %291 = arith.mulf %288, %290 : vector<8x256xf32>
    %292 = arith.addf %279, %291 : vector<8x256xf32>
    %293 = vector.extract_strided_slice %15 {offsets = [0, 39], sizes = [8, 1], strides = [1, 1]} : vector<8x81xf32> to vector<8x1xf32>
    %294 = vector.broadcast %293 : vector<8x1xf32> to vector<8x256xf32>
    %295 = arith.mulf %288, %294 : vector<8x256xf32>
    %296 = arith.addf %283, %295 : vector<8x256xf32>
    %297 = vector.extract_strided_slice %17 {offsets = [0, 39], sizes = [8, 1], strides = [1, 1]} : vector<8x81xf32> to vector<8x1xf32>
    %298 = vector.broadcast %297 : vector<8x1xf32> to vector<8x256xf32>
    %299 = arith.mulf %288, %298 : vector<8x256xf32>
    %300 = arith.addf %287, %299 : vector<8x256xf32>
    %c0_67 = arith.constant 0 : index
    %c143 = arith.constant 143 : index
    %301 = vector.load %arg14[%c0_67, %c143] : memref<8x512xf32, #tpu.memory_space<vmem>>, vector<8x256xf32>
    %302 = vector.extract_strided_slice %13 {offsets = [0, 48], sizes = [8, 1], strides = [1, 1]} : vector<8x81xf32> to vector<8x1xf32>
    %303 = vector.broadcast %302 : vector<8x1xf32> to vector<8x256xf32>
    %304 = arith.mulf %301, %303 : vector<8x256xf32>
    %305 = arith.addf %292, %304 : vector<8x256xf32>
    %306 = vector.extract_strided_slice %15 {offsets = [0, 48], sizes = [8, 1], strides = [1, 1]} : vector<8x81xf32> to vector<8x1xf32>
    %307 = vector.broadcast %306 : vector<8x1xf32> to vector<8x256xf32>
    %308 = arith.mulf %301, %307 : vector<8x256xf32>
    %309 = arith.addf %296, %308 : vector<8x256xf32>
    %310 = vector.extract_strided_slice %17 {offsets = [0, 48], sizes = [8, 1], strides = [1, 1]} : vector<8x81xf32> to vector<8x1xf32>
    %311 = vector.broadcast %310 : vector<8x1xf32> to vector<8x256xf32>
    %312 = arith.mulf %301, %311 : vector<8x256xf32>
    %313 = arith.addf %300, %312 : vector<8x256xf32>
    %c0_68 = arith.constant 0 : index
    %c159 = arith.constant 159 : index
    %314 = vector.load %arg14[%c0_68, %c159] : memref<8x512xf32, #tpu.memory_space<vmem>>, vector<8x256xf32>
    %315 = vector.extract_strided_slice %13 {offsets = [0, 57], sizes = [8, 1], strides = [1, 1]} : vector<8x81xf32> to vector<8x1xf32>
    %316 = vector.broadcast %315 : vector<8x1xf32> to vector<8x256xf32>
    %317 = arith.mulf %314, %316 : vector<8x256xf32>
    %318 = arith.addf %305, %317 : vector<8x256xf32>
    %319 = vector.extract_strided_slice %15 {offsets = [0, 57], sizes = [8, 1], strides = [1, 1]} : vector<8x81xf32> to vector<8x1xf32>
    %320 = vector.broadcast %319 : vector<8x1xf32> to vector<8x256xf32>
    %321 = arith.mulf %314, %320 : vector<8x256xf32>
    %322 = arith.addf %309, %321 : vector<8x256xf32>
    %323 = vector.extract_strided_slice %17 {offsets = [0, 57], sizes = [8, 1], strides = [1, 1]} : vector<8x81xf32> to vector<8x1xf32>
    %324 = vector.broadcast %323 : vector<8x1xf32> to vector<8x256xf32>
    %325 = arith.mulf %314, %324 : vector<8x256xf32>
    %326 = arith.addf %313, %325 : vector<8x256xf32>
    %c0_69 = arith.constant 0 : index
    %c175 = arith.constant 175 : index
    %327 = vector.load %arg14[%c0_69, %c175] : memref<8x512xf32, #tpu.memory_space<vmem>>, vector<8x256xf32>
    %328 = vector.extract_strided_slice %13 {offsets = [0, 66], sizes = [8, 1], strides = [1, 1]} : vector<8x81xf32> to vector<8x1xf32>
    %329 = vector.broadcast %328 : vector<8x1xf32> to vector<8x256xf32>
    %330 = arith.mulf %327, %329 : vector<8x256xf32>
    %331 = arith.addf %318, %330 : vector<8x256xf32>
    %332 = vector.extract_strided_slice %15 {offsets = [0, 66], sizes = [8, 1], strides = [1, 1]} : vector<8x81xf32> to vector<8x1xf32>
    %333 = vector.broadcast %332 : vector<8x1xf32> to vector<8x256xf32>
    %334 = arith.mulf %327, %333 : vector<8x256xf32>
    %335 = arith.addf %322, %334 : vector<8x256xf32>
    %c0_70 = arith.constant 0 : index
    %c191 = arith.constant 191 : index
    %336 = vector.load %arg14[%c0_70, %c191] : memref<8x512xf32, #tpu.memory_space<vmem>>, vector<8x256xf32>
    %337 = vector.extract_strided_slice %15 {offsets = [0, 75], sizes = [8, 1], strides = [1, 1]} : vector<8x81xf32> to vector<8x1xf32>
    %338 = vector.broadcast %337 : vector<8x1xf32> to vector<8x256xf32>
    %339 = arith.mulf %336, %338 : vector<8x256xf32>
    %340 = arith.addf %335, %339 : vector<8x256xf32>
    %c4 = arith.constant 4 : index
    %c0_71 = arith.constant 0 : index
    %341 = vector.load %arg5[%c4, %c0_71] : memref<9x256xf32, #tpu.memory_space<vmem>>, vector<1x256xf32>
    %342 = vector.broadcast %341 : vector<1x256xf32> to vector<8x256xf32>
    %343 = arith.mulf %8, %342 : vector<8x256xf32>
    %c0_72 = arith.constant 0 : index
    %c128_73 = arith.constant 128 : index
    %344 = vector.load %arg14[%c0_72, %c128_73] : memref<8x512xf32, #tpu.memory_space<vmem>>, vector<8x256xf32>
    tpu.vector_store %arg14[%c0_72, %c128_73], %343 {strides = array<i32>} : memref<8x512xf32, #tpu.memory_space<vmem>>, vector<8x256xf32>,
    %c0_74 = arith.constant 0 : index
    %c64 = arith.constant 64 : index
    %345 = vector.load %arg14[%c0_74, %c64] : memref<8x512xf32, #tpu.memory_space<vmem>>, vector<8x256xf32>
    %346 = vector.extract_strided_slice %15 {offsets = [0, 4], sizes = [8, 1], strides = [1, 1]} : vector<8x81xf32> to vector<8x1xf32>
    %347 = vector.broadcast %346 : vector<8x1xf32> to vector<8x256xf32>
    %348 = arith.mulf %345, %347 : vector<8x256xf32>
    %349 = arith.addf %340, %348 : vector<8x256xf32>
    %c0_75 = arith.constant 0 : index
    %c80 = arith.constant 80 : index
    %350 = vector.load %arg14[%c0_75, %c80] : memref<8x512xf32, #tpu.memory_space<vmem>>, vector<8x256xf32>
    %351 = vector.extract_strided_slice %13 {offsets = [0, 13], sizes = [8, 1], strides = [1, 1]} : vector<8x81xf32> to vector<8x1xf32>
    %352 = vector.broadcast %351 : vector<8x1xf32> to vector<8x256xf32>
    %353 = arith.mulf %350, %352 : vector<8x256xf32>
    %354 = arith.addf %331, %353 : vector<8x256xf32>
    %355 = vector.extract_strided_slice %15 {offsets = [0, 13], sizes = [8, 1], strides = [1, 1]} : vector<8x81xf32> to vector<8x1xf32>
    %356 = vector.broadcast %355 : vector<8x1xf32> to vector<8x256xf32>
    %357 = arith.mulf %350, %356 : vector<8x256xf32>
    %358 = arith.addf %349, %357 : vector<8x256xf32>
    %c0_76 = arith.constant 0 : index
    %c96 = arith.constant 96 : index
    %359 = vector.load %arg14[%c0_76, %c96] : memref<8x512xf32, #tpu.memory_space<vmem>>, vector<8x256xf32>
    %360 = vector.extract_strided_slice %13 {offsets = [0, 22], sizes = [8, 1], strides = [1, 1]} : vector<8x81xf32> to vector<8x1xf32>
    %361 = vector.broadcast %360 : vector<8x1xf32> to vector<8x256xf32>
    %362 = arith.mulf %359, %361 : vector<8x256xf32>
    %363 = arith.addf %354, %362 : vector<8x256xf32>
    %364 = vector.extract_strided_slice %15 {offsets = [0, 22], sizes = [8, 1], strides = [1, 1]} : vector<8x81xf32> to vector<8x1xf32>
    %365 = vector.broadcast %364 : vector<8x1xf32> to vector<8x256xf32>
    %366 = arith.mulf %359, %365 : vector<8x256xf32>
    %367 = arith.addf %358, %366 : vector<8x256xf32>
    %368 = vector.extract_strided_slice %17 {offsets = [0, 22], sizes = [8, 1], strides = [1, 1]} : vector<8x81xf32> to vector<8x1xf32>
    %369 = vector.broadcast %368 : vector<8x1xf32> to vector<8x256xf32>
    %370 = arith.mulf %359, %369 : vector<8x256xf32>
    %371 = arith.addf %326, %370 : vector<8x256xf32>
    %c0_77 = arith.constant 0 : index
    %c112 = arith.constant 112 : index
    %372 = vector.load %arg14[%c0_77, %c112] : memref<8x512xf32, #tpu.memory_space<vmem>>, vector<8x256xf32>
    %373 = vector.extract_strided_slice %13 {offsets = [0, 31], sizes = [8, 1], strides = [1, 1]} : vector<8x81xf32> to vector<8x1xf32>
    %374 = vector.broadcast %373 : vector<8x1xf32> to vector<8x256xf32>
    %375 = arith.mulf %372, %374 : vector<8x256xf32>
    %376 = arith.addf %363, %375 : vector<8x256xf32>
    %377 = vector.extract_strided_slice %15 {offsets = [0, 31], sizes = [8, 1], strides = [1, 1]} : vector<8x81xf32> to vector<8x1xf32>
    %378 = vector.broadcast %377 : vector<8x1xf32> to vector<8x256xf32>
    %379 = arith.mulf %372, %378 : vector<8x256xf32>
    %380 = arith.addf %367, %379 : vector<8x256xf32>
    %381 = vector.extract_strided_slice %17 {offsets = [0, 31], sizes = [8, 1], strides = [1, 1]} : vector<8x81xf32> to vector<8x1xf32>
    %382 = vector.broadcast %381 : vector<8x1xf32> to vector<8x256xf32>
    %383 = arith.mulf %372, %382 : vector<8x256xf32>
    %384 = arith.addf %371, %383 : vector<8x256xf32>
    %c0_78 = arith.constant 0 : index
    %c128_79 = arith.constant 128 : index
    %385 = vector.load %arg14[%c0_78, %c128_79] : memref<8x512xf32, #tpu.memory_space<vmem>>, vector<8x256xf32>
    %386 = vector.extract_strided_slice %13 {offsets = [0, 40], sizes = [8, 1], strides = [1, 1]} : vector<8x81xf32> to vector<8x1xf32>
    %387 = vector.broadcast %386 : vector<8x1xf32> to vector<8x256xf32>
    %388 = arith.mulf %385, %387 : vector<8x256xf32>
    %389 = arith.addf %376, %388 : vector<8x256xf32>
    %390 = vector.extract_strided_slice %15 {offsets = [0, 40], sizes = [8, 1], strides = [1, 1]} : vector<8x81xf32> to vector<8x1xf32>
    %391 = vector.broadcast %390 : vector<8x1xf32> to vector<8x256xf32>
    %392 = arith.mulf %385, %391 : vector<8x256xf32>
    %393 = arith.addf %380, %392 : vector<8x256xf32>
    %394 = vector.extract_strided_slice %17 {offsets = [0, 40], sizes = [8, 1], strides = [1, 1]} : vector<8x81xf32> to vector<8x1xf32>
    %395 = vector.broadcast %394 : vector<8x1xf32> to vector<8x256xf32>
    %396 = arith.mulf %385, %395 : vector<8x256xf32>
    %397 = arith.addf %384, %396 : vector<8x256xf32>
    %c0_80 = arith.constant 0 : index
    %c144 = arith.constant 144 : index
    %398 = vector.load %arg14[%c0_80, %c144] : memref<8x512xf32, #tpu.memory_space<vmem>>, vector<8x256xf32>
    %399 = vector.extract_strided_slice %13 {offsets = [0, 49], sizes = [8, 1], strides = [1, 1]} : vector<8x81xf32> to vector<8x1xf32>
    %400 = vector.broadcast %399 : vector<8x1xf32> to vector<8x256xf32>
    %401 = arith.mulf %398, %400 : vector<8x256xf32>
    %402 = arith.addf %389, %401 : vector<8x256xf32>
    %403 = vector.extract_strided_slice %15 {offsets = [0, 49], sizes = [8, 1], strides = [1, 1]} : vector<8x81xf32> to vector<8x1xf32>
    %404 = vector.broadcast %403 : vector<8x1xf32> to vector<8x256xf32>
    %405 = arith.mulf %398, %404 : vector<8x256xf32>
    %406 = arith.addf %393, %405 : vector<8x256xf32>
    %407 = vector.extract_strided_slice %17 {offsets = [0, 49], sizes = [8, 1], strides = [1, 1]} : vector<8x81xf32> to vector<8x1xf32>
    %408 = vector.broadcast %407 : vector<8x1xf32> to vector<8x256xf32>
    %409 = arith.mulf %398, %408 : vector<8x256xf32>
    %410 = arith.addf %397, %409 : vector<8x256xf32>
    %c0_81 = arith.constant 0 : index
    %c160 = arith.constant 160 : index
    %411 = vector.load %arg14[%c0_81, %c160] : memref<8x512xf32, #tpu.memory_space<vmem>>, vector<8x256xf32>
    %412 = vector.extract_strided_slice %13 {offsets = [0, 58], sizes = [8, 1], strides = [1, 1]} : vector<8x81xf32> to vector<8x1xf32>
    %413 = vector.broadcast %412 : vector<8x1xf32> to vector<8x256xf32>
    %414 = arith.mulf %411, %413 : vector<8x256xf32>
    %415 = arith.addf %402, %414 : vector<8x256xf32>
    %416 = vector.extract_strided_slice %15 {offsets = [0, 58], sizes = [8, 1], strides = [1, 1]} : vector<8x81xf32> to vector<8x1xf32>
    %417 = vector.broadcast %416 : vector<8x1xf32> to vector<8x256xf32>
    %418 = arith.mulf %411, %417 : vector<8x256xf32>
    %419 = arith.addf %406, %418 : vector<8x256xf32>
    %420 = vector.extract_strided_slice %17 {offsets = [0, 58], sizes = [8, 1], strides = [1, 1]} : vector<8x81xf32> to vector<8x1xf32>
    %421 = vector.broadcast %420 : vector<8x1xf32> to vector<8x256xf32>
    %422 = arith.mulf %411, %421 : vector<8x256xf32>
    %423 = arith.addf %410, %422 : vector<8x256xf32>
    %c0_82 = arith.constant 0 : index
    %c176 = arith.constant 176 : index
    %424 = vector.load %arg14[%c0_82, %c176] : memref<8x512xf32, #tpu.memory_space<vmem>>, vector<8x256xf32>
    %425 = vector.extract_strided_slice %13 {offsets = [0, 67], sizes = [8, 1], strides = [1, 1]} : vector<8x81xf32> to vector<8x1xf32>
    %426 = vector.broadcast %425 : vector<8x1xf32> to vector<8x256xf32>
    %427 = arith.mulf %424, %426 : vector<8x256xf32>
    %428 = arith.addf %415, %427 : vector<8x256xf32>
    %429 = vector.extract_strided_slice %15 {offsets = [0, 67], sizes = [8, 1], strides = [1, 1]} : vector<8x81xf32> to vector<8x1xf32>
    %430 = vector.broadcast %429 : vector<8x1xf32> to vector<8x256xf32>
    %431 = arith.mulf %424, %430 : vector<8x256xf32>
    %432 = arith.addf %419, %431 : vector<8x256xf32>
    %c0_83 = arith.constant 0 : index
    %c192 = arith.constant 192 : index
    %433 = vector.load %arg14[%c0_83, %c192] : memref<8x512xf32, #tpu.memory_space<vmem>>, vector<8x256xf32>
    %434 = vector.extract_strided_slice %15 {offsets = [0, 76], sizes = [8, 1], strides = [1, 1]} : vector<8x81xf32> to vector<8x1xf32>
    %435 = vector.broadcast %434 : vector<8x1xf32> to vector<8x256xf32>
    %436 = arith.mulf %433, %435 : vector<8x256xf32>
    %437 = arith.addf %432, %436 : vector<8x256xf32>
    %c5 = arith.constant 5 : index
    %c0_84 = arith.constant 0 : index
    %438 = vector.load %arg5[%c5, %c0_84] : memref<9x256xf32, #tpu.memory_space<vmem>>, vector<1x256xf32>
    %439 = vector.broadcast %438 : vector<1x256xf32> to vector<8x256xf32>
    %440 = arith.mulf %8, %439 : vector<8x256xf32>
    %c0_85 = arith.constant 0 : index
    %c128_86 = arith.constant 128 : index
    %441 = vector.load %arg14[%c0_85, %c128_86] : memref<8x512xf32, #tpu.memory_space<vmem>>, vector<8x256xf32>
    tpu.vector_store %arg14[%c0_85, %c128_86], %440 {strides = array<i32>} : memref<8x512xf32, #tpu.memory_space<vmem>>, vector<8x256xf32>,
    %c0_87 = arith.constant 0 : index
    %c65 = arith.constant 65 : index
    %442 = vector.load %arg14[%c0_87, %c65] : memref<8x512xf32, #tpu.memory_space<vmem>>, vector<8x256xf32>
    %443 = vector.extract_strided_slice %15 {offsets = [0, 5], sizes = [8, 1], strides = [1, 1]} : vector<8x81xf32> to vector<8x1xf32>
    %444 = vector.broadcast %443 : vector<8x1xf32> to vector<8x256xf32>
    %445 = arith.mulf %442, %444 : vector<8x256xf32>
    %446 = arith.addf %437, %445 : vector<8x256xf32>
    %c0_88 = arith.constant 0 : index
    %c81 = arith.constant 81 : index
    %447 = vector.load %arg14[%c0_88, %c81] : memref<8x512xf32, #tpu.memory_space<vmem>>, vector<8x256xf32>
    %448 = vector.extract_strided_slice %13 {offsets = [0, 14], sizes = [8, 1], strides = [1, 1]} : vector<8x81xf32> to vector<8x1xf32>
    %449 = vector.broadcast %448 : vector<8x1xf32> to vector<8x256xf32>
    %450 = arith.mulf %447, %449 : vector<8x256xf32>
    %451 = arith.addf %428, %450 : vector<8x256xf32>
    %452 = vector.extract_strided_slice %15 {offsets = [0, 14], sizes = [8, 1], strides = [1, 1]} : vector<8x81xf32> to vector<8x1xf32>
    %453 = vector.broadcast %452 : vector<8x1xf32> to vector<8x256xf32>
    %454 = arith.mulf %447, %453 : vector<8x256xf32>
    %455 = arith.addf %446, %454 : vector<8x256xf32>
    %c0_89 = arith.constant 0 : index
    %c97 = arith.constant 97 : index
    %456 = vector.load %arg14[%c0_89, %c97] : memref<8x512xf32, #tpu.memory_space<vmem>>, vector<8x256xf32>
    %457 = vector.extract_strided_slice %13 {offsets = [0, 23], sizes = [8, 1], strides = [1, 1]} : vector<8x81xf32> to vector<8x1xf32>
    %458 = vector.broadcast %457 : vector<8x1xf32> to vector<8x256xf32>
    %459 = arith.mulf %456, %458 : vector<8x256xf32>
    %460 = arith.addf %451, %459 : vector<8x256xf32>
    %461 = vector.extract_strided_slice %15 {offsets = [0, 23], sizes = [8, 1], strides = [1, 1]} : vector<8x81xf32> to vector<8x1xf32>
    %462 = vector.broadcast %461 : vector<8x1xf32> to vector<8x256xf32>
    %463 = arith.mulf %456, %462 : vector<8x256xf32>
    %464 = arith.addf %455, %463 : vector<8x256xf32>
    %465 = vector.extract_strided_slice %17 {offsets = [0, 23], sizes = [8, 1], strides = [1, 1]} : vector<8x81xf32> to vector<8x1xf32>
    %466 = vector.broadcast %465 : vector<8x1xf32> to vector<8x256xf32>
    %467 = arith.mulf %456, %466 : vector<8x256xf32>
    %468 = arith.addf %423, %467 : vector<8x256xf32>
    %c0_90 = arith.constant 0 : index
    %c113 = arith.constant 113 : index
    %469 = vector.load %arg14[%c0_90, %c113] : memref<8x512xf32, #tpu.memory_space<vmem>>, vector<8x256xf32>
    %470 = vector.extract_strided_slice %13 {offsets = [0, 32], sizes = [8, 1], strides = [1, 1]} : vector<8x81xf32> to vector<8x1xf32>
    %471 = vector.broadcast %470 : vector<8x1xf32> to vector<8x256xf32>
    %472 = arith.mulf %469, %471 : vector<8x256xf32>
    %473 = arith.addf %460, %472 : vector<8x256xf32>
    %474 = vector.extract_strided_slice %15 {offsets = [0, 32], sizes = [8, 1], strides = [1, 1]} : vector<8x81xf32> to vector<8x1xf32>
    %475 = vector.broadcast %474 : vector<8x1xf32> to vector<8x256xf32>
    %476 = arith.mulf %469, %475 : vector<8x256xf32>
    %477 = arith.addf %464, %476 : vector<8x256xf32>
    %478 = vector.extract_strided_slice %17 {offsets = [0, 32], sizes = [8, 1], strides = [1, 1]} : vector<8x81xf32> to vector<8x1xf32>
    %479 = vector.broadcast %478 : vector<8x1xf32> to vector<8x256xf32>
    %480 = arith.mulf %469, %479 : vector<8x256xf32>
    %481 = arith.addf %468, %480 : vector<8x256xf32>
    %c0_91 = arith.constant 0 : index
    %c129 = arith.constant 129 : index
    %482 = vector.load %arg14[%c0_91, %c129] : memref<8x512xf32, #tpu.memory_space<vmem>>, vector<8x256xf32>
    %483 = vector.extract_strided_slice %13 {offsets = [0, 41], sizes = [8, 1], strides = [1, 1]} : vector<8x81xf32> to vector<8x1xf32>
    %484 = vector.broadcast %483 : vector<8x1xf32> to vector<8x256xf32>
    %485 = arith.mulf %482, %484 : vector<8x256xf32>
    %486 = arith.addf %473, %485 : vector<8x256xf32>
    %487 = vector.extract_strided_slice %15 {offsets = [0, 41], sizes = [8, 1], strides = [1, 1]} : vector<8x81xf32> to vector<8x1xf32>
    %488 = vector.broadcast %487 : vector<8x1xf32> to vector<8x256xf32>
    %489 = arith.mulf %482, %488 : vector<8x256xf32>
    %490 = arith.addf %477, %489 : vector<8x256xf32>
    %491 = vector.extract_strided_slice %17 {offsets = [0, 41], sizes = [8, 1], strides = [1, 1]} : vector<8x81xf32> to vector<8x1xf32>
    %492 = vector.broadcast %491 : vector<8x1xf32> to vector<8x256xf32>
    %493 = arith.mulf %482, %492 : vector<8x256xf32>
    %494 = arith.addf %481, %493 : vector<8x256xf32>
    %c0_92 = arith.constant 0 : index
    %c145 = arith.constant 145 : index
    %495 = vector.load %arg14[%c0_92, %c145] : memref<8x512xf32, #tpu.memory_space<vmem>>, vector<8x256xf32>
    %496 = vector.extract_strided_slice %13 {offsets = [0, 50], sizes = [8, 1], strides = [1, 1]} : vector<8x81xf32> to vector<8x1xf32>
    %497 = vector.broadcast %496 : vector<8x1xf32> to vector<8x256xf32>
    %498 = arith.mulf %495, %497 : vector<8x256xf32>
    %499 = arith.addf %486, %498 : vector<8x256xf32>
    %500 = vector.extract_strided_slice %15 {offsets = [0, 50], sizes = [8, 1], strides = [1, 1]} : vector<8x81xf32> to vector<8x1xf32>
    %501 = vector.broadcast %500 : vector<8x1xf32> to vector<8x256xf32>
    %502 = arith.mulf %495, %501 : vector<8x256xf32>
    %503 = arith.addf %490, %502 : vector<8x256xf32>
    %504 = vector.extract_strided_slice %17 {offsets = [0, 50], sizes = [8, 1], strides = [1, 1]} : vector<8x81xf32> to vector<8x1xf32>
    %505 = vector.broadcast %504 : vector<8x1xf32> to vector<8x256xf32>
    %506 = arith.mulf %495, %505 : vector<8x256xf32>
    %507 = arith.addf %494, %506 : vector<8x256xf32>
    %c0_93 = arith.constant 0 : index
    %c161 = arith.constant 161 : index
    %508 = vector.load %arg14[%c0_93, %c161] : memref<8x512xf32, #tpu.memory_space<vmem>>, vector<8x256xf32>
    %509 = vector.extract_strided_slice %13 {offsets = [0, 59], sizes = [8, 1], strides = [1, 1]} : vector<8x81xf32> to vector<8x1xf32>
    %510 = vector.broadcast %509 : vector<8x1xf32> to vector<8x256xf32>
    %511 = arith.mulf %508, %510 : vector<8x256xf32>
    %512 = arith.addf %499, %511 : vector<8x256xf32>
    %513 = vector.extract_strided_slice %15 {offsets = [0, 59], sizes = [8, 1], strides = [1, 1]} : vector<8x81xf32> to vector<8x1xf32>
    %514 = vector.broadcast %513 : vector<8x1xf32> to vector<8x256xf32>
    %515 = arith.mulf %508, %514 : vector<8x256xf32>
    %516 = arith.addf %503, %515 : vector<8x256xf32>
    %517 = vector.extract_strided_slice %17 {offsets = [0, 59], sizes = [8, 1], strides = [1, 1]} : vector<8x81xf32> to vector<8x1xf32>
    %518 = vector.broadcast %517 : vector<8x1xf32> to vector<8x256xf32>
    %519 = arith.mulf %508, %518 : vector<8x256xf32>
    %520 = arith.addf %507, %519 : vector<8x256xf32>
    %c0_94 = arith.constant 0 : index
    %c177 = arith.constant 177 : index
    %521 = vector.load %arg14[%c0_94, %c177] : memref<8x512xf32, #tpu.memory_space<vmem>>, vector<8x256xf32>
    %522 = vector.extract_strided_slice %13 {offsets = [0, 68], sizes = [8, 1], strides = [1, 1]} : vector<8x81xf32> to vector<8x1xf32>
    %523 = vector.broadcast %522 : vector<8x1xf32> to vector<8x256xf32>
    %524 = arith.mulf %521, %523 : vector<8x256xf32>
    %525 = arith.addf %512, %524 : vector<8x256xf32>
    %526 = vector.extract_strided_slice %15 {offsets = [0, 68], sizes = [8, 1], strides = [1, 1]} : vector<8x81xf32> to vector<8x1xf32>
    %527 = vector.broadcast %526 : vector<8x1xf32> to vector<8x256xf32>
    %528 = arith.mulf %521, %527 : vector<8x256xf32>
    %529 = arith.addf %516, %528 : vector<8x256xf32>
    %c0_95 = arith.constant 0 : index
    %c193 = arith.constant 193 : index
    %530 = vector.load %arg14[%c0_95, %c193] : memref<8x512xf32, #tpu.memory_space<vmem>>, vector<8x256xf32>
    %531 = vector.extract_strided_slice %15 {offsets = [0, 77], sizes = [8, 1], strides = [1, 1]} : vector<8x81xf32> to vector<8x1xf32>
    %532 = vector.broadcast %531 : vector<8x1xf32> to vector<8x256xf32>
    %533 = arith.mulf %530, %532 : vector<8x256xf32>
    %534 = arith.addf %529, %533 : vector<8x256xf32>
    %c6 = arith.constant 6 : index
    %c0_96 = arith.constant 0 : index
    %535 = vector.load %arg5[%c6, %c0_96] : memref<9x256xf32, #tpu.memory_space<vmem>>, vector<1x256xf32>
    %536 = vector.broadcast %535 : vector<1x256xf32> to vector<8x256xf32>
    %537 = arith.mulf %8, %536 : vector<8x256xf32>
    %c0_97 = arith.constant 0 : index
    %c128_98 = arith.constant 128 : index
    %538 = vector.load %arg14[%c0_97, %c128_98] : memref<8x512xf32, #tpu.memory_space<vmem>>, vector<8x256xf32>
    tpu.vector_store %arg14[%c0_97, %c128_98], %537 {strides = array<i32>} : memref<8x512xf32, #tpu.memory_space<vmem>>, vector<8x256xf32>,
    %c0_99 = arith.constant 0 : index
    %c66 = arith.constant 66 : index
    %539 = vector.load %arg14[%c0_99, %c66] : memref<8x512xf32, #tpu.memory_space<vmem>>, vector<8x256xf32>
    %540 = vector.extract_strided_slice %15 {offsets = [0, 6], sizes = [8, 1], strides = [1, 1]} : vector<8x81xf32> to vector<8x1xf32>
    %541 = vector.broadcast %540 : vector<8x1xf32> to vector<8x256xf32>
    %542 = arith.mulf %539, %541 : vector<8x256xf32>
    %543 = arith.addf %534, %542 : vector<8x256xf32>
    %c0_100 = arith.constant 0 : index
    %c82 = arith.constant 82 : index
    %544 = vector.load %arg14[%c0_100, %c82] : memref<8x512xf32, #tpu.memory_space<vmem>>, vector<8x256xf32>
    %545 = vector.extract_strided_slice %13 {offsets = [0, 15], sizes = [8, 1], strides = [1, 1]} : vector<8x81xf32> to vector<8x1xf32>
    %546 = vector.broadcast %545 : vector<8x1xf32> to vector<8x256xf32>
    %547 = arith.mulf %544, %546 : vector<8x256xf32>
    %548 = arith.addf %525, %547 : vector<8x256xf32>
    %549 = vector.extract_strided_slice %15 {offsets = [0, 15], sizes = [8, 1], strides = [1, 1]} : vector<8x81xf32> to vector<8x1xf32>
    %550 = vector.broadcast %549 : vector<8x1xf32> to vector<8x256xf32>
    %551 = arith.mulf %544, %550 : vector<8x256xf32>
    %552 = arith.addf %543, %551 : vector<8x256xf32>
    %c0_101 = arith.constant 0 : index
    %c98 = arith.constant 98 : index
    %553 = vector.load %arg14[%c0_101, %c98] : memref<8x512xf32, #tpu.memory_space<vmem>>, vector<8x256xf32>
    %554 = vector.extract_strided_slice %13 {offsets = [0, 24], sizes = [8, 1], strides = [1, 1]} : vector<8x81xf32> to vector<8x1xf32>
    %555 = vector.broadcast %554 : vector<8x1xf32> to vector<8x256xf32>
    %556 = arith.mulf %553, %555 : vector<8x256xf32>
    %557 = arith.addf %548, %556 : vector<8x256xf32>
    %558 = vector.extract_strided_slice %15 {offsets = [0, 24], sizes = [8, 1], strides = [1, 1]} : vector<8x81xf32> to vector<8x1xf32>
    %559 = vector.broadcast %558 : vector<8x1xf32> to vector<8x256xf32>
    %560 = arith.mulf %553, %559 : vector<8x256xf32>
    %561 = arith.addf %552, %560 : vector<8x256xf32>
    %562 = vector.extract_strided_slice %17 {offsets = [0, 24], sizes = [8, 1], strides = [1, 1]} : vector<8x81xf32> to vector<8x1xf32>
    %563 = vector.broadcast %562 : vector<8x1xf32> to vector<8x256xf32>
    %564 = arith.mulf %553, %563 : vector<8x256xf32>
    %565 = arith.addf %520, %564 : vector<8x256xf32>
    %c0_102 = arith.constant 0 : index
    %c114 = arith.constant 114 : index
    %566 = vector.load %arg14[%c0_102, %c114] : memref<8x512xf32, #tpu.memory_space<vmem>>, vector<8x256xf32>
    %567 = vector.extract_strided_slice %13 {offsets = [0, 33], sizes = [8, 1], strides = [1, 1]} : vector<8x81xf32> to vector<8x1xf32>
    %568 = vector.broadcast %567 : vector<8x1xf32> to vector<8x256xf32>
    %569 = arith.mulf %566, %568 : vector<8x256xf32>
    %570 = arith.addf %557, %569 : vector<8x256xf32>
    %571 = vector.extract_strided_slice %15 {offsets = [0, 33], sizes = [8, 1], strides = [1, 1]} : vector<8x81xf32> to vector<8x1xf32>
    %572 = vector.broadcast %571 : vector<8x1xf32> to vector<8x256xf32>
    %573 = arith.mulf %566, %572 : vector<8x256xf32>
    %574 = arith.addf %561, %573 : vector<8x256xf32>
    %575 = vector.extract_strided_slice %17 {offsets = [0, 33], sizes = [8, 1], strides = [1, 1]} : vector<8x81xf32> to vector<8x1xf32>
    %576 = vector.broadcast %575 : vector<8x1xf32> to vector<8x256xf32>
    %577 = arith.mulf %566, %576 : vector<8x256xf32>
    %578 = arith.addf %565, %577 : vector<8x256xf32>
    %c0_103 = arith.constant 0 : index
    %c130 = arith.constant 130 : index
    %579 = vector.load %arg14[%c0_103, %c130] : memref<8x512xf32, #tpu.memory_space<vmem>>, vector<8x256xf32>
    %580 = vector.extract_strided_slice %13 {offsets = [0, 42], sizes = [8, 1], strides = [1, 1]} : vector<8x81xf32> to vector<8x1xf32>
    %581 = vector.broadcast %580 : vector<8x1xf32> to vector<8x256xf32>
    %582 = arith.mulf %579, %581 : vector<8x256xf32>
    %583 = arith.addf %570, %582 : vector<8x256xf32>
    %584 = vector.extract_strided_slice %15 {offsets = [0, 42], sizes = [8, 1], strides = [1, 1]} : vector<8x81xf32> to vector<8x1xf32>
    %585 = vector.broadcast %584 : vector<8x1xf32> to vector<8x256xf32>
    %586 = arith.mulf %579, %585 : vector<8x256xf32>
    %587 = arith.addf %574, %586 : vector<8x256xf32>
    %588 = vector.extract_strided_slice %17 {offsets = [0, 42], sizes = [8, 1], strides = [1, 1]} : vector<8x81xf32> to vector<8x1xf32>
    %589 = vector.broadcast %588 : vector<8x1xf32> to vector<8x256xf32>
    %590 = arith.mulf %579, %589 : vector<8x256xf32>
    %591 = arith.addf %578, %590 : vector<8x256xf32>
    %c0_104 = arith.constant 0 : index
    %c146 = arith.constant 146 : index
    %592 = vector.load %arg14[%c0_104, %c146] : memref<8x512xf32, #tpu.memory_space<vmem>>, vector<8x256xf32>
    %593 = vector.extract_strided_slice %13 {offsets = [0, 51], sizes = [8, 1], strides = [1, 1]} : vector<8x81xf32> to vector<8x1xf32>
    %594 = vector.broadcast %593 : vector<8x1xf32> to vector<8x256xf32>
    %595 = arith.mulf %592, %594 : vector<8x256xf32>
    %596 = arith.addf %583, %595 : vector<8x256xf32>
    %597 = vector.extract_strided_slice %15 {offsets = [0, 51], sizes = [8, 1], strides = [1, 1]} : vector<8x81xf32> to vector<8x1xf32>
    %598 = vector.broadcast %597 : vector<8x1xf32> to vector<8x256xf32>
    %599 = arith.mulf %592, %598 : vector<8x256xf32>
    %600 = arith.addf %587, %599 : vector<8x256xf32>
    %601 = vector.extract_strided_slice %17 {offsets = [0, 51], sizes = [8, 1], strides = [1, 1]} : vector<8x81xf32> to vector<8x1xf32>
    %602 = vector.broadcast %601 : vector<8x1xf32> to vector<8x256xf32>
    %603 = arith.mulf %592, %602 : vector<8x256xf32>
    %604 = arith.addf %591, %603 : vector<8x256xf32>
    %c0_105 = arith.constant 0 : index
    %c162 = arith.constant 162 : index
    %605 = vector.load %arg14[%c0_105, %c162] : memref<8x512xf32, #tpu.memory_space<vmem>>, vector<8x256xf32>
    %606 = vector.extract_strided_slice %13 {offsets = [0, 60], sizes = [8, 1], strides = [1, 1]} : vector<8x81xf32> to vector<8x1xf32>
    %607 = vector.broadcast %606 : vector<8x1xf32> to vector<8x256xf32>
    %608 = arith.mulf %605, %607 : vector<8x256xf32>
    %609 = arith.addf %596, %608 : vector<8x256xf32>
    %610 = vector.extract_strided_slice %15 {offsets = [0, 60], sizes = [8, 1], strides = [1, 1]} : vector<8x81xf32> to vector<8x1xf32>
    %611 = vector.broadcast %610 : vector<8x1xf32> to vector<8x256xf32>
    %612 = arith.mulf %605, %611 : vector<8x256xf32>
    %613 = arith.addf %600, %612 : vector<8x256xf32>
    %614 = vector.extract_strided_slice %17 {offsets = [0, 60], sizes = [8, 1], strides = [1, 1]} : vector<8x81xf32> to vector<8x1xf32>
    %615 = vector.broadcast %614 : vector<8x1xf32> to vector<8x256xf32>
    %616 = arith.mulf %605, %615 : vector<8x256xf32>
    %617 = arith.addf %604, %616 : vector<8x256xf32>
    %c0_106 = arith.constant 0 : index
    %c178 = arith.constant 178 : index
    %618 = vector.load %arg14[%c0_106, %c178] : memref<8x512xf32, #tpu.memory_space<vmem>>, vector<8x256xf32>
    %619 = vector.extract_strided_slice %13 {offsets = [0, 69], sizes = [8, 1], strides = [1, 1]} : vector<8x81xf32> to vector<8x1xf32>
    %620 = vector.broadcast %619 : vector<8x1xf32> to vector<8x256xf32>
    %621 = arith.mulf %618, %620 : vector<8x256xf32>
    %622 = arith.addf %609, %621 : vector<8x256xf32>
    %623 = vector.extract_strided_slice %15 {offsets = [0, 69], sizes = [8, 1], strides = [1, 1]} : vector<8x81xf32> to vector<8x1xf32>
    %624 = vector.broadcast %623 : vector<8x1xf32> to vector<8x256xf32>
    %625 = arith.mulf %618, %624 : vector<8x256xf32>
    %626 = arith.addf %613, %625 : vector<8x256xf32>
    %c0_107 = arith.constant 0 : index
    %c194 = arith.constant 194 : index
    %627 = vector.load %arg14[%c0_107, %c194] : memref<8x512xf32, #tpu.memory_space<vmem>>, vector<8x256xf32>
    %628 = vector.extract_strided_slice %15 {offsets = [0, 78], sizes = [8, 1], strides = [1, 1]} : vector<8x81xf32> to vector<8x1xf32>
    %629 = vector.broadcast %628 : vector<8x1xf32> to vector<8x256xf32>
    %630 = arith.mulf %627, %629 : vector<8x256xf32>
    %631 = arith.addf %626, %630 : vector<8x256xf32>
    %c7 = arith.constant 7 : index
    %c0_108 = arith.constant 0 : index
    %632 = vector.load %arg5[%c7, %c0_108] : memref<9x256xf32, #tpu.memory_space<vmem>>, vector<1x256xf32>
    %633 = vector.broadcast %632 : vector<1x256xf32> to vector<8x256xf32>
    %634 = arith.mulf %8, %633 : vector<8x256xf32>
    %c0_109 = arith.constant 0 : index
    %c128_110 = arith.constant 128 : index
    %635 = vector.load %arg14[%c0_109, %c128_110] : memref<8x512xf32, #tpu.memory_space<vmem>>, vector<8x256xf32>
    tpu.vector_store %arg14[%c0_109, %c128_110], %634 {strides = array<i32>} : memref<8x512xf32, #tpu.memory_space<vmem>>, vector<8x256xf32>,
    %c0_111 = arith.constant 0 : index
    %c67 = arith.constant 67 : index
    %636 = vector.load %arg14[%c0_111, %c67] : memref<8x512xf32, #tpu.memory_space<vmem>>, vector<8x256xf32>
    %637 = vector.extract_strided_slice %15 {offsets = [0, 7], sizes = [8, 1], strides = [1, 1]} : vector<8x81xf32> to vector<8x1xf32>
    %638 = vector.broadcast %637 : vector<8x1xf32> to vector<8x256xf32>
    %639 = arith.mulf %636, %638 : vector<8x256xf32>
    %640 = arith.addf %631, %639 : vector<8x256xf32>
    %c0_112 = arith.constant 0 : index
    %c83 = arith.constant 83 : index
    %641 = vector.load %arg14[%c0_112, %c83] : memref<8x512xf32, #tpu.memory_space<vmem>>, vector<8x256xf32>
    %642 = vector.extract_strided_slice %13 {offsets = [0, 16], sizes = [8, 1], strides = [1, 1]} : vector<8x81xf32> to vector<8x1xf32>
    %643 = vector.broadcast %642 : vector<8x1xf32> to vector<8x256xf32>
    %644 = arith.mulf %641, %643 : vector<8x256xf32>
    %645 = arith.addf %622, %644 : vector<8x256xf32>
    %646 = vector.extract_strided_slice %15 {offsets = [0, 16], sizes = [8, 1], strides = [1, 1]} : vector<8x81xf32> to vector<8x1xf32>
    %647 = vector.broadcast %646 : vector<8x1xf32> to vector<8x256xf32>
    %648 = arith.mulf %641, %647 : vector<8x256xf32>
    %649 = arith.addf %640, %648 : vector<8x256xf32>
    %c0_113 = arith.constant 0 : index
    %c99 = arith.constant 99 : index
    %650 = vector.load %arg14[%c0_113, %c99] : memref<8x512xf32, #tpu.memory_space<vmem>>, vector<8x256xf32>
    %651 = vector.extract_strided_slice %13 {offsets = [0, 25], sizes = [8, 1], strides = [1, 1]} : vector<8x81xf32> to vector<8x1xf32>
    %652 = vector.broadcast %651 : vector<8x1xf32> to vector<8x256xf32>
    %653 = arith.mulf %650, %652 : vector<8x256xf32>
    %654 = arith.addf %645, %653 : vector<8x256xf32>
    %655 = vector.extract_strided_slice %15 {offsets = [0, 25], sizes = [8, 1], strides = [1, 1]} : vector<8x81xf32> to vector<8x1xf32>
    %656 = vector.broadcast %655 : vector<8x1xf32> to vector<8x256xf32>
    %657 = arith.mulf %650, %656 : vector<8x256xf32>
    %658 = arith.addf %649, %657 : vector<8x256xf32>
    %c0_114 = arith.constant 0 : index
    %c115 = arith.constant 115 : index
    %659 = vector.load %arg14[%c0_114, %c115] : memref<8x512xf32, #tpu.memory_space<vmem>>, vector<8x256xf32>
    %660 = vector.extract_strided_slice %13 {offsets = [0, 34], sizes = [8, 1], strides = [1, 1]} : vector<8x81xf32> to vector<8x1xf32>
    %661 = vector.broadcast %660 : vector<8x1xf32> to vector<8x256xf32>
    %662 = arith.mulf %659, %661 : vector<8x256xf32>
    %663 = arith.addf %654, %662 : vector<8x256xf32>
    %664 = vector.extract_strided_slice %15 {offsets = [0, 34], sizes = [8, 1], strides = [1, 1]} : vector<8x81xf32> to vector<8x1xf32>
    %665 = vector.broadcast %664 : vector<8x1xf32> to vector<8x256xf32>
    %666 = arith.mulf %659, %665 : vector<8x256xf32>
    %667 = arith.addf %658, %666 : vector<8x256xf32>
    %c0_115 = arith.constant 0 : index
    %c131 = arith.constant 131 : index
    %668 = vector.load %arg14[%c0_115, %c131] : memref<8x512xf32, #tpu.memory_space<vmem>>, vector<8x256xf32>
    %669 = vector.extract_strided_slice %13 {offsets = [0, 43], sizes = [8, 1], strides = [1, 1]} : vector<8x81xf32> to vector<8x1xf32>
    %670 = vector.broadcast %669 : vector<8x1xf32> to vector<8x256xf32>
    %671 = arith.mulf %668, %670 : vector<8x256xf32>
    %672 = arith.addf %663, %671 : vector<8x256xf32>
    %673 = vector.extract_strided_slice %15 {offsets = [0, 43], sizes = [8, 1], strides = [1, 1]} : vector<8x81xf32> to vector<8x1xf32>
    %674 = vector.broadcast %673 : vector<8x1xf32> to vector<8x256xf32>
    %675 = arith.mulf %668, %674 : vector<8x256xf32>
    %676 = arith.addf %667, %675 : vector<8x256xf32>
    %c0_116 = arith.constant 0 : index
    %c147 = arith.constant 147 : index
    %677 = vector.load %arg14[%c0_116, %c147] : memref<8x512xf32, #tpu.memory_space<vmem>>, vector<8x256xf32>
    %678 = vector.extract_strided_slice %13 {offsets = [0, 52], sizes = [8, 1], strides = [1, 1]} : vector<8x81xf32> to vector<8x1xf32>
    %679 = vector.broadcast %678 : vector<8x1xf32> to vector<8x256xf32>
    %680 = arith.mulf %677, %679 : vector<8x256xf32>
    %681 = arith.addf %672, %680 : vector<8x256xf32>
    %682 = vector.extract_strided_slice %15 {offsets = [0, 52], sizes = [8, 1], strides = [1, 1]} : vector<8x81xf32> to vector<8x1xf32>
    %683 = vector.broadcast %682 : vector<8x1xf32> to vector<8x256xf32>
    %684 = arith.mulf %677, %683 : vector<8x256xf32>
    %685 = arith.addf %676, %684 : vector<8x256xf32>
    %c0_117 = arith.constant 0 : index
    %c163 = arith.constant 163 : index
    %686 = vector.load %arg14[%c0_117, %c163] : memref<8x512xf32, #tpu.memory_space<vmem>>, vector<8x256xf32>
    %687 = vector.extract_strided_slice %13 {offsets = [0, 61], sizes = [8, 1], strides = [1, 1]} : vector<8x81xf32> to vector<8x1xf32>
    %688 = vector.broadcast %687 : vector<8x1xf32> to vector<8x256xf32>
    %689 = arith.mulf %686, %688 : vector<8x256xf32>
    %690 = arith.addf %681, %689 : vector<8x256xf32>
    %691 = vector.extract_strided_slice %15 {offsets = [0, 61], sizes = [8, 1], strides = [1, 1]} : vector<8x81xf32> to vector<8x1xf32>
    %692 = vector.broadcast %691 : vector<8x1xf32> to vector<8x256xf32>
    %693 = arith.mulf %686, %692 : vector<8x256xf32>
    %694 = arith.addf %685, %693 : vector<8x256xf32>
    %c0_118 = arith.constant 0 : index
    %c179 = arith.constant 179 : index
    %695 = vector.load %arg14[%c0_118, %c179] : memref<8x512xf32, #tpu.memory_space<vmem>>, vector<8x256xf32>
    %696 = vector.extract_strided_slice %13 {offsets = [0, 70], sizes = [8, 1], strides = [1, 1]} : vector<8x81xf32> to vector<8x1xf32>
    %697 = vector.broadcast %696 : vector<8x1xf32> to vector<8x256xf32>
    %698 = arith.mulf %695, %697 : vector<8x256xf32>
    %699 = arith.addf %690, %698 : vector<8x256xf32>
    %700 = vector.extract_strided_slice %15 {offsets = [0, 70], sizes = [8, 1], strides = [1, 1]} : vector<8x81xf32> to vector<8x1xf32>
    %701 = vector.broadcast %700 : vector<8x1xf32> to vector<8x256xf32>
    %702 = arith.mulf %695, %701 : vector<8x256xf32>
    %703 = arith.addf %694, %702 : vector<8x256xf32>
    %c0_119 = arith.constant 0 : index
    %c195 = arith.constant 195 : index
    %704 = vector.load %arg14[%c0_119, %c195] : memref<8x512xf32, #tpu.memory_space<vmem>>, vector<8x256xf32>
    %705 = vector.extract_strided_slice %15 {offsets = [0, 79], sizes = [8, 1], strides = [1, 1]} : vector<8x81xf32> to vector<8x1xf32>
    %706 = vector.broadcast %705 : vector<8x1xf32> to vector<8x256xf32>
    %707 = arith.mulf %704, %706 : vector<8x256xf32>
    %708 = arith.addf %703, %707 : vector<8x256xf32>
    %c8 = arith.constant 8 : index
    %c0_120 = arith.constant 0 : index
    %709 = vector.load %arg5[%c8, %c0_120] : memref<9x256xf32, #tpu.memory_space<vmem>>, vector<1x256xf32>
    %710 = vector.broadcast %709 : vector<1x256xf32> to vector<8x256xf32>
    %711 = arith.mulf %8, %710 : vector<8x256xf32>
    %c0_121 = arith.constant 0 : index
    %c128_122 = arith.constant 128 : index
    %712 = vector.load %arg14[%c0_121, %c128_122] : memref<8x512xf32, #tpu.memory_space<vmem>>, vector<8x256xf32>
    tpu.vector_store %arg14[%c0_121, %c128_122], %711 {strides = array<i32>} : memref<8x512xf32, #tpu.memory_space<vmem>>, vector<8x256xf32>,
    %c0_123 = arith.constant 0 : index
    %c68 = arith.constant 68 : index
    %713 = vector.load %arg14[%c0_123, %c68] : memref<8x512xf32, #tpu.memory_space<vmem>>, vector<8x256xf32>
    %714 = vector.extract_strided_slice %15 {offsets = [0, 8], sizes = [8, 1], strides = [1, 1]} : vector<8x81xf32> to vector<8x1xf32>
    %715 = vector.broadcast %714 : vector<8x1xf32> to vector<8x256xf32>
    %716 = arith.mulf %713, %715 : vector<8x256xf32>
    %717 = arith.addf %708, %716 : vector<8x256xf32>
    %c0_124 = arith.constant 0 : index
    %c84 = arith.constant 84 : index
    %718 = vector.load %arg14[%c0_124, %c84] : memref<8x512xf32, #tpu.memory_space<vmem>>, vector<8x256xf32>
    %719 = vector.extract_strided_slice %15 {offsets = [0, 17], sizes = [8, 1], strides = [1, 1]} : vector<8x81xf32> to vector<8x1xf32>
    %720 = vector.broadcast %719 : vector<8x1xf32> to vector<8x256xf32>
    %721 = arith.mulf %718, %720 : vector<8x256xf32>
    %722 = arith.addf %717, %721 : vector<8x256xf32>
    %c0_125 = arith.constant 0 : index
    %c100 = arith.constant 100 : index
    %723 = vector.load %arg14[%c0_125, %c100] : memref<8x512xf32, #tpu.memory_space<vmem>>, vector<8x256xf32>
    %724 = vector.extract_strided_slice %15 {offsets = [0, 26], sizes = [8, 1], strides = [1, 1]} : vector<8x81xf32> to vector<8x1xf32>
    %725 = vector.broadcast %724 : vector<8x1xf32> to vector<8x256xf32>
    %726 = arith.mulf %723, %725 : vector<8x256xf32>
    %727 = arith.addf %722, %726 : vector<8x256xf32>
    %c0_126 = arith.constant 0 : index
    %c116 = arith.constant 116 : index
    %728 = vector.load %arg14[%c0_126, %c116] : memref<8x512xf32, #tpu.memory_space<vmem>>, vector<8x256xf32>
    %729 = vector.extract_strided_slice %15 {offsets = [0, 35], sizes = [8, 1], strides = [1, 1]} : vector<8x81xf32> to vector<8x1xf32>
    %730 = vector.broadcast %729 : vector<8x1xf32> to vector<8x256xf32>
    %731 = arith.mulf %728, %730 : vector<8x256xf32>
    %732 = arith.addf %727, %731 : vector<8x256xf32>
    %c0_127 = arith.constant 0 : index
    %c132 = arith.constant 132 : index
    %733 = vector.load %arg14[%c0_127, %c132] : memref<8x512xf32, #tpu.memory_space<vmem>>, vector<8x256xf32>
    %734 = vector.extract_strided_slice %15 {offsets = [0, 44], sizes = [8, 1], strides = [1, 1]} : vector<8x81xf32> to vector<8x1xf32>
    %735 = vector.broadcast %734 : vector<8x1xf32> to vector<8x256xf32>
    %736 = arith.mulf %733, %735 : vector<8x256xf32>
    %737 = arith.addf %732, %736 : vector<8x256xf32>
    %c0_128 = arith.constant 0 : index
    %c148 = arith.constant 148 : index
    %738 = vector.load %arg14[%c0_128, %c148] : memref<8x512xf32, #tpu.memory_space<vmem>>, vector<8x256xf32>
    %739 = vector.extract_strided_slice %15 {offsets = [0, 53], sizes = [8, 1], strides = [1, 1]} : vector<8x81xf32> to vector<8x1xf32>
    %740 = vector.broadcast %739 : vector<8x1xf32> to vector<8x256xf32>
    %741 = arith.mulf %738, %740 : vector<8x256xf32>
    %742 = arith.addf %737, %741 : vector<8x256xf32>
    %c0_129 = arith.constant 0 : index
    %c164 = arith.constant 164 : index
    %743 = vector.load %arg14[%c0_129, %c164] : memref<8x512xf32, #tpu.memory_space<vmem>>, vector<8x256xf32>
    %744 = vector.extract_strided_slice %15 {offsets = [0, 62], sizes = [8, 1], strides = [1, 1]} : vector<8x81xf32> to vector<8x1xf32>
    %745 = vector.broadcast %744 : vector<8x1xf32> to vector<8x256xf32>
    %746 = arith.mulf %743, %745 : vector<8x256xf32>
    %747 = arith.addf %742, %746 : vector<8x256xf32>
    %c0_130 = arith.constant 0 : index
    %c180 = arith.constant 180 : index
    %748 = vector.load %arg14[%c0_130, %c180] : memref<8x512xf32, #tpu.memory_space<vmem>>, vector<8x256xf32>
    %749 = vector.extract_strided_slice %15 {offsets = [0, 71], sizes = [8, 1], strides = [1, 1]} : vector<8x81xf32> to vector<8x1xf32>
    %750 = vector.broadcast %749 : vector<8x1xf32> to vector<8x256xf32>
    %751 = arith.mulf %748, %750 : vector<8x256xf32>
    %752 = arith.addf %747, %751 : vector<8x256xf32>
    %c0_131 = arith.constant 0 : index
    %c196 = arith.constant 196 : index
    %753 = vector.load %arg14[%c0_131, %c196] : memref<8x512xf32, #tpu.memory_space<vmem>>, vector<8x256xf32>
    %754 = vector.extract_strided_slice %15 {offsets = [0, 80], sizes = [8, 1], strides = [1, 1]} : vector<8x81xf32> to vector<8x1xf32>
    %755 = vector.broadcast %754 : vector<8x1xf32> to vector<8x256xf32>
    %756 = arith.mulf %753, %755 : vector<8x256xf32>
    %757 = arith.addf %752, %756 : vector<8x256xf32>
    %c0_132 = arith.constant 0 : index
    %c0_133 = arith.constant 0 : index
    %c0_134 = arith.constant 0 : index
    %758 = vector.load %arg6[%c0_132, %c0_133, %c0_134] : memref<3x8x8xbf16, #tpu.memory_space<vmem>>, vector<1x8x8xbf16>
    %759 = vector.shape_cast %758 : vector<1x8x8xbf16> to vector<8x8xbf16>
    %760 = arith.truncf %699 : vector<8x256xf32> to vector<8x256xbf16>
    %cst_135 = arith.constant dense<0.000000e+00> : vector<8x256xf32>
    %761 = tpu.matmul %759, %760, %cst_135 {dimension_numbers = #tpu.dot_dimension_numbers<[1], [0], [0], [1], [0, 0, 1, 1], [], []>} : vector<8x8xbf16>, vector<8x256xbf16>, vector<8x256xf32> -> vector<8x256xf32>
    %c0_136 = arith.constant 0 : index
    %c0_137 = arith.constant 0 : index
    %c0_138 = arith.constant 0 : index
    %762 = vector.load %arg7[%c0_136, %c0_137, %c0_138] : memref<3x8x1xf32, #tpu.memory_space<vmem>>, vector<1x8x1xf32>
    %763 = vector.shape_cast %762 : vector<1x8x1xf32> to vector<8x1xf32>
    %764 = vector.broadcast %763 : vector<8x1xf32> to vector<8x256xf32>
    %765 = arith.addf %761, %764 : vector<8x256xf32>
    %cst_139 = arith.constant 0.000000e+00 : f32
    %766 = vector.broadcast %cst_139 : f32 to vector<8x256xf32>
    %767 = arith.maximumf %765, %766 : vector<8x256xf32>
    %768 = arith.truncf %767 : vector<8x256xf32> to vector<8x256xbf16>
    %c0_140 = arith.constant 0 : index
    %c0_141 = arith.constant 0 : index
    %769 = vector.load %arg15[%c0_140, %c0_141] : memref<24x256xbf16, #tpu.memory_space<vmem>>, vector<8x256xbf16>
    tpu.vector_store %arg15[%c0_140, %c0_141], %768 {strides = array<i32>} : memref<24x256xbf16, #tpu.memory_space<vmem>>, vector<8x256xbf16>,
    %c1_142 = arith.constant 1 : index
    %c0_143 = arith.constant 0 : index
    %c0_144 = arith.constant 0 : index
    %770 = vector.load %arg6[%c1_142, %c0_143, %c0_144] : memref<3x8x8xbf16, #tpu.memory_space<vmem>>, vector<1x8x8xbf16>
    %771 = vector.shape_cast %770 : vector<1x8x8xbf16> to vector<8x8xbf16>
    %772 = arith.truncf %757 : vector<8x256xf32> to vector<8x256xbf16>
    %cst_145 = arith.constant dense<0.000000e+00> : vector<8x256xf32>
    %773 = tpu.matmul %771, %772, %cst_145 {dimension_numbers = #tpu.dot_dimension_numbers<[1], [0], [0], [1], [0, 0, 1, 1], [], []>} : vector<8x8xbf16>, vector<8x256xbf16>, vector<8x256xf32> -> vector<8x256xf32>
    %c1_146 = arith.constant 1 : index
    %c0_147 = arith.constant 0 : index
    %c0_148 = arith.constant 0 : index
    %774 = vector.load %arg7[%c1_146, %c0_147, %c0_148] : memref<3x8x1xf32, #tpu.memory_space<vmem>>, vector<1x8x1xf32>
    %775 = vector.shape_cast %774 : vector<1x8x1xf32> to vector<8x1xf32>
    %776 = vector.broadcast %775 : vector<8x1xf32> to vector<8x256xf32>
    %777 = arith.addf %773, %776 : vector<8x256xf32>
    %cst_149 = arith.constant 0.000000e+00 : f32
    %778 = vector.broadcast %cst_149 : f32 to vector<8x256xf32>
    %779 = arith.maximumf %777, %778 : vector<8x256xf32>
    %780 = arith.truncf %779 : vector<8x256xf32> to vector<8x256xbf16>
    %c8_150 = arith.constant 8 : index
    %c0_151 = arith.constant 0 : index
    %781 = vector.load %arg15[%c8_150, %c0_151] : memref<24x256xbf16, #tpu.memory_space<vmem>>, vector<8x256xbf16>
    tpu.vector_store %arg15[%c8_150, %c0_151], %780 {strides = array<i32>} : memref<24x256xbf16, #tpu.memory_space<vmem>>, vector<8x256xbf16>,
    %c2_152 = arith.constant 2 : index
    %c0_153 = arith.constant 0 : index
    %c0_154 = arith.constant 0 : index
    %782 = vector.load %arg6[%c2_152, %c0_153, %c0_154] : memref<3x8x8xbf16, #tpu.memory_space<vmem>>, vector<1x8x8xbf16>
    %783 = vector.shape_cast %782 : vector<1x8x8xbf16> to vector<8x8xbf16>
    %784 = arith.truncf %617 : vector<8x256xf32> to vector<8x256xbf16>
    %cst_155 = arith.constant dense<0.000000e+00> : vector<8x256xf32>
    %785 = tpu.matmul %783, %784, %cst_155 {dimension_numbers = #tpu.dot_dimension_numbers<[1], [0], [0], [1], [0, 0, 1, 1], [], []>} : vector<8x8xbf16>, vector<8x256xbf16>, vector<8x256xf32> -> vector<8x256xf32>
    %c2_156 = arith.constant 2 : index
    %c0_157 = arith.constant 0 : index
    %c0_158 = arith.constant 0 : index
    %786 = vector.load %arg7[%c2_156, %c0_157, %c0_158] : memref<3x8x1xf32, #tpu.memory_space<vmem>>, vector<1x8x1xf32>
    %787 = vector.shape_cast %786 : vector<1x8x1xf32> to vector<8x1xf32>
    %788 = vector.broadcast %787 : vector<8x1xf32> to vector<8x256xf32>
    %789 = arith.addf %785, %788 : vector<8x256xf32>
    %cst_159 = arith.constant 0.000000e+00 : f32
    %790 = vector.broadcast %cst_159 : f32 to vector<8x256xf32>
    %791 = arith.maximumf %789, %790 : vector<8x256xf32>
    %792 = arith.truncf %791 : vector<8x256xf32> to vector<8x256xbf16>
    %c16 = arith.constant 16 : index
    %c0_160 = arith.constant 0 : index
    %793 = vector.load %arg15[%c16, %c0_160] : memref<24x256xbf16, #tpu.memory_space<vmem>>, vector<8x256xbf16>
    tpu.vector_store %arg15[%c16, %c0_160], %792 {strides = array<i32>} : memref<24x256xbf16, #tpu.memory_space<vmem>>, vector<8x256xbf16>,
    %c0_161 = arith.constant 0 : index
    %c0_162 = arith.constant 0 : index
    %794 = vector.load %arg8[%c0_161, %c0_162] : memref<36x24xbf16, #tpu.memory_space<vmem>>, vector<36x24xbf16>
    %c0_163 = arith.constant 0 : index
    %c0_164 = arith.constant 0 : index
    %795 = vector.load %arg15[%c0_163, %c0_164] : memref<24x256xbf16, #tpu.memory_space<vmem>>, vector<24x256xbf16>
    %cst_165 = arith.constant dense<0.000000e+00> : vector<36x256xf32>
    %796 = tpu.matmul %794, %795, %cst_165 {dimension_numbers = #tpu.dot_dimension_numbers<[1], [0], [0], [1], [0, 0, 1, 1], [], []>} : vector<36x24xbf16>, vector<24x256xbf16>, vector<36x256xf32> -> vector<36x256xf32>
    %c0_166 = arith.constant 0 : index
    %c0_167 = arith.constant 0 : index
    %797 = vector.load %arg9[%c0_166, %c0_167] : memref<36x1xf32, #tpu.memory_space<vmem>>, vector<36x1xf32>
    %798 = vector.broadcast %797 : vector<36x1xf32> to vector<36x256xf32>
    %799 = arith.addf %796, %798 : vector<36x256xf32>
    %cst_168 = arith.constant dense<0.000000e+00> : vector<36xf32>
    %800 = vector.multi_reduction <add>, %799, %cst_168 [1] : vector<36x256xf32> to vector<36xf32>
    %801 = vector.shape_cast %800 : vector<36xf32> to vector<36x1xf32>
    %cst_169 = arith.constant 0.000000e+00 : f32
    %802 = vector.broadcast %cst_169 : f32 to vector<36x1xf32>
    %c0_170 = arith.constant 0 : index
    %c0_171 = arith.constant 0 : index
    %803 = vector.load %arg12[%c0_170, %c0_171] : memref<36x4xf32, #tpu.memory_space<vmem>>, vector<36x1xf32>
    %804 = arith.mulf %801, %803 : vector<36x1xf32>
    %805 = vector.shape_cast %804 : vector<36x1xf32> to vector<1x36x1xf32>
    %cst_172 = arith.constant dense<0.000000e+00> : vector<1xf32>
    %806 = vector.multi_reduction <add>, %805, %cst_172 [1, 2] : vector<1x36x1xf32> to vector<1xf32>
    %807 = vector.shape_cast %806 : vector<1xf32> to vector<1x1x1xf32>
    %808 = vector.extract %807[0, 0, 0] : f32 from vector<1x1x1xf32>
    %cst_173 = arith.constant 2.304000e+03 : f32
    %809 = arith.divf %808, %cst_173 : f32
    %810 = vector.broadcast %809 : f32 to vector<36x1xf32>
    %811 = arith.mulf %803, %810 : vector<36x1xf32>
    %812 = arith.addf %802, %811 : vector<36x1xf32>
    %c0_174 = arith.constant 0 : index
    %c1_175 = arith.constant 1 : index
    %813 = vector.load %arg12[%c0_174, %c1_175] : memref<36x4xf32, #tpu.memory_space<vmem>>, vector<36x1xf32>
    %814 = arith.mulf %801, %813 : vector<36x1xf32>
    %815 = vector.shape_cast %814 : vector<36x1xf32> to vector<1x36x1xf32>
    %cst_176 = arith.constant dense<0.000000e+00> : vector<1xf32>
    %816 = vector.multi_reduction <add>, %815, %cst_176 [1, 2] : vector<1x36x1xf32> to vector<1xf32>
    %817 = vector.shape_cast %816 : vector<1xf32> to vector<1x1x1xf32>
    %818 = vector.extract %817[0, 0, 0] : f32 from vector<1x1x1xf32>
    %cst_177 = arith.constant 2.304000e+03 : f32
    %819 = arith.divf %818, %cst_177 : f32
    %820 = vector.broadcast %819 : f32 to vector<36x1xf32>
    %821 = arith.mulf %813, %820 : vector<36x1xf32>
    %822 = arith.addf %812, %821 : vector<36x1xf32>
    %c0_178 = arith.constant 0 : index
    %c2_179 = arith.constant 2 : index
    %823 = vector.load %arg12[%c0_178, %c2_179] : memref<36x4xf32, #tpu.memory_space<vmem>>, vector<36x1xf32>
    %824 = arith.mulf %801, %823 : vector<36x1xf32>
    %825 = vector.shape_cast %824 : vector<36x1xf32> to vector<1x36x1xf32>
    %cst_180 = arith.constant dense<0.000000e+00> : vector<1xf32>
    %826 = vector.multi_reduction <add>, %825, %cst_180 [1, 2] : vector<1x36x1xf32> to vector<1xf32>
    %827 = vector.shape_cast %826 : vector<1xf32> to vector<1x1x1xf32>
    %828 = vector.extract %827[0, 0, 0] : f32 from vector<1x1x1xf32>
    %cst_181 = arith.constant 2.304000e+03 : f32
    %829 = arith.divf %828, %cst_181 : f32
    %830 = vector.broadcast %829 : f32 to vector<36x1xf32>
    %831 = arith.mulf %823, %830 : vector<36x1xf32>
    %832 = arith.addf %822, %831 : vector<36x1xf32>
    %c0_182 = arith.constant 0 : index
    %c3_183 = arith.constant 3 : index
    %833 = vector.load %arg12[%c0_182, %c3_183] : memref<36x4xf32, #tpu.memory_space<vmem>>, vector<36x1xf32>
    %834 = arith.mulf %801, %833 : vector<36x1xf32>
    %835 = vector.shape_cast %834 : vector<36x1xf32> to vector<1x36x1xf32>
    %cst_184 = arith.constant dense<0.000000e+00> : vector<1xf32>
    %836 = vector.multi_reduction <add>, %835, %cst_184 [1, 2] : vector<1x36x1xf32> to vector<1xf32>
    %837 = vector.shape_cast %836 : vector<1xf32> to vector<1x1x1xf32>
    %838 = vector.extract %837[0, 0, 0] : f32 from vector<1x1x1xf32>
    %cst_185 = arith.constant 2.304000e+03 : f32
    %839 = arith.divf %838, %cst_185 : f32
    %840 = vector.broadcast %839 : f32 to vector<36x1xf32>
    %841 = arith.mulf %833, %840 : vector<36x1xf32>
    %842 = arith.addf %832, %841 : vector<36x1xf32>
    %843 = vector.broadcast %842 : vector<36x1xf32> to vector<36x256xf32>
    %844 = arith.subf %799, %843 : vector<36x256xf32>
    %845 = arith.mulf %844, %844 : vector<36x256xf32>
    %cst_186 = arith.constant dense<0.000000e+00> : vector<36xf32>
    %846 = vector.multi_reduction <add>, %845, %cst_186 [1] : vector<36x256xf32> to vector<36xf32>
    %847 = vector.shape_cast %846 : vector<36xf32> to vector<36x1xf32>
    %cst_187 = arith.constant 0.000000e+00 : f32
    %848 = vector.broadcast %cst_187 : f32 to vector<36x1xf32>
    %c0_188 = arith.constant 0 : index
    %c0_189 = arith.constant 0 : index
    %849 = vector.load %arg12[%c0_188, %c0_189] : memref<36x4xf32, #tpu.memory_space<vmem>>, vector<36x1xf32>
    %850 = arith.mulf %847, %849 : vector<36x1xf32>
    %851 = vector.shape_cast %850 : vector<36x1xf32> to vector<1x36x1xf32>
    %cst_190 = arith.constant dense<0.000000e+00> : vector<1xf32>
    %852 = vector.multi_reduction <add>, %851, %cst_190 [1, 2] : vector<1x36x1xf32> to vector<1xf32>
    %853 = vector.shape_cast %852 : vector<1xf32> to vector<1x1x1xf32>
    %854 = vector.extract %853[0, 0, 0] : f32 from vector<1x1x1xf32>
    %cst_191 = arith.constant 2.304000e+03 : f32
    %855 = arith.divf %854, %cst_191 : f32
    %cst_192 = arith.constant 9.99999974E-6 : f32
    %856 = arith.addf %855, %cst_192 : f32
    %857 = math.rsqrt %856 : f32
    %858 = vector.broadcast %857 : f32 to vector<36x1xf32>
    %859 = arith.mulf %849, %858 : vector<36x1xf32>
    %860 = arith.addf %848, %859 : vector<36x1xf32>
    %c0_193 = arith.constant 0 : index
    %c1_194 = arith.constant 1 : index
    %861 = vector.load %arg12[%c0_193, %c1_194] : memref<36x4xf32, #tpu.memory_space<vmem>>, vector<36x1xf32>
    %862 = arith.mulf %847, %861 : vector<36x1xf32>
    %863 = vector.shape_cast %862 : vector<36x1xf32> to vector<1x36x1xf32>
    %cst_195 = arith.constant dense<0.000000e+00> : vector<1xf32>
    %864 = vector.multi_reduction <add>, %863, %cst_195 [1, 2] : vector<1x36x1xf32> to vector<1xf32>
    %865 = vector.shape_cast %864 : vector<1xf32> to vector<1x1x1xf32>
    %866 = vector.extract %865[0, 0, 0] : f32 from vector<1x1x1xf32>
    %cst_196 = arith.constant 2.304000e+03 : f32
    %867 = arith.divf %866, %cst_196 : f32
    %cst_197 = arith.constant 9.99999974E-6 : f32
    %868 = arith.addf %867, %cst_197 : f32
    %869 = math.rsqrt %868 : f32
    %870 = vector.broadcast %869 : f32 to vector<36x1xf32>
    %871 = arith.mulf %861, %870 : vector<36x1xf32>
    %872 = arith.addf %860, %871 : vector<36x1xf32>
    %c0_198 = arith.constant 0 : index
    %c2_199 = arith.constant 2 : index
    %873 = vector.load %arg12[%c0_198, %c2_199] : memref<36x4xf32, #tpu.memory_space<vmem>>, vector<36x1xf32>
    %874 = arith.mulf %847, %873 : vector<36x1xf32>
    %875 = vector.shape_cast %874 : vector<36x1xf32> to vector<1x36x1xf32>
    %cst_200 = arith.constant dense<0.000000e+00> : vector<1xf32>
    %876 = vector.multi_reduction <add>, %875, %cst_200 [1, 2] : vector<1x36x1xf32> to vector<1xf32>
    %877 = vector.shape_cast %876 : vector<1xf32> to vector<1x1x1xf32>
    %878 = vector.extract %877[0, 0, 0] : f32 from vector<1x1x1xf32>
    %cst_201 = arith.constant 2.304000e+03 : f32
    %879 = arith.divf %878, %cst_201 : f32
    %cst_202 = arith.constant 9.99999974E-6 : f32
    %880 = arith.addf %879, %cst_202 : f32
    %881 = math.rsqrt %880 : f32
    %882 = vector.broadcast %881 : f32 to vector<36x1xf32>
    %883 = arith.mulf %873, %882 : vector<36x1xf32>
    %884 = arith.addf %872, %883 : vector<36x1xf32>
    %c0_203 = arith.constant 0 : index
    %c3_204 = arith.constant 3 : index
    %885 = vector.load %arg12[%c0_203, %c3_204] : memref<36x4xf32, #tpu.memory_space<vmem>>, vector<36x1xf32>
    %886 = arith.mulf %847, %885 : vector<36x1xf32>
    %887 = vector.shape_cast %886 : vector<36x1xf32> to vector<1x36x1xf32>
    %cst_205 = arith.constant dense<0.000000e+00> : vector<1xf32>
    %888 = vector.multi_reduction <add>, %887, %cst_205 [1, 2] : vector<1x36x1xf32> to vector<1xf32>
    %889 = vector.shape_cast %888 : vector<1xf32> to vector<1x1x1xf32>
    %890 = vector.extract %889[0, 0, 0] : f32 from vector<1x1x1xf32>
    %cst_206 = arith.constant 2.304000e+03 : f32
    %891 = arith.divf %890, %cst_206 : f32
    %cst_207 = arith.constant 9.99999974E-6 : f32
    %892 = arith.addf %891, %cst_207 : f32
    %893 = math.rsqrt %892 : f32
    %894 = vector.broadcast %893 : f32 to vector<36x1xf32>
    %895 = arith.mulf %885, %894 : vector<36x1xf32>
    %896 = arith.addf %884, %895 : vector<36x1xf32>
    %897 = vector.broadcast %896 : vector<36x1xf32> to vector<36x256xf32>
    %898 = arith.mulf %844, %897 : vector<36x256xf32>
    %c0_208 = arith.constant 0 : index
    %c0_209 = arith.constant 0 : index
    %899 = vector.load %arg10[%c0_208, %c0_209] : memref<36x1xf32, #tpu.memory_space<vmem>>, vector<36x1xf32>
    %900 = vector.broadcast %899 : vector<36x1xf32> to vector<36x256xf32>
    %901 = arith.mulf %898, %900 : vector<36x256xf32>
    %c0_210 = arith.constant 0 : index
    %c0_211 = arith.constant 0 : index
    %902 = vector.load %arg11[%c0_210, %c0_211] : memref<36x1xf32, #tpu.memory_space<vmem>>, vector<36x1xf32>
    %903 = vector.broadcast %902 : vector<36x1xf32> to vector<36x256xf32>
    %904 = arith.addf %901, %903 : vector<36x256xf32>
    %c0_212 = arith.constant 0 : index
    %c0_213 = arith.constant 0 : index
    %c0_214 = arith.constant 0 : index
    %905 = vector.load %arg13[%c0_212, %c0_213, %c0_214] : memref<1x36x256xf32, #tpu.memory_space<vmem>>, vector<1x36x256xf32>
    %906 = vector.shape_cast %905 : vector<1x36x256xf32> to vector<36x256xf32>
    %907 = vector.shape_cast %904 : vector<36x256xf32> to vector<1x36x256xf32>
    tpu.vector_store %arg13[%c0_212, %c0_213, %c0_214], %907 {strides = array<i32>} : memref<1x36x256xf32, #tpu.memory_space<vmem>>, vector<1x36x256xf32>,
    return
  }
  func.func @transform_0(%arg0: i32) -> (i32, i32, i32) {
    %c0_i32 = arith.constant 0 : i32
    %c0_i32_0 = arith.constant 0 : i32
    %c0_i32_1 = arith.constant 0 : i32
    return %arg0, %c0_i32, %c0_i32_0 : i32, i32, i32
  }
  func.func @transform_1(%arg0: i32) -> (i32, i32) {
    %c0_i32 = arith.constant 0 : i32
    %c0_i32_0 = arith.constant 0 : i32
    %c0_i32_1 = arith.constant 0 : i32
    return %c0_i32, %c0_i32_0 : i32, i32
  }
  func.func @transform_2(%arg0: i32) -> (i32, i32) {
    %c0_i32 = arith.constant 0 : i32
    %c0_i32_0 = arith.constant 0 : i32
    %c0_i32_1 = arith.constant 0 : i32
    return %c0_i32, %c0_i32_0 : i32, i32
  }
  func.func @transform_3(%arg0: i32) -> (i32, i32, i32) {
    %c0_i32 = arith.constant 0 : i32
    %c0_i32_0 = arith.constant 0 : i32
    %c0_i32_1 = arith.constant 0 : i32
    %c0_i32_2 = arith.constant 0 : i32
    return %c0_i32, %c0_i32_0, %c0_i32_1 : i32, i32, i32
  }
  func.func @transform_4(%arg0: i32) -> (i32, i32) {
    %c0_i32 = arith.constant 0 : i32
    %c0_i32_0 = arith.constant 0 : i32
    %c0_i32_1 = arith.constant 0 : i32
    return %c0_i32, %c0_i32_0 : i32, i32
  }
  func.func @transform_5(%arg0: i32) -> (i32, i32, i32) {
    %c0_i32 = arith.constant 0 : i32
    %c0_i32_0 = arith.constant 0 : i32
    %c0_i32_1 = arith.constant 0 : i32
    %c0_i32_2 = arith.constant 0 : i32
    return %c0_i32, %c0_i32_0, %c0_i32_1 : i32, i32, i32
  }
  func.func @transform_6(%arg0: i32) -> (i32, i32, i32) {
    %c0_i32 = arith.constant 0 : i32
    %c0_i32_0 = arith.constant 0 : i32
    %c0_i32_1 = arith.constant 0 : i32
    %c0_i32_2 = arith.constant 0 : i32
    return %c0_i32, %c0_i32_0, %c0_i32_1 : i32, i32, i32
  }
  func.func @transform_7(%arg0: i32) -> (i32, i32) {
    %c0_i32 = arith.constant 0 : i32
    %c0_i32_0 = arith.constant 0 : i32
    %c0_i32_1 = arith.constant 0 : i32
    return %c0_i32, %c0_i32_0 : i32, i32
  }
  func.func @transform_8(%arg0: i32) -> (i32, i32) {
    %c0_i32 = arith.constant 0 : i32
    %c0_i32_0 = arith.constant 0 : i32
    %c0_i32_1 = arith.constant 0 : i32
    return %c0_i32, %c0_i32_0 : i32, i32
  }
  func.func @transform_9(%arg0: i32) -> (i32, i32) {
    %c0_i32 = arith.constant 0 : i32
    %c0_i32_0 = arith.constant 0 : i32
    %c0_i32_1 = arith.constant 0 : i32
    return %c0_i32, %c0_i32_0 : i32, i32
  }
  func.func @transform_10(%arg0: i32) -> (i32, i32) {
    %c0_i32 = arith.constant 0 : i32
    %c0_i32_0 = arith.constant 0 : i32
    %c0_i32_1 = arith.constant 0 : i32
    return %c0_i32, %c0_i32_0 : i32, i32
  }
  func.func @transform_11(%arg0: i32) -> (i32, i32) {
    %c0_i32 = arith.constant 0 : i32
    %c0_i32_0 = arith.constant 0 : i32
    %c0_i32_1 = arith.constant 0 : i32
    return %c0_i32, %c0_i32_0 : i32, i32
  }
  func.func @transform_12(%arg0: i32) -> (i32, i32, i32) {
    %c0_i32 = arith.constant 0 : i32
    %c0_i32_0 = arith.constant 0 : i32
    %c0_i32_1 = arith.constant 0 : i32
    return %arg0, %c0_i32, %c0_i32_0 : i32, i32, i32
  }
}

</mosaic_0001>

<llo_original>
// kernel: tpu_custom_call.1
$region0: #{tpu_custom_call.1}
  #allocation0 [shape = 'u32[]', space=smem, size = 0x4, offset = 0x4, fixed_abs, tag = 'smem constant byte address 0x4 - core index']
  #allocation1 [shape = 'u32[144,128]{1,0:T(1,128)}', space=vmem, size = 0x12000, scoped, tag = 'internal scratch']
  #allocation2 [shape = 'f32[8,512]{1,0:T(8,128)}', space=vmem, size = 0x4000, scoped, tag = 'scratch operand']
  #allocation3 [shape = 'bf16[24,256]{1,0:T(8,128)(2,1)}', space=vmem, size = 0x3000, scoped, tag = 'scratch operand']
  %s0 = inlined_call_operand.vmem [shape: bf16[2,16,256], index: 0, kind: input, shape index: {}]
  %s1 = inlined_call_operand.vmem [shape: bf16[8,16], index: 1, kind: input, shape index: {}]
  %s2 = inlined_call_operand.vmem [shape: f32[8,1], index: 2, kind: input, shape index: {}]
  %s3 = inlined_call_operand.vmem [shape: f32[3,8,81], index: 3, kind: input, shape index: {}]
  %s4 = inlined_call_operand.vmem [shape: f32[9,256], index: 4, kind: input, shape index: {}]
  %s5 = inlined_call_operand.vmem [shape: bf16[3,8,8], index: 5, kind: input, shape index: {}]
  %s6 = inlined_call_operand.vmem [shape: f32[3,8,1], index: 6, kind: input, shape index: {}]
  %s7 = inlined_call_operand.vmem [shape: bf16[36,24], index: 7, kind: input, shape index: {}]
  %s8 = inlined_call_operand.vmem [shape: f32[36,1], index: 8, kind: input, shape index: {}]
  %s9 = inlined_call_operand.vmem [shape: f32[36,1], index: 9, kind: input, shape index: {}]
  %s10 = inlined_call_operand.vmem [shape: f32[36,1], index: 10, kind: input, shape index: {}]
  %s11 = inlined_call_operand.vmem [shape: f32[36,4], index: 11, kind: input, shape index: {}]
  %s12 = inlined_call_operand.vmem [shape: f32[2,36,256], index: 12, kind: output, shape index: {}]
  %s13 = sld [smem:[#allocation0]]
  $region81: #{tpu_custom_call.1} parent=0
    _
  %s15 = ssub.s32 1, %s13
  %s16 = scalar_select 0, %s15, %s13
  loop: start=0, step=1, limit=4
  $region2: #{tpu_custom_call.1} parent=0 // loop_pre_header
    _
  $region3: #{tpu_custom_call.1} parent=0 // loop_header
    %s18 = sphi 0, %s22
    %p19 = scmp.ge.s32.totalorder %s18, 4
    %s28 = sphi 0, %s30
    %s31 = sphi 0, %s28
    %s32 = sphi 0, %s31
    %s48 = sphi 0, %s32
    %s52 = sphi 0, %s52
    %s54 = sphi 0, %s52
    %s55 = sphi 0, %s54
    %s69 = sphi 0, %s55
    %s73 = sphi 0, %s73
    %s75 = sphi 0, %s73
    %s76 = sphi 0, %s75
    %s90 = sphi 0, %s76
    %s94 = sphi 0, %s94
    %s96 = sphi 0, %s94
    %s97 = sphi 0, %s96
    %s111 = sphi 0, %s97
    %s115 = sphi 0, %s115
    %s117 = sphi 0, %s115
    %s118 = sphi 0, %s117
    %s132 = sphi 0, %s118
    %s136 = sphi 0, %s136
    %s138 = sphi 0, %s136
    %s139 = sphi 0, %s138
    %s153 = sphi 0, %s139
    %s157 = sphi 0, %s157
    %s159 = sphi 0, %s157
    %s160 = sphi 0, %s159
    %s174 = sphi 0, %s160
    %s178 = sphi 0, %s178
    %s180 = sphi 0, %s178
    %s181 = sphi 0, %s180
    %s195 = sphi 0, %s181
    %s199 = sphi 0, %s199
    %s201 = sphi 0, %s199
    %s202 = sphi 0, %s201
    %s216 = sphi 0, %s202
    %s220 = sphi 0, %s220
    %s222 = sphi 0, %s220
    %s223 = sphi 0, %s222
    %s237 = sphi 0, %s223
    %s241 = sphi 0, %s241
    %s243 = sphi 0, %s241
    %s244 = sphi 0, %s243
    %s258 = sphi 0, %s244
    %s262 = sphi 0, %s262
    %s264 = sphi 0, %s262
    %s265 = sphi 0, %s264
    %s279 = sphi 0, %s265
    %s285 = sphi 0, %s287
    %s288 = sphi 0, %s285
    %s289 = sphi 0, %s288
    %s305 = sphi 0, %s289
  $region4: #{tpu_custom_call.1} parent=0 // loop_header_branch
    %21 = sbr.rel (%p19) target = $region8
  $region5: #{tpu_custom_call.1} parent=0 // loop_body
    %s23 = ssub.s32 %s18, 1
    %s24 = ssub.s32 %s18, 2
    %s25 = sadd.s32 %s18, 1
    %s26 = ssub.s32 %s18, %s25
    %p27 = scmp.eq.s32.totalorder %s26, 0
    %s29 = sadd.s32 %s28, 1
    %s30 = scalar_select %p27, %s28, %s29
    %p33 = pneg %p27
    %p34 = scmp.eq.s32.totalorder %s18, 1
    %p35 = por %p33, %p34
    %p36 = scmp.ne.s32.totalorder %s28, %s31
    %p37 = scmp.eq.s32.totalorder %s18, 0
    %p38 = por %p36, %p37
    %p39 = scmp.ne.s32.totalorder %s28, %s31
    %p40 = scmp.eq.s32.totalorder %s23, 1
    %p41 = por %p39, %p40
    %p42 = scmp.ne.s32.totalorder %s31, %s32
    %p43 = scmp.eq.s32.totalorder %s23, 0
    %p44 = por %p42, %p43
    %p45 = scmp.ne.s32.totalorder %s31, %s32
    %p46 = scmp.eq.s32.totalorder %s24, 1
    %p47 = por %p45, %p46
    %p49 = scmp.ne.s32.totalorder %s32, %s48
    %p50 = scmp.eq.s32.totalorder %s24, 0
    %p51 = por %p49, %p50
    %s53 = sadd.s32 %s52, 1
    %p56 = scmp.eq.s32.totalorder %s18, 1
    %p57 = scmp.ne.s32.totalorder %s52, %s54
    %p58 = scmp.eq.s32.totalorder %s18, 0
    %p59 = por %p57, %p58
    %p60 = scmp.ne.s32.totalorder %s52, %s54
    %p61 = scmp.eq.s32.totalorder %s23, 1
    %p62 = por %p60, %p61
    %p63 = scmp.ne.s32.totalorder %s54, %s55
    %p64 = scmp.eq.s32.totalorder %s23, 0
    %p65 = por %p63, %p64
    %p66 = scmp.ne.s32.totalorder %s54, %s55
    %p67 = scmp.eq.s32.totalorder %s24, 1
    %p68 = por %p66, %p67
    %p70 = scmp.ne.s32.totalorder %s55, %s69
    %p71 = scmp.eq.s32.totalorder %s24, 0
    %p72 = por %p70, %p71
    %s74 = sadd.s32 %s73, 1
    %p77 = scmp.eq.s32.totalorder %s18, 1
    %p78 = scmp.ne.s32.totalorder %s73, %s75
    %p79 = scmp.eq.s32.totalorder %s18, 0
    %p80 = por %p78, %p79
    %p81 = scmp.ne.s32.totalorder %s73, %s75
    %p82 = scmp.eq.s32.totalorder %s23, 1
    %p83 = por %p81, %p82
    %p84 = scmp.ne.s32.totalorder %s75, %s76
    %p85 = scmp.eq.s32.totalorder %s23, 0
    %p86 = por %p84, %p85
    %p87 = scmp.ne.s32.totalorder %s75, %s76
    %p88 = scmp.eq.s32.totalorder %s24, 1
    %p89 = por %p87, %p88
    %p91 = scmp.ne.s32.totalorder %s76, %s90
    %p92 = scmp.eq.s32.totalorder %s24, 0
    %p93 = por %p91, %p92
    %s95 = sadd.s32 %s94, 1
    %p98 = scmp.eq.s32.totalorder %s18, 1
    %p99 = scmp.ne.s32.totalorder %s94, %s96
    %p100 = scmp.eq.s32.totalorder %s18, 0
    %p101 = por %p99, %p100
    %p102 = scmp.ne.s32.totalorder %s94, %s96
    %p103 = scmp.eq.s32.totalorder %s23, 1
    %p104 = por %p102, %p103
    %p105 = scmp.ne.s32.totalorder %s96, %s97
    %p106 = scmp.eq.s32.totalorder %s23, 0
    %p107 = por %p105, %p106
    %p108 = scmp.ne.s32.totalorder %s96, %s97
    %p109 = scmp.eq.s32.totalorder %s24, 1
    %p110 = por %p108, %p109
    %p112 = scmp.ne.s32.totalorder %s97, %s111
    %p113 = scmp.eq.s32.totalorder %s24, 0
    %p114 = por %p112, %p113
    %s116 = sadd.s32 %s115, 1
    %p119 = scmp.eq.s32.totalorder %s18, 1
    %p120 = scmp.ne.s32.totalorder %s115, %s117
    %p121 = scmp.eq.s32.totalorder %s18, 0
    %p122 = por %p120, %p121
    %p123 = scmp.ne.s32.totalorder %s115, %s117
    %p124 = scmp.eq.s32.totalorder %s23, 1
    %p125 = por %p123, %p124
    %p126 = scmp.ne.s32.totalorder %s117, %s118
    %p127 = scmp.eq.s32.totalorder %s23, 0
    %p128 = por %p126, %p127
    %p129 = scmp.ne.s32.totalorder %s117, %s118
    %p130 = scmp.eq.s32.totalorder %s24, 1
    %p131 = por %p129, %p130
    %p133 = scmp.ne.s32.totalorder %s118, %s132
    %p134 = scmp.eq.s32.totalorder %s24, 0
    %p135 = por %p133, %p134
    %s137 = sadd.s32 %s136, 1
    %p140 = scmp.eq.s32.totalorder %s18, 1
    %p141 = scmp.ne.s32.totalorder %s136, %s138
    %p142 = scmp.eq.s32.totalorder %s18, 0
    %p143 = por %p141, %p142
    %p144 = scmp.ne.s32.totalorder %s136, %s138
    %p145 = scmp.eq.s32.totalorder %s23, 1
    %p146 = por %p144, %p145
    %p147 = scmp.ne.s32.totalorder %s138, %s139
    %p148 = scmp.eq.s32.totalorder %s23, 0
    %p149 = por %p147, %p148
    %p150 = scmp.ne.s32.totalorder %s138, %s139
    %p151 = scmp.eq.s32.totalorder %s24, 1
    %p152 = por %p150, %p151
    %p154 = scmp.ne.s32.totalorder %s139, %s153
    %p155 = scmp.eq.s32.totalorder %s24, 0
    %p156 = por %p154, %p155
    %s158 = sadd.s32 %s157, 1
    %p161 = scmp.eq.s32.totalorder %s18, 1
    %p162 = scmp.ne.s32.totalorder %s157, %s159
    %p163 = scmp.eq.s32.totalorder %s18, 0
    %p164 = por %p162, %p163
    %p165 = scmp.ne.s32.totalorder %s157, %s159
    %p166 = scmp.eq.s32.totalorder %s23, 1
    %p167 = por %p165, %p166
    %p168 = scmp.ne.s32.totalorder %s159, %s160
    %p169 = scmp.eq.s32.totalorder %s23, 0
    %p170 = por %p168, %p169
    %p171 = scmp.ne.s32.totalorder %s159, %s160
    %p172 = scmp.eq.s32.totalorder %s24, 1
    %p173 = por %p171, %p172
    %p175 = scmp.ne.s32.totalorder %s160, %s174
    %p176 = scmp.eq.s32.totalorder %s24, 0
    %p177 = por %p175, %p176
    %s179 = sadd.s32 %s178, 1
    %p182 = scmp.eq.s32.totalorder %s18, 1
    %p183 = scmp.ne.s32.totalorder %s178, %s180
    %p184 = scmp.eq.s32.totalorder %s18, 0
    %p185 = por %p183, %p184
    %p186 = scmp.ne.s32.totalorder %s178, %s180
    %p187 = scmp.eq.s32.totalorder %s23, 1
    %p188 = por %p186, %p187
    %p189 = scmp.ne.s32.totalorder %s180, %s181
    %p190 = scmp.eq.s32.totalorder %s23, 0
    %p191 = por %p189, %p190
    %p192 = scmp.ne.s32.totalorder %s180, %s181
    %p193 = scmp.eq.s32.totalorder %s24, 1
    %p194 = por %p192, %p193
    %p196 = scmp.ne.s32.totalorder %s181, %s195
    %p197 = scmp.eq.s32.totalorder %s24, 0
    %p198 = por %p196, %p197
    %s200 = sadd.s32 %s199, 1
    %p203 = scmp.eq.s32.totalorder %s18, 1
    %p204 = scmp.ne.s32.totalorder %s199, %s201
    %p205 = scmp.eq.s32.totalorder %s18, 0
    %p206 = por %p204, %p205
    %p207 = scmp.ne.s32.totalorder %s199, %s201
    %p208 = scmp.eq.s32.totalorder %s23, 1
    %p209 = por %p207, %p208
    %p210 = scmp.ne.s32.totalorder %s201, %s202
    %p211 = scmp.eq.s32.totalorder %s23, 0
    %p212 = por %p210, %p211
    %p213 = scmp.ne.s32.totalorder %s201, %s202
    %p214 = scmp.eq.s32.totalorder %s24, 1
    %p215 = por %p213, %p214
    %p217 = scmp.ne.s32.totalorder %s202, %s216
    %p218 = scmp.eq.s32.totalorder %s24, 0
    %p219 = por %p217, %p218
    %s221 = sadd.s32 %s220, 1
    %p224 = scmp.eq.s32.totalorder %s18, 1
    %p225 = scmp.ne.s32.totalorder %s220, %s222
    %p226 = scmp.eq.s32.totalorder %s18, 0
    %p227 = por %p225, %p226
    %p228 = scmp.ne.s32.totalorder %s220, %s222
    %p229 = scmp.eq.s32.totalorder %s23, 1
    %p230 = por %p228, %p229
    %p231 = scmp.ne.s32.totalorder %s222, %s223
    %p232 = scmp.eq.s32.totalorder %s23, 0
    %p233 = por %p231, %p232
    %p234 = scmp.ne.s32.totalorder %s222, %s223
    %p235 = scmp.eq.s32.totalorder %s24, 1
    %p236 = por %p234, %p235
    %p238 = scmp.ne.s32.totalorder %s223, %s237
    %p239 = scmp.eq.s32.totalorder %s24, 0
    %p240 = por %p238, %p239
    %s242 = sadd.s32 %s241, 1
    %p245 = scmp.eq.s32.totalorder %s18, 1
    %p246 = scmp.ne.s32.totalorder %s241, %s243
    %p247 = scmp.eq.s32.totalorder %s18, 0
    %p248 = por %p246, %p247
    %p249 = scmp.ne.s32.totalorder %s241, %s243
    %p250 = scmp.eq.s32.totalorder %s23, 1
    %p251 = por %p249, %p250
    %p252 = scmp.ne.s32.totalorder %s243, %s244
    %p253 = scmp.eq.s32.totalorder %s23, 0
    %p254 = por %p252, %p253
    %p255 = scmp.ne.s32.totalorder %s243, %s244
    %p256 = scmp.eq.s32.totalorder %s24, 1
    %p257 = por %p255, %p256
    %p259 = scmp.ne.s32.totalorder %s244, %s258
    %p260 = scmp.eq.s32.totalorder %s24, 0
    %p261 = por %p259, %p260
    %s263 = sadd.s32 %s262, 1
    %p266 = scmp.eq.s32.totalorder %s18, 1
    %p267 = scmp.ne.s32.totalorder %s262, %s264
    %p268 = scmp.eq.s32.totalorder %s18, 0
    %p269 = por %p267, %p268
    %p270 = scmp.ne.s32.totalorder %s262, %s264
    %p271 = scmp.eq.s32.totalorder %s23, 1
    %p272 = por %p270, %p271
    %p273 = scmp.ne.s32.totalorder %s264, %s265
    %p274 = scmp.eq.s32.totalorder %s23, 0
    %p275 = por %p273, %p274
    %p276 = scmp.ne.s32.totalorder %s264, %s265
    %p277 = scmp.eq.s32.totalorder %s24, 1
    %p278 = por %p276, %p277
    %p280 = scmp.ne.s32.totalorder %s265, %s279
    %p281 = scmp.eq.s32.totalorder %s24, 0
    %p282 = por %p280, %p281
    %s283 = ssub.s32 %s18, %s25
    %p284 = scmp.eq.s32.totalorder %s283, 0
    %s286 = sadd.s32 %s285, 1
    %s287 = scalar_select %p284, %s285, %s286
    %p290 = pneg %p284
    %p291 = scmp.eq.s32.totalorder %s18, 1
    %p292 = por %p290, %p291
    %p293 = scmp.ne.s32.totalorder %s285, %s288
    %p294 = scmp.eq.s32.totalorder %s18, 0
    %p295 = por %p293, %p294
    %p296 = scmp.ne.s32.totalorder %s285, %s288
    %p297 = scmp.eq.s32.totalorder %s23, 1
    %p298 = por %p296, %p297
    %p299 = scmp.ne.s32.totalorder %s288, %s289
    %p300 = scmp.eq.s32.totalorder %s23, 0
    %p301 = por %p299, %p300
    %p302 = scmp.ne.s32.totalorder %s288, %s289
    %p303 = scmp.eq.s32.totalorder %s24, 1
    %p304 = por %p302, %p303
    %p306 = scmp.ne.s32.totalorder %s289, %s305
    %p307 = scmp.eq.s32.totalorder %s24, 0
    %p308 = por %p306, %p307
    %p309 = scmp.le.s32.totalorder 1, %s18
    %p310 = scmp.lt.s32.totalorder %s18, 3
    %p311 = pnand %p309, %p310
    %p312 = pneg %p311
    // Predicated region
    $region9: #{tpu_custom_call.1} parent=5 // pred_check
      _
    $region10: #{tpu_custom_call.1} parent=5 // pred_check_branch
      %314 = sbr.rel (%p311) target = $region12
    $region11: #{tpu_custom_call.1} parent=5 // pred_region
      %s315 = ssub.s32 %s18, 1
      // Predicated region
      $region13: #{tpu_custom_call.1} parent=11 // pred_check
        %p316 = pneg %p65
      $region14: #{tpu_custom_call.1} parent=11 // pred_check_branch
        %318 = sbr.rel (%p316) target = $region16
      $region15: #{tpu_custom_call.1} parent=11 // pred_region
        _
      $region16: #{tpu_custom_call.1} parent=11 // pred_fallthru
        _
      // Predicated region
      $region17: #{tpu_custom_call.1} parent=11 // pred_check
        %p319 = pneg %p86
      $region18: #{tpu_custom_call.1} parent=11 // pred_check_branch
        %321 = sbr.rel (%p319) target = $region20
      $region19: #{tpu_custom_call.1} parent=11 // pred_region
        _
      $region20: #{tpu_custom_call.1} parent=11 // pred_fallthru
        _
      // Predicated region
      $region21: #{tpu_custom_call.1} parent=11 // pred_check
        %p322 = pneg %p107
      $region22: #{tpu_custom_call.1} parent=11 // pred_check_branch
        %324 = sbr.rel (%p322) target = $region24
      $region23: #{tpu_custom_call.1} parent=11 // pred_region
        _
      $region24: #{tpu_custom_call.1} parent=11 // pred_fallthru
        _
      // Predicated region
      $region25: #{tpu_custom_call.1} parent=11 // pred_check
        %p325 = pneg %p128
      $region26: #{tpu_custom_call.1} parent=11 // pred_check_branch
        %327 = sbr.rel (%p325) target = $region28
      $region27: #{tpu_custom_call.1} parent=11 // pred_region
        _
      $region28: #{tpu_custom_call.1} parent=11 // pred_fallthru
        _
      // Predicated region
      $region29: #{tpu_custom_call.1} parent=11 // pred_check
        %p328 = pneg %p149
      $region30: #{tpu_custom_call.1} parent=11 // pred_check_branch
        %330 = sbr.rel (%p328) target = $region32
      $region31: #{tpu_custom_call.1} parent=11 // pred_region
        _
      $region32: #{tpu_custom_call.1} parent=11 // pred_fallthru
        _
      // Predicated region
      $region33: #{tpu_custom_call.1} parent=11 // pred_check
        %p331 = pneg %p170
      $region34: #{tpu_custom_call.1} parent=11 // pred_check_branch
        %333 = sbr.rel (%p331) target = $region36
      $region35: #{tpu_custom_call.1} parent=11 // pred_region
        _
      $region36: #{tpu_custom_call.1} parent=11 // pred_fallthru
        _
      // Predicated region
      $region37: #{tpu_custom_call.1} parent=11 // pred_check
        %p334 = pneg %p191
      $region38: #{tpu_custom_call.1} parent=11 // pred_check_branch
        %336 = sbr.rel (%p334) target = $region40
      $region39: #{tpu_custom_call.1} parent=11 // pred_region
        _
      $region40: #{tpu_custom_call.1} parent=11 // pred_fallthru
        _
      // Predicated region
      $region41: #{tpu_custom_call.1} parent=11 // pred_check
        %p337 = pneg %p212
      $region42: #{tpu_custom_call.1} parent=11 // pred_check_branch
        %339 = sbr.rel (%p337) target = $region44
      $region43: #{tpu_custom_call.1} parent=11 // pred_region
        _
      $region44: #{tpu_custom_call.1} parent=11 // pred_fallthru
        _
      // Predicated region
      $region45: #{tpu_custom_call.1} parent=11 // pred_check
        %p340 = pneg %p233
      $region46: #{tpu_custom_call.1} parent=11 // pred_check_branch
        %342 = sbr.rel (%p340) target = $region48
      $region47: #{tpu_custom_call.1} parent=11 // pred_region
        _
      $region48: #{tpu_custom_call.1} parent=11 // pred_fallthru
        _
      // Predicated region
      $region49: #{tpu_custom_call.1} parent=11 // pred_check
        %p343 = pneg %p254
      $region50: #{tpu_custom_call.1} parent=11 // pred_check_branch
        %345 = sbr.rel (%p343) target = $region52
      $region51: #{tpu_custom_call.1} parent=11 // pred_region
        _
      $region52: #{tpu_custom_call.1} parent=11 // pred_fallthru
        _
      // Predicated region
      $region53: #{tpu_custom_call.1} parent=11 // pred_check
        %p346 = pneg %p275
      $region54: #{tpu_custom_call.1} parent=11 // pred_check_branch
        %348 = sbr.rel (%p346) target = $region56
      $region55: #{tpu_custom_call.1} parent=11 // pred_region
        _
      $region56: #{tpu_custom_call.1} parent=11 // pred_fallthru
        _
    $region12: #{tpu_custom_call.1} parent=5 // pred_fallthru
      _
    %p349 = scmp.lt.s32.totalorder %s18, 2
    // Predicated region
    $region57: #{tpu_custom_call.1} parent=5 // pred_check
      %p350 = pneg %p349
    $region58: #{tpu_custom_call.1} parent=5 // pred_check_branch
      %352 = sbr.rel (%p350) target = $region60
    $region59: #{tpu_custom_call.1} parent=5 // pred_region
      // Predicated region
      $region61: #{tpu_custom_call.1} parent=59 // pred_check
        %p353 = pneg %p38
      $region62: #{tpu_custom_call.1} parent=59 // pred_check_branch
        %355 = sbr.rel (%p353) target = $region64
      $region63: #{tpu_custom_call.1} parent=59 // pred_region
        %p356 = scmp.lt.s32.totalorder %s18, 1
        %s357 = scalar_select %p356, %s18, 1
        %s358 = smul.addr %s357, 4
        %s359 = smul.addr %s358, 4
        %s360 = scalar_lea.vmem %s0, %s359
      $region64: #{tpu_custom_call.1} parent=59 // pred_fallthru
        _
    $region60: #{tpu_custom_call.1} parent=5 // pred_fallthru
      _
    %p361 = scmp.le.s32.totalorder 1, %s18
    %p362 = scmp.lt.s32.totalorder %s18, 3
    %p363 = pnand %p361, %p362
    %p364 = pneg %p363
    // Predicated region
    $region65: #{tpu_custom_call.1} parent=5 // pred_check
      _
    $region66: #{tpu_custom_call.1} parent=5 // pred_check_branch
      %366 = sbr.rel (%p363) target = $region68
    $region67: #{tpu_custom_call.1} parent=5 // pred_region
      %s367 = ssub.s32 %s18, 1
      %p368 = scmp.lt.s32.totalorder %s23, 1
      %s369 = scalar_select %p368, %s23, 1
      %s370 = smul.addr %s369, 4
      %s371 = smul.addr %s370, 4
      %s372 = scalar_lea.vmem %s0, %s371
      %p373 = pneg %p44
      %p374 = pneg %p41
      %p375 = pneg %p65
      %p376 = pneg %p62
      %p377 = pneg %p86
      %p378 = pneg %p83
      %p379 = pneg %p107
      %p380 = pneg %p104
      %p381 = pneg %p128
      %p382 = pneg %p125
      %p383 = pneg %p149
      %p384 = pneg %p146
      %p385 = pneg %p170
      %p386 = pneg %p167
      %p387 = pneg %p191
      %p388 = pneg %p188
      %p389 = pneg %p212
      %p390 = pneg %p209
      %p391 = pneg %p233
      %p392 = pneg %p230
      %p393 = pneg %p254
      %p394 = pneg %p251
      %p395 = pneg %p275
      %p396 = pneg %p272
      %p397 = pneg %p301
      %p398 = pneg %p298
      %p399 = scmp.lt.s32.totalorder %s23, 1
      %s400 = scalar_select %p399, %s23, 1
      %s401 = smul.addr %s400, 10
      %s402 = smul.addr %s401, 8
      %s403 = scalar_lea.vmem %s12, %s402
      %p404 = scmp.lt.s32.totalorder %s23, 1
      %s405 = scalar_select %p404, %s23, 1
      %s406 = smul.addr %s405, 4
      %s407 = smul.addr %s406, 4
      %s408 = scalar_lea.vmem %s0, %s407
      %p409 = scmp.lt.s32.totalorder %s23, 1
      %s410 = scalar_select %p409, %s23, 1
      %s411 = smul.addr %s410, 10
      %s412 = smul.addr %s411, 8
      %s413 = scalar_lea.vmem %s12, %s412
      %v415 = vld [vmem:[%s1] sm:$0xf]
      %v416 = vld [vmem:[%s408] sm:$0xff]
      %v417 = vld [vmem:[%s408 + $0x8] sm:$0xff]
      %v418 = vld [vmem:[%s2] sm:$0xff]
      %420 = vset.pattern.permute.xlu0 0
      %421 = vperm.xlu0 %420, %v418
      %v422 = vpop.permute.xlu0 %421
      %v426 = vunpack.c.l.b16 %v416
      %v427 = vunpack.c.h.b16 %v416
      %v428 = vunpack.c.l.b16 %v417
      %v429 = vunpack.c.h.b16 %v417
      %v430 = vpack.c.b16 %v428, %v426
      %v431 = vpack.c.b16 %v429, %v427
      %vm434 = vcmask 130048
      %v436 = vsel %vm434, %v415, 0
      %438 = vmatprep.subr.bf16.mxu0 0
      %439 = vmatpush1.bf16.msra.mxu0 0
      %440 = vmatprep.subr.bf16.mxu0 0
      %441 = vmatpush1.bf16.msra.mxu0 0
      %442 = vmatprep.subr.bf16.mxu0 0
      %443 = vmatpush1.bf16.msra.mxu0 0
      %444 = vmatprep.subr.bf16.mxu0 0
      %445 = vmatpush1.bf16.msra.mxu0 0
      %446 = vmatprep.subr.bf16.mxu0 0
      %447 = vmatpush1.bf16.msra.mxu0 0
      %448 = vmatprep.subr.bf16.mxu0 0
      %449 = vmatpush1.bf16.msra.mxu0 0
      %450 = vmatprep.subr.bf16.mxu0 0
      %451 = vmatpush1.bf16.msra.mxu0 0
      %452 = vmatprep.subr.bf16.mxu0 %v431
      %453 = vmatpush1.bf16.msra.mxu0 %v430
      %454 = vmatprep.subr.bf16.mxu0 0
      %455 = vmatpush2.bf16.msra.mxu0 0
      %456 = vmatprep.subr.bf16.mxu0 0
      %457 = vmatpush2.bf16.msra.mxu0 0
      %458 = vmatprep.subr.bf16.mxu0 0
      %459 = vmatpush2.bf16.msra.mxu0 0
      %460 = vmatprep.subr.bf16.mxu0 0
      %461 = vmatpush2.bf16.msra.mxu0 0
      %462 = vmatprep.subr.bf16.mxu0 0
      %463 = vmatpush2.bf16.msra.mxu0 0
      %464 = vmatprep.subr.bf16.mxu0 0
      %465 = vmatpush2.bf16.msra.mxu0 0
      %466 = vmatprep.subr.bf16.mxu0 0
      %467 = vmatpush2.bf16.msra.mxu0 0
      %468 = vmatprep.subr.bf16.mxu0 0
      %469 = vmatpush2.bf16.msra.mxu0 0
      %470 = vmatprep.mubr.bf16.mxu0 0
      %471 = vmatmul.mubr.bf16.gmra.mxu0 %v436
      %v472 = vpop.f32.mrf.mxu0
      %v473 = vadd.f32 %v422, %v472
      %v474 = vpop.f32.mrf.mxu0
      %v475 = vadd.f32 %v422, %v474
      %v476 = vpop.f32.mrf.mxu0
      %v477 = vpop.f32.mrf.mxu0
      %478 = vdwg.mxu0
      %v479 = vmax.f32 %v473, 0.0
      %v480 = vmax.f32 %v475, 0.0
      %481 = vst [vmem:[#allocation2] sm:$0xff] 0.0
      %482 = vst [vmem:[#allocation2 + $0x18] sm:$0xff] 0.0
      %v483 = vld [vmem:[%s3] sm:$0xff]
      %s484 = scalar_lea.vmem %s3, 8
      %v485 = vld [vmem:[%s484] sm:$0xff]
      %s486 = scalar_lea.vmem %s3, 16
      %v487 = vld [vmem:[%s486] sm:$0xff]
      %v488 = vld [vmem:[%s4] ss:$8 sm:$0x3]
      %v490 = vlaneseq
      %v491 = vshrl.u32 %v490, 7
      %v492 = vsub.s32 0, %v491
      %v493 = vrot.slane %v488, %v492
      %v494 = vlaneseq
      %v495 = vshrl.u32 %v494, 7
      %v496 = vsub.s32 1, %v495
      %v497 = vrot.slane %v488, %v496
      %v500 = vmul.f32 %v479, %v493
      %v501 = vmul.f32 %v480, %v497
      %502 = vst [vmem:[#allocation2 + $0x8] sm:$0xff] %v500
      %503 = vst [vmem:[#allocation2 + $0x10] sm:$0xff] %v501
      %v504 = vld [vmem:[#allocation2] sm:$0xff]
      %v505 = vld [vmem:[#allocation2 + $0x8] sm:$0xff]
      %v506 = vld [vmem:[#allocation2 + $0x10] sm:$0xff]
      %508 = vset.pattern.permute.xlu0 0
      %509 = vperm.xlu0 %508, %v485
      %v510 = vpop.permute.xlu0 %509
      %v512 = vmul.f32 %v504, %v510
      %v513 = vmul.f32 %v505, %v510
      %v514 = vmul.f32 %v506, %v510
      %v515 = vadd.f32 %v512, 0.0
      %v516 = vadd.f32 %v513, 0.0
      %v517 = vadd.f32 %v514, 0.0
      %518 = vset.pattern.permute.xlu0 9
      %519 = vperm.xlu0 %518, %v485
      %v520 = vpop.permute.xlu0 %519
      %v522 = vmul.f32 %v504, %v520
      %v523 = vmul.f32 %v505, %v520
      %v524 = vmul.f32 %v506, %v520
      %528 = vrot.lane.b32.xlu0 %v522, 112
      %v529 = vpop.permute.xlu0 %528
      %530 = vrot.lane.b32.xlu0 %v523, 112
      %v531 = vpop.permute.xlu0 %530
      %532 = vrot.lane.b32.xlu0 %v524, 112
      %v533 = vpop.permute.xlu0 %532
      %vm534 = vcmask 916480
      %v535 = vsel %vm534, %v529, %v531
      %v536 = vsel %vm534, %v531, %v533
      %v540 = vadd.f32 %v515, %v535
      %v541 = vadd.f32 %v516, %v536
      %v542 = vadd.f32 %v517, %v533
      %543 = vset.pattern.permute.xlu0 18
      %544 = vperm.xlu0 %543, %v485
      %v545 = vpop.permute.xlu0 %544
      %v547 = vmul.f32 %v504, %v545
      %v548 = vmul.f32 %v505, %v545
      %v549 = vmul.f32 %v506, %v545
      %553 = vrot.lane.b32.xlu0 %v547, 96
      %v554 = vpop.permute.xlu0 %553
      %555 = vrot.lane.b32.xlu0 %v548, 96
      %v556 = vpop.permute.xlu0 %555
      %557 = vrot.lane.b32.xlu0 %v549, 96
      %v558 = vpop.permute.xlu0 %557
      %vm559 = vcmask 785408
      %v560 = vsel %vm559, %v554, %v556
      %v561 = vsel %vm559, %v556, %v558
      %v565 = vadd.f32 %v540, %v560
      %v566 = vadd.f32 %v541, %v561
      %v567 = vadd.f32 %v542, %v558
      %568 = vset.pattern.permute.xlu0 27
      %569 = vperm.xlu0 %568, %v485
      %v570 = vpop.permute.xlu0 %569
      %v572 = vmul.f32 %v504, %v570
      %v573 = vmul.f32 %v505, %v570
      %v574 = vmul.f32 %v506, %v570
      %578 = vrot.lane.b32.xlu0 %v572, 80
      %v579 = vpop.permute.xlu0 %578
      %580 = vrot.lane.b32.xlu0 %v573, 80
      %v581 = vpop.permute.xlu0 %580
      %582 = vrot.lane.b32.xlu0 %v574, 80
      %v583 = vpop.permute.xlu0 %582
      %vm584 = vcmask 654336
      %v585 = vsel %vm584, %v579, %v581
      %v586 = vsel %vm584, %v581, %v583
      %v590 = vadd.f32 %v565, %v585
      %v591 = vadd.f32 %v566, %v586
      %v592 = vadd.f32 %v567, %v583
      %593 = vset.pattern.permute.xlu0 36
      %594 = vperm.xlu0 %593, %v485
      %v595 = vpop.permute.xlu0 %594
      %v597 = vmul.f32 %v504, %v595
      %v598 = vmul.f32 %v505, %v595
      %v599 = vmul.f32 %v506, %v595
      %603 = vrot.lane.b32.xlu0 %v597, 64
      %v604 = vpop.permute.xlu0 %603
      %605 = vrot.lane.b32.xlu0 %v598, 64
      %v606 = vpop.permute.xlu0 %605
      %607 = vrot.lane.b32.xlu0 %v599, 64
      %v608 = vpop.permute.xlu0 %607
      %vm609 = vcmask 523264
      %v610 = vsel %vm609, %v604, %v606
      %v611 = vsel %vm609, %v606, %v608
      %v615 = vadd.f32 %v590, %v610
      %v616 = vadd.f32 %v591, %v611
      %v617 = vadd.f32 %v592, %v608
      %v618 = vld [vmem:[#allocation2 + $0x8] sm:$0xff]
      %v619 = vld [vmem:[#allocation2 + $0x10] sm:$0xff]
      %v620 = vld [vmem:[#allocation2 + $0x18] sm:$0xff]
      %621 = vset.pattern.permute.xlu0 45
      %622 = vperm.xlu0 %621, %v485
      %v623 = vpop.permute.xlu0 %622
      %v625 = vmul.f32 %v618, %v623
      %v626 = vmul.f32 %v619, %v623
      %v627 = vmul.f32 %v620, %v623
      %631 = vrot.lane.b32.xlu0 %v625, 48
      %v632 = vpop.permute.xlu0 %631
      %633 = vrot.lane.b32.xlu0 %v626, 48
      %v634 = vpop.permute.xlu0 %633
      %635 = vrot.lane.b32.xlu0 %v627, 48
      %v636 = vpop.permute.xlu0 %635
      %vm637 = vcmask 392192
      %v638 = vsel %vm637, %v632, %v634
      %v639 = vsel %vm637, %v634, %v636
      %v643 = vadd.f32 %v615, %v632
      %v644 = vadd.f32 %v616, %v638
      %v645 = vadd.f32 %v617, %v639
      %646 = vset.pattern.permute.xlu0 54
      %647 = vperm.xlu0 %646, %v485
      %v648 = vpop.permute.xlu0 %647
      %v650 = vmul.f32 %v618, %v648
      %v651 = vmul.f32 %v619, %v648
      %v652 = vmul.f32 %v620, %v648
      %656 = vrot.lane.b32.xlu0 %v650, 32
      %v657 = vpop.permute.xlu0 %656
      %658 = vrot.lane.b32.xlu0 %v651, 32
      %v659 = vpop.permute.xlu0 %658
      %660 = vrot.lane.b32.xlu0 %v652, 32
      %v661 = vpop.permute.xlu0 %660
      %vm662 = vcmask 261120
      %v663 = vsel %vm662, %v657, %v659
      %v664 = vsel %vm662, %v659, %v661
      %v668 = vadd.f32 %v643, %v657
      %v669 = vadd.f32 %v644, %v663
      %v670 = vadd.f32 %v645, %v664
      %671 = vset.pattern.permute.xlu0 63
      %672 = vperm.xlu0 %671, %v485
      %v673 = vpop.permute.xlu0 %672
      %v675 = vmul.f32 %v618, %v673
      %v676 = vmul.f32 %v619, %v673
      %v677 = vmul.f32 %v620, %v673
      %681 = vrot.lane.b32.xlu0 %v675, 16
      %v682 = vpop.permute.xlu0 %681
      %683 = vrot.lane.b32.xlu0 %v676, 16
      %v684 = vpop.permute.xlu0 %683
      %685 = vrot.lane.b32.xlu0 %v677, 16
      %v686 = vpop.permute.xlu0 %685
      %v687 = vsel %vm434, %v682, %v684
      %v688 = vsel %vm434, %v684, %v686
      %v692 = vadd.f32 %v668, %v682
      %v693 = vadd.f32 %v669, %v687
      %v694 = vadd.f32 %v670, %v688
      %695 = vset.pattern.permute.xlu0 72
      %696 = vperm.xlu0 %695, %v485
      %v697 = vpop.permute.xlu0 %696
      %v699 = vmul.f32 %v618, %v697
      %v700 = vmul.f32 %v619, %v697
      %v701 = vmul.f32 %v620, %v697
      %v702 = vadd.f32 %v692, %v699
      %v703 = vadd.f32 %v693, %v700
      %v704 = vadd.f32 %v694, %v701
      %s705 = scalar_lea.vmem %s4, 1
      %v706 = vld [vmem:[%s705] ss:$8 sm:$0x3]
      %v708 = vlaneseq
      %v709 = vshrl.u32 %v708, 7
      %v710 = vsub.s32 0, %v709
      %v711 = vrot.slane %v706, %v710
      %v712 = vlaneseq
      %v713 = vshrl.u32 %v712, 7
      %v714 = vsub.s32 1, %v713
      %v715 = vrot.slane %v706, %v714
      %v718 = vmul.f32 %v479, %v711
      %v719 = vmul.f32 %v480, %v715
      %720 = vst [vmem:[#allocation2 + $0x8] sm:$0xff] %v718
      %721 = vst [vmem:[#allocation2 + $0x10] sm:$0xff] %v719
      %v722 = vld [vmem:[#allocation2] sm:$0xff]
      %v723 = vld [vmem:[#allocation2 + $0x8] sm:$0xff]
      %v724 = vld [vmem:[#allocation2 + $0x10] sm:$0xff]
      %725 = vset.pattern.permute.xlu0 1
      %726 = vperm.xlu0 %725, %v485
      %v727 = vpop.permute.xlu0 %726
      %v729 = vmul.f32 %v722, %v727
      %v730 = vmul.f32 %v723, %v727
      %v731 = vmul.f32 %v724, %v727
      %735 = vrot.lane.b32.xlu0 %v729, 127
      %v736 = vpop.permute.xlu0 %735
      %737 = vrot.lane.b32.xlu0 %v730, 127
      %v738 = vpop.permute.xlu0 %737
      %739 = vrot.lane.b32.xlu0 %v731, 127
      %v740 = vpop.permute.xlu0 %739
      %vm741 = vcmask 1039360
      %v742 = vsel %vm741, %v736, %v738
      %v743 = vsel %vm741, %v738, %v740
      %v747 = vadd.f32 %v702, %v742
      %v748 = vadd.f32 %v703, %v743
      %v749 = vadd.f32 %v704, %v740
      %751 = vset.pattern.permute.xlu0 10
      %752 = vperm.xlu0 %751, %v483
      %v753 = vpop.permute.xlu0 %752
      %v755 = vmul.f32 %v722, %v753
      %v756 = vmul.f32 %v723, %v753
      %v757 = vmul.f32 %v724, %v753
      %v758 = vadd.f32 %v755, 0.0
      %v759 = vadd.f32 %v756, 0.0
      %v760 = vadd.f32 %v757, 0.0
      %761 = vset.pattern.permute.xlu0 10
      %762 = vperm.xlu0 %761, %v485
      %v763 = vpop.permute.xlu0 %762
      %v765 = vmul.f32 %v722, %v763
      %v766 = vmul.f32 %v723, %v763
      %v767 = vmul.f32 %v724, %v763
      %771 = vrot.lane.b32.xlu0 %v765, 111
      %v772 = vpop.permute.xlu0 %771
      %773 = vrot.lane.b32.xlu0 %v766, 111
      %v774 = vpop.permute.xlu0 %773
      %775 = vrot.lane.b32.xlu0 %v767, 111
      %v776 = vpop.permute.xlu0 %775
      %vm777 = vcmask 908288
      %v778 = vsel %vm777, %v772, %v774
      %v779 = vsel %vm777, %v774, %v776
      %v783 = vadd.f32 %v747, %v778
      %v784 = vadd.f32 %v748, %v779
      %v785 = vadd.f32 %v749, %v776
      %786 = vset.pattern.permute.xlu0 19
      %787 = vperm.xlu0 %786, %v483
      %v788 = vpop.permute.xlu0 %787
      %v790 = vmul.f32 %v722, %v788
      %v791 = vmul.f32 %v723, %v788
      %v792 = vmul.f32 %v724, %v788
      %796 = vrot.lane.b32.xlu0 %v790, 112
      %v797 = vpop.permute.xlu0 %796
      %798 = vrot.lane.b32.xlu0 %v791, 112
      %v799 = vpop.permute.xlu0 %798
      %800 = vrot.lane.b32.xlu0 %v792, 112
      %v801 = vpop.permute.xlu0 %800
      %v802 = vsel %vm534, %v797, %v799
      %v803 = vsel %vm534, %v799, %v801
      %v807 = vadd.f32 %v758, %v802
      %v808 = vadd.f32 %v759, %v803
      %v809 = vadd.f32 %v760, %v801
      %810 = vset.pattern.permute.xlu0 19
      %811 = vperm.xlu0 %810, %v485
      %v812 = vpop.permute.xlu0 %811
      %v814 = vmul.f32 %v722, %v812
      %v815 = vmul.f32 %v723, %v812
      %v816 = vmul.f32 %v724, %v812
      %820 = vrot.lane.b32.xlu0 %v814, 95
      %v821 = vpop.permute.xlu0 %820
      %822 = vrot.lane.b32.xlu0 %v815, 95
      %v823 = vpop.permute.xlu0 %822
      %824 = vrot.lane.b32.xlu0 %v816, 95
      %v825 = vpop.permute.xlu0 %824
      %vm826 = vcmask 777216
      %v827 = vsel %vm826, %v821, %v823
      %v828 = vsel %vm826, %v823, %v825
      %v832 = vadd.f32 %v783, %v827
      %v833 = vadd.f32 %v784, %v828
      %v834 = vadd.f32 %v785, %v825
      %835 = vset.pattern.permute.xlu0 28
      %836 = vperm.xlu0 %835, %v483
      %v837 = vpop.permute.xlu0 %836
      %v839 = vmul.f32 %v722, %v837
      %v840 = vmul.f32 %v723, %v837
      %v841 = vmul.f32 %v724, %v837
      %845 = vrot.lane.b32.xlu0 %v839, 96
      %v846 = vpop.permute.xlu0 %845
      %847 = vrot.lane.b32.xlu0 %v840, 96
      %v848 = vpop.permute.xlu0 %847
      %849 = vrot.lane.b32.xlu0 %v841, 96
      %v850 = vpop.permute.xlu0 %849
      %v851 = vsel %vm559, %v846, %v848
      %v852 = vsel %vm559, %v848, %v850
      %v856 = vadd.f32 %v807, %v851
      %v857 = vadd.f32 %v808, %v852
      %v858 = vadd.f32 %v809, %v850
      %859 = vset.pattern.permute.xlu0 28
      %860 = vperm.xlu0 %859, %v485
      %v861 = vpop.permute.xlu0 %860
      %v863 = vmul.f32 %v722, %v861
      %v864 = vmul.f32 %v723, %v861
      %v865 = vmul.f32 %v724, %v861
      %869 = vrot.lane.b32.xlu0 %v863, 79
      %v870 = vpop.permute.xlu0 %869
      %871 = vrot.lane.b32.xlu0 %v864, 79
      %v872 = vpop.permute.xlu0 %871
      %873 = vrot.lane.b32.xlu0 %v865, 79
      %v874 = vpop.permute.xlu0 %873
      %vm875 = vcmask 646144
      %v876 = vsel %vm875, %v870, %v872
      %v877 = vsel %vm875, %v872, %v874
      %v881 = vadd.f32 %v832, %v876
      %v882 = vadd.f32 %v833, %v877
      %v883 = vadd.f32 %v834, %v874
      %884 = vset.pattern.permute.xlu0 37
      %885 = vperm.xlu0 %884, %v483
      %v886 = vpop.permute.xlu0 %885
      %v888 = vmul.f32 %v722, %v886
      %v889 = vmul.f32 %v723, %v886
      %v890 = vmul.f32 %v724, %v886
      %894 = vrot.lane.b32.xlu0 %v888, 80
      %v895 = vpop.permute.xlu0 %894
      %896 = vrot.lane.b32.xlu0 %v889, 80
      %v897 = vpop.permute.xlu0 %896
      %898 = vrot.lane.b32.xlu0 %v890, 80
      %v899 = vpop.permute.xlu0 %898
      %v900 = vsel %vm584, %v895, %v897
      %v901 = vsel %vm584, %v897, %v899
      %v905 = vadd.f32 %v856, %v900
      %v906 = vadd.f32 %v857, %v901
      %v907 = vadd.f32 %v858, %v899
      %908 = vset.pattern.permute.xlu0 37
      %909 = vperm.xlu0 %908, %v485
      %v910 = vpop.permute.xlu0 %909
      %v912 = vmul.f32 %v722, %v910
      %v913 = vmul.f32 %v723, %v910
      %v914 = vmul.f32 %v724, %v910
      %918 = vrot.lane.b32.xlu0 %v912, 63
      %v919 = vpop.permute.xlu0 %918
      %920 = vrot.lane.b32.xlu0 %v913, 63
      %v921 = vpop.permute.xlu0 %920
      %922 = vrot.lane.b32.xlu0 %v914, 63
      %v923 = vpop.permute.xlu0 %922
      %vm924 = vcmask 515072
      %v925 = vsel %vm924, %v919, %v921
      %v926 = vsel %vm924, %v921, %v923
      %v930 = vadd.f32 %v881, %v925
      %v931 = vadd.f32 %v882, %v926
      %v932 = vadd.f32 %v883, %v923
      %v933 = vld [vmem:[#allocation2 + $0x8] sm:$0xff]
      %v934 = vld [vmem:[#allocation2 + $0x10] sm:$0xff]
      %v935 = vld [vmem:[#allocation2 + $0x18] sm:$0xff]
      %936 = vset.pattern.permute.xlu0 46
      %937 = vperm.xlu0 %936, %v483
      %v938 = vpop.permute.xlu0 %937
      %v940 = vmul.f32 %v933, %v938
      %v941 = vmul.f32 %v934, %v938
      %v942 = vmul.f32 %v935, %v938
      %946 = vrot.lane.b32.xlu0 %v940, 64
      %v947 = vpop.permute.xlu0 %946
      %948 = vrot.lane.b32.xlu0 %v941, 64
      %v949 = vpop.permute.xlu0 %948
      %950 = vrot.lane.b32.xlu0 %v942, 64
      %v951 = vpop.permute.xlu0 %950
      %v952 = vsel %vm609, %v947, %v949
      %v953 = vsel %vm609, %v949, %v951
      %v957 = vadd.f32 %v905, %v947
      %v958 = vadd.f32 %v906, %v952
      %v959 = vadd.f32 %v907, %v953
      %960 = vset.pattern.permute.xlu0 46
      %961 = vperm.xlu0 %960, %v485
      %v962 = vpop.permute.xlu0 %961
      %v964 = vmul.f32 %v933, %v962
      %v965 = vmul.f32 %v934, %v962
      %v966 = vmul.f32 %v935, %v962
      %970 = vrot.lane.b32.xlu0 %v964, 47
      %v971 = vpop.permute.xlu0 %970
      %972 = vrot.lane.b32.xlu0 %v965, 47
      %v973 = vpop.permute.xlu0 %972
      %974 = vrot.lane.b32.xlu0 %v966, 47
      %v975 = vpop.permute.xlu0 %974
      %vm976 = vcmask 384000
      %v977 = vsel %vm976, %v971, %v973
      %v978 = vsel %vm976, %v973, %v975
      %v982 = vadd.f32 %v930, %v971
      %v983 = vadd.f32 %v931, %v977
      %v984 = vadd.f32 %v932, %v978
      %985 = vset.pattern.permute.xlu0 55
      %986 = vperm.xlu0 %985, %v483
      %v987 = vpop.permute.xlu0 %986
      %v989 = vmul.f32 %v933, %v987
      %v990 = vmul.f32 %v934, %v987
      %v991 = vmul.f32 %v935, %v987
      %995 = vrot.lane.b32.xlu0 %v989, 48
      %v996 = vpop.permute.xlu0 %995
      %997 = vrot.lane.b32.xlu0 %v990, 48
      %v998 = vpop.permute.xlu0 %997
      %999 = vrot.lane.b32.xlu0 %v991, 48
      %v1000 = vpop.permute.xlu0 %999
      %v1001 = vsel %vm637, %v996, %v998
      %v1002 = vsel %vm637, %v998, %v1000
      %v1006 = vadd.f32 %v957, %v996
      %v1007 = vadd.f32 %v958, %v1001
      %v1008 = vadd.f32 %v959, %v1002
      %1009 = vset.pattern.permute.xlu0 55
      %1010 = vperm.xlu0 %1009, %v485
      %v1011 = vpop.permute.xlu0 %1010
      %v1013 = vmul.f32 %v933, %v1011
      %v1014 = vmul.f32 %v934, %v1011
      %v1015 = vmul.f32 %v935, %v1011
      %1019 = vrot.lane.b32.xlu0 %v1013, 31
      %v1020 = vpop.permute.xlu0 %1019
      %1021 = vrot.lane.b32.xlu0 %v1014, 31
      %v1022 = vpop.permute.xlu0 %1021
      %1023 = vrot.lane.b32.xlu0 %v1015, 31
      %v1024 = vpop.permute.xlu0 %1023
      %vm1025 = vcmask 252928
      %v1026 = vsel %vm1025, %v1020, %v1022
      %v1027 = vsel %vm1025, %v1022, %v1024
      %v1031 = vadd.f32 %v982, %v1020
      %v1032 = vadd.f32 %v983, %v1026
      %v1033 = vadd.f32 %v984, %v1027
      %1034 = vset.pattern.permute.xlu0 64
      %1035 = vperm.xlu0 %1034, %v483
      %v1036 = vpop.permute.xlu0 %1035
      %v1038 = vmul.f32 %v933, %v1036
      %v1039 = vmul.f32 %v934, %v1036
      %v1040 = vmul.f32 %v935, %v1036
      %1044 = vrot.lane.b32.xlu0 %v1038, 32
      %v1045 = vpop.permute.xlu0 %1044
      %1046 = vrot.lane.b32.xlu0 %v1039, 32
      %v1047 = vpop.permute.xlu0 %1046
      %1048 = vrot.lane.b32.xlu0 %v1040, 32
      %v1049 = vpop.permute.xlu0 %1048
      %v1050 = vsel %vm662, %v1045, %v1047
      %v1051 = vsel %vm662, %v1047, %v1049
      %v1055 = vadd.f32 %v1006, %v1045
      %v1056 = vadd.f32 %v1007, %v1050
      %v1057 = vadd.f32 %v1008, %v1051
      %1058 = vset.pattern.permute.xlu0 64
      %1059 = vperm.xlu0 %1058, %v485
      %v1060 = vpop.permute.xlu0 %1059
      %v1062 = vmul.f32 %v933, %v1060
      %v1063 = vmul.f32 %v934, %v1060
      %v1064 = vmul.f32 %v935, %v1060
      %1068 = vrot.lane.b32.xlu0 %v1062, 15
      %v1069 = vpop.permute.xlu0 %1068
      %1070 = vrot.lane.b32.xlu0 %v1063, 15
      %v1071 = vpop.permute.xlu0 %1070
      %1072 = vrot.lane.b32.xlu0 %v1064, 15
      %v1073 = vpop.permute.xlu0 %1072
      %vm1074 = vcmask 121856
      %v1075 = vsel %vm1074, %v1069, %v1071
      %v1076 = vsel %vm1074, %v1071, %v1073
      %v1080 = vadd.f32 %v1031, %v1069
      %v1081 = vadd.f32 %v1032, %v1075
      %v1082 = vadd.f32 %v1033, %v1076
      %1083 = vset.pattern.permute.xlu0 73
      %1084 = vperm.xlu0 %1083, %v485
      %v1085 = vpop.permute.xlu0 %1084
      %v1087 = vmul.f32 %v933, %v1085
      %v1088 = vmul.f32 %v934, %v1085
      %v1089 = vmul.f32 %v935, %v1085
      %1093 = vrot.lane.b32.xlu0 %v1087, 127
      %v1094 = vpop.permute.xlu0 %1093
      %1095 = vrot.lane.b32.xlu0 %v1088, 127
      %v1096 = vpop.permute.xlu0 %1095
      %1097 = vrot.lane.b32.xlu0 %v1089, 127
      %v1098 = vpop.permute.xlu0 %1097
      %v1099 = vsel %vm741, %v1094, %v1096
      %v1100 = vsel %vm741, %v1096, %v1098
      %v1104 = vadd.f32 %v1080, %v1099
      %v1105 = vadd.f32 %v1081, %v1100
      %v1106 = vadd.f32 %v1082, %v1098
      %s1107 = scalar_lea.vmem %s4, 2
      %v1108 = vld [vmem:[%s1107] ss:$8 sm:$0x3]
      %v1110 = vlaneseq
      %v1111 = vshrl.u32 %v1110, 7
      %v1112 = vsub.s32 0, %v1111
      %v1113 = vrot.slane %v1108, %v1112
      %v1114 = vlaneseq
      %v1115 = vshrl.u32 %v1114, 7
      %v1116 = vsub.s32 1, %v1115
      %v1117 = vrot.slane %v1108, %v1116
      %v1120 = vmul.f32 %v479, %v1113
      %v1121 = vmul.f32 %v480, %v1117
      %1122 = vst [vmem:[#allocation2 + $0x8] sm:$0xff] %v1120
      %1123 = vst [vmem:[#allocation2 + $0x10] sm:$0xff] %v1121
      %v1124 = vld [vmem:[#allocation2] sm:$0xff]
      %v1125 = vld [vmem:[#allocation2 + $0x8] sm:$0xff]
      %v1126 = vld [vmem:[#allocation2 + $0x10] sm:$0xff]
      %1127 = vset.pattern.permute.xlu0 2
      %1128 = vperm.xlu0 %1127, %v485
      %v1129 = vpop.permute.xlu0 %1128
      %v1131 = vmul.f32 %v1124, %v1129
      %v1132 = vmul.f32 %v1125, %v1129
      %v1133 = vmul.f32 %v1126, %v1129
      %1137 = vrot.lane.b32.xlu0 %v1131, 126
      %v1138 = vpop.permute.xlu0 %1137
      %1139 = vrot.lane.b32.xlu0 %v1132, 126
      %v1140 = vpop.permute.xlu0 %1139
      %1141 = vrot.lane.b32.xlu0 %v1133, 126
      %v1142 = vpop.permute.xlu0 %1141
      %vm1143 = vcmask 1031168
      %v1144 = vsel %vm1143, %v1138, %v1140
      %v1145 = vsel %vm1143, %v1140, %v1142
      %v1149 = vadd.f32 %v1104, %v1144
      %v1150 = vadd.f32 %v1105, %v1145
      %v1151 = vadd.f32 %v1106, %v1142
      %1152 = vset.pattern.permute.xlu0 11
      %1153 = vperm.xlu0 %1152, %v483
      %v1154 = vpop.permute.xlu0 %1153
      %v1156 = vmul.f32 %v1124, %v1154
      %v1157 = vmul.f32 %v1125, %v1154
      %v1158 = vmul.f32 %v1126, %v1154
      %1162 = vrot.lane.b32.xlu0 %v1156, 127
      %v1163 = vpop.permute.xlu0 %1162
      %1164 = vrot.lane.b32.xlu0 %v1157, 127
      %v1165 = vpop.permute.xlu0 %1164
      %1166 = vrot.lane.b32.xlu0 %v1158, 127
      %v1167 = vpop.permute.xlu0 %1166
      %v1168 = vsel %vm741, %v1163, %v1165
      %v1169 = vsel %vm741, %v1165, %v1167
      %v1173 = vadd.f32 %v1055, %v1168
      %v1174 = vadd.f32 %v1056, %v1169
      %v1175 = vadd.f32 %v1057, %v1167
      %1176 = vset.pattern.permute.xlu0 11
      %1177 = vperm.xlu0 %1176, %v485
      %v1178 = vpop.permute.xlu0 %1177
      %v1180 = vmul.f32 %v1124, %v1178
      %v1181 = vmul.f32 %v1125, %v1178
      %v1182 = vmul.f32 %v1126, %v1178
      %1186 = vrot.lane.b32.xlu0 %v1180, 110
      %v1187 = vpop.permute.xlu0 %1186
      %1188 = vrot.lane.b32.xlu0 %v1181, 110
      %v1189 = vpop.permute.xlu0 %1188
      %1190 = vrot.lane.b32.xlu0 %v1182, 110
      %v1191 = vpop.permute.xlu0 %1190
      %vm1192 = vcmask 900096
      %v1193 = vsel %vm1192, %v1187, %v1189
      %v1194 = vsel %vm1192, %v1189, %v1191
      %v1198 = vadd.f32 %v1149, %v1193
      %v1199 = vadd.f32 %v1150, %v1194
      %v1200 = vadd.f32 %v1151, %v1191
      %1201 = vset.pattern.permute.xlu0 20
      %1202 = vperm.xlu0 %1201, %v483
      %v1203 = vpop.permute.xlu0 %1202
      %v1205 = vmul.f32 %v1124, %v1203
      %v1206 = vmul.f32 %v1125, %v1203
      %v1207 = vmul.f32 %v1126, %v1203
      %1211 = vrot.lane.b32.xlu0 %v1205, 111
      %v1212 = vpop.permute.xlu0 %1211
      %1213 = vrot.lane.b32.xlu0 %v1206, 111
      %v1214 = vpop.permute.xlu0 %1213
      %1215 = vrot.lane.b32.xlu0 %v1207, 111
      %v1216 = vpop.permute.xlu0 %1215
      %v1217 = vsel %vm777, %v1212, %v1214
      %v1218 = vsel %vm777, %v1214, %v1216
      %v1222 = vadd.f32 %v1173, %v1217
      %v1223 = vadd.f32 %v1174, %v1218
      %v1224 = vadd.f32 %v1175, %v1216
      %1225 = vset.pattern.permute.xlu0 20
      %1226 = vperm.xlu0 %1225, %v485
      %v1227 = vpop.permute.xlu0 %1226
      %v1229 = vmul.f32 %v1124, %v1227
      %v1230 = vmul.f32 %v1125, %v1227
      %v1231 = vmul.f32 %v1126, %v1227
      %1235 = vrot.lane.b32.xlu0 %v1229, 94
      %v1236 = vpop.permute.xlu0 %1235
      %1237 = vrot.lane.b32.xlu0 %v1230, 94
      %v1238 = vpop.permute.xlu0 %1237
      %1239 = vrot.lane.b32.xlu0 %v1231, 94
      %v1240 = vpop.permute.xlu0 %1239
      %vm1241 = vcmask 769024
      %v1242 = vsel %vm1241, %v1236, %v1238
      %v1243 = vsel %vm1241, %v1238, %v1240
      %v1247 = vadd.f32 %v1198, %v1242
      %v1248 = vadd.f32 %v1199, %v1243
      %v1249 = vadd.f32 %v1200, %v1240
      %1251 = vset.pattern.permute.xlu0 20
      %1252 = vperm.xlu0 %1251, %v487
      %v1253 = vpop.permute.xlu0 %1252
      %v1255 = vmul.f32 %v1124, %v1253
      %v1256 = vmul.f32 %v1125, %v1253
      %v1257 = vmul.f32 %v1126, %v1253
      %v1258 = vadd.f32 %v1255, 0.0
      %v1259 = vadd.f32 %v1256, 0.0
      %v1260 = vadd.f32 %v1257, 0.0
      %1261 = vset.pattern.permute.xlu0 29
      %1262 = vperm.xlu0 %1261, %v483
      %v1263 = vpop.permute.xlu0 %1262
      %v1265 = vmul.f32 %v1124, %v1263
      %v1266 = vmul.f32 %v1125, %v1263
      %v1267 = vmul.f32 %v1126, %v1263
      %1271 = vrot.lane.b32.xlu0 %v1265, 95
      %v1272 = vpop.permute.xlu0 %1271
      %1273 = vrot.lane.b32.xlu0 %v1266, 95
      %v1274 = vpop.permute.xlu0 %1273
      %1275 = vrot.lane.b32.xlu0 %v1267, 95
      %v1276 = vpop.permute.xlu0 %1275
      %v1277 = vsel %vm826, %v1272, %v1274
      %v1278 = vsel %vm826, %v1274, %v1276
      %v1282 = vadd.f32 %v1222, %v1277
      %v1283 = vadd.f32 %v1223, %v1278
      %v1284 = vadd.f32 %v1224, %v1276
      %1285 = vset.pattern.permute.xlu0 29
      %1286 = vperm.xlu0 %1285, %v485
      %v1287 = vpop.permute.xlu0 %1286
      %v1289 = vmul.f32 %v1124, %v1287
      %v1290 = vmul.f32 %v1125, %v1287
      %v1291 = vmul.f32 %v1126, %v1287
      %1295 = vrot.lane.b32.xlu0 %v1289, 78
      %v1296 = vpop.permute.xlu0 %1295
      %1297 = vrot.lane.b32.xlu0 %v1290, 78
      %v1298 = vpop.permute.xlu0 %1297
      %1299 = vrot.lane.b32.xlu0 %v1291, 78
      %v1300 = vpop.permute.xlu0 %1299
      %vm1301 = vcmask 637952
      %v1302 = vsel %vm1301, %v1296, %v1298
      %v1303 = vsel %vm1301, %v1298, %v1300
      %v1307 = vadd.f32 %v1247, %v1302
      %v1308 = vadd.f32 %v1248, %v1303
      %v1309 = vadd.f32 %v1249, %v1300
      %1310 = vset.pattern.permute.xlu0 29
      %1311 = vperm.xlu0 %1310, %v487
      %v1312 = vpop.permute.xlu0 %1311
      %v1314 = vmul.f32 %v1124, %v1312
      %v1315 = vmul.f32 %v1125, %v1312
      %v1316 = vmul.f32 %v1126, %v1312
      %1320 = vrot.lane.b32.xlu0 %v1314, 112
      %v1321 = vpop.permute.xlu0 %1320
      %1322 = vrot.lane.b32.xlu0 %v1315, 112
      %v1323 = vpop.permute.xlu0 %1322
      %1324 = vrot.lane.b32.xlu0 %v1316, 112
      %v1325 = vpop.permute.xlu0 %1324
      %v1326 = vsel %vm534, %v1321, %v1323
      %v1327 = vsel %vm534, %v1323, %v1325
      %v1331 = vadd.f32 %v1258, %v1326
      %v1332 = vadd.f32 %v1259, %v1327
      %v1333 = vadd.f32 %v1260, %v1325
      %1334 = vset.pattern.permute.xlu0 38
      %1335 = vperm.xlu0 %1334, %v483
      %v1336 = vpop.permute.xlu0 %1335
      %v1338 = vmul.f32 %v1124, %v1336
      %v1339 = vmul.f32 %v1125, %v1336
      %v1340 = vmul.f32 %v1126, %v1336
      %1344 = vrot.lane.b32.xlu0 %v1338, 79
      %v1345 = vpop.permute.xlu0 %1344
      %1346 = vrot.lane.b32.xlu0 %v1339, 79
      %v1347 = vpop.permute.xlu0 %1346
      %1348 = vrot.lane.b32.xlu0 %v1340, 79
      %v1349 = vpop.permute.xlu0 %1348
      %v1350 = vsel %vm875, %v1345, %v1347
      %v1351 = vsel %vm875, %v1347, %v1349
      %v1355 = vadd.f32 %v1282, %v1350
      %v1356 = vadd.f32 %v1283, %v1351
      %v1357 = vadd.f32 %v1284, %v1349
      %1358 = vset.pattern.permute.xlu0 38
      %1359 = vperm.xlu0 %1358, %v485
      %v1360 = vpop.permute.xlu0 %1359
      %v1362 = vmul.f32 %v1124, %v1360
      %v1363 = vmul.f32 %v1125, %v1360
      %v1364 = vmul.f32 %v1126, %v1360
      %1368 = vrot.lane.b32.xlu0 %v1362, 62
      %v1369 = vpop.permute.xlu0 %1368
      %1370 = vrot.lane.b32.xlu0 %v1363, 62
      %v1371 = vpop.permute.xlu0 %1370
      %1372 = vrot.lane.b32.xlu0 %v1364, 62
      %v1373 = vpop.permute.xlu0 %1372
      %vm1374 = vcmask 506880
      %v1375 = vsel %vm1374, %v1369, %v1371
      %v1376 = vsel %vm1374, %v1371, %v1373
      %v1380 = vadd.f32 %v1307, %v1375
      %v1381 = vadd.f32 %v1308, %v1376
      %v1382 = vadd.f32 %v1309, %v1373
      %1383 = vset.pattern.permute.xlu0 38
      %1384 = vperm.xlu0 %1383, %v487
      %v1385 = vpop.permute.xlu0 %1384
      %v1387 = vmul.f32 %v1124, %v1385
      %v1388 = vmul.f32 %v1125, %v1385
      %v1389 = vmul.f32 %v1126, %v1385
      %1393 = vrot.lane.b32.xlu0 %v1387, 96
      %v1394 = vpop.permute.xlu0 %1393
      %1395 = vrot.lane.b32.xlu0 %v1388, 96
      %v1396 = vpop.permute.xlu0 %1395
      %1397 = vrot.lane.b32.xlu0 %v1389, 96
      %v1398 = vpop.permute.xlu0 %1397
      %v1399 = vsel %vm559, %v1394, %v1396
      %v1400 = vsel %vm559, %v1396, %v1398
      %v1404 = vadd.f32 %v1331, %v1399
      %v1405 = vadd.f32 %v1332, %v1400
      %v1406 = vadd.f32 %v1333, %v1398
      %v1407 = vld [vmem:[#allocation2 + $0x8] sm:$0xff]
      %v1408 = vld [vmem:[#allocation2 + $0x10] sm:$0xff]
      %v1409 = vld [vmem:[#allocation2 + $0x18] sm:$0xff]
      %1410 = vset.pattern.permute.xlu0 47
      %1411 = vperm.xlu0 %1410, %v483
      %v1412 = vpop.permute.xlu0 %1411
      %v1414 = vmul.f32 %v1407, %v1412
      %v1415 = vmul.f32 %v1408, %v1412
      %v1416 = vmul.f32 %v1409, %v1412
      %1420 = vrot.lane.b32.xlu0 %v1414, 63
      %v1421 = vpop.permute.xlu0 %1420
      %1422 = vrot.lane.b32.xlu0 %v1415, 63
      %v1423 = vpop.permute.xlu0 %1422
      %1424 = vrot.lane.b32.xlu0 %v1416, 63
      %v1425 = vpop.permute.xlu0 %1424
      %v1426 = vsel %vm924, %v1421, %v1423
      %v1427 = vsel %vm924, %v1423, %v1425
      %v1431 = vadd.f32 %v1355, %v1421
      %v1432 = vadd.f32 %v1356, %v1426
      %v1433 = vadd.f32 %v1357, %v1427
      %1434 = vset.pattern.permute.xlu0 47
      %1435 = vperm.xlu0 %1434, %v485
      %v1436 = vpop.permute.xlu0 %1435
      %v1438 = vmul.f32 %v1407, %v1436
      %v1439 = vmul.f32 %v1408, %v1436
      %v1440 = vmul.f32 %v1409, %v1436
      %1444 = vrot.lane.b32.xlu0 %v1438, 46
      %v1445 = vpop.permute.xlu0 %1444
      %1446 = vrot.lane.b32.xlu0 %v1439, 46
      %v1447 = vpop.permute.xlu0 %1446
      %1448 = vrot.lane.b32.xlu0 %v1440, 46
      %v1449 = vpop.permute.xlu0 %1448
      %vm1450 = vcmask 375808
      %v1451 = vsel %vm1450, %v1445, %v1447
      %v1452 = vsel %vm1450, %v1447, %v1449
      %v1456 = vadd.f32 %v1380, %v1445
      %v1457 = vadd.f32 %v1381, %v1451
      %v1458 = vadd.f32 %v1382, %v1452
      %1459 = vset.pattern.permute.xlu0 47
      %1460 = vperm.xlu0 %1459, %v487
      %v1461 = vpop.permute.xlu0 %1460
      %v1463 = vmul.f32 %v1407, %v1461
      %v1464 = vmul.f32 %v1408, %v1461
      %v1465 = vmul.f32 %v1409, %v1461
      %1469 = vrot.lane.b32.xlu0 %v1463, 80
      %v1470 = vpop.permute.xlu0 %1469
      %1471 = vrot.lane.b32.xlu0 %v1464, 80
      %v1472 = vpop.permute.xlu0 %1471
      %1473 = vrot.lane.b32.xlu0 %v1465, 80
      %v1474 = vpop.permute.xlu0 %1473
      %v1475 = vsel %vm584, %v1470, %v1472
      %v1476 = vsel %vm584, %v1472, %v1474
      %v1480 = vadd.f32 %v1404, %v1470
      %v1481 = vadd.f32 %v1405, %v1475
      %v1482 = vadd.f32 %v1406, %v1476
      %1483 = vset.pattern.permute.xlu0 56
      %1484 = vperm.xlu0 %1483, %v483
      %v1485 = vpop.permute.xlu0 %1484
      %v1487 = vmul.f32 %v1407, %v1485
      %v1488 = vmul.f32 %v1408, %v1485
      %v1489 = vmul.f32 %v1409, %v1485
      %1493 = vrot.lane.b32.xlu0 %v1487, 47
      %v1494 = vpop.permute.xlu0 %1493
      %1495 = vrot.lane.b32.xlu0 %v1488, 47
      %v1496 = vpop.permute.xlu0 %1495
      %1497 = vrot.lane.b32.xlu0 %v1489, 47
      %v1498 = vpop.permute.xlu0 %1497
      %v1499 = vsel %vm976, %v1494, %v1496
      %v1500 = vsel %vm976, %v1496, %v1498
      %v1504 = vadd.f32 %v1431, %v1494
      %v1505 = vadd.f32 %v1432, %v1499
      %v1506 = vadd.f32 %v1433, %v1500
      %1507 = vset.pattern.permute.xlu0 56
      %1508 = vperm.xlu0 %1507, %v485
      %v1509 = vpop.permute.xlu0 %1508
      %v1511 = vmul.f32 %v1407, %v1509
      %v1512 = vmul.f32 %v1408, %v1509
      %v1513 = vmul.f32 %v1409, %v1509
      %1517 = vrot.lane.b32.xlu0 %v1511, 30
      %v1518 = vpop.permute.xlu0 %1517
      %1519 = vrot.lane.b32.xlu0 %v1512, 30
      %v1520 = vpop.permute.xlu0 %1519
      %1521 = vrot.lane.b32.xlu0 %v1513, 30
      %v1522 = vpop.permute.xlu0 %1521
      %vm1523 = vcmask 244736
      %v1524 = vsel %vm1523, %v1518, %v1520
      %v1525 = vsel %vm1523, %v1520, %v1522
      %v1529 = vadd.f32 %v1456, %v1518
      %v1530 = vadd.f32 %v1457, %v1524
      %v1531 = vadd.f32 %v1458, %v1525
      %1532 = vset.pattern.permute.xlu0 56
      %1533 = vperm.xlu0 %1532, %v487
      %v1534 = vpop.permute.xlu0 %1533
      %v1536 = vmul.f32 %v1407, %v1534
      %v1537 = vmul.f32 %v1408, %v1534
      %v1538 = vmul.f32 %v1409, %v1534
      %1542 = vrot.lane.b32.xlu0 %v1536, 64
      %v1543 = vpop.permute.xlu0 %1542
      %1544 = vrot.lane.b32.xlu0 %v1537, 64
      %v1545 = vpop.permute.xlu0 %1544
      %1546 = vrot.lane.b32.xlu0 %v1538, 64
      %v1547 = vpop.permute.xlu0 %1546
      %v1548 = vsel %vm609, %v1543, %v1545
      %v1549 = vsel %vm609, %v1545, %v1547
      %v1553 = vadd.f32 %v1480, %v1543
      %v1554 = vadd.f32 %v1481, %v1548
      %v1555 = vadd.f32 %v1482, %v1549
      %1556 = vset.pattern.permute.xlu0 65
      %1557 = vperm.xlu0 %1556, %v483
      %v1558 = vpop.permute.xlu0 %1557
      %v1560 = vmul.f32 %v1407, %v1558
      %v1561 = vmul.f32 %v1408, %v1558
      %v1562 = vmul.f32 %v1409, %v1558
      %1566 = vrot.lane.b32.xlu0 %v1560, 31
      %v1567 = vpop.permute.xlu0 %1566
      %1568 = vrot.lane.b32.xlu0 %v1561, 31
      %v1569 = vpop.permute.xlu0 %1568
      %1570 = vrot.lane.b32.xlu0 %v1562, 31
      %v1571 = vpop.permute.xlu0 %1570
      %v1572 = vsel %vm1025, %v1567, %v1569
      %v1573 = vsel %vm1025, %v1569, %v1571
      %v1577 = vadd.f32 %v1504, %v1567
      %v1578 = vadd.f32 %v1505, %v1572
      %v1579 = vadd.f32 %v1506, %v1573
      %1580 = vset.pattern.permute.xlu0 65
      %1581 = vperm.xlu0 %1580, %v485
      %v1582 = vpop.permute.xlu0 %1581
      %v1584 = vmul.f32 %v1407, %v1582
      %v1585 = vmul.f32 %v1408, %v1582
      %v1586 = vmul.f32 %v1409, %v1582
      %1590 = vrot.lane.b32.xlu0 %v1584, 14
      %v1591 = vpop.permute.xlu0 %1590
      %1592 = vrot.lane.b32.xlu0 %v1585, 14
      %v1593 = vpop.permute.xlu0 %1592
      %1594 = vrot.lane.b32.xlu0 %v1586, 14
      %v1595 = vpop.permute.xlu0 %1594
      %vm1596 = vcmask 113664
      %v1597 = vsel %vm1596, %v1591, %v1593
      %v1598 = vsel %vm1596, %v1593, %v1595
      %v1602 = vadd.f32 %v1529, %v1591
      %v1603 = vadd.f32 %v1530, %v1597
      %v1604 = vadd.f32 %v1531, %v1598
      %1605 = vset.pattern.permute.xlu0 74
      %1606 = vperm.xlu0 %1605, %v485
      %v1607 = vpop.permute.xlu0 %1606
      %v1609 = vmul.f32 %v1407, %v1607
      %v1610 = vmul.f32 %v1408, %v1607
      %v1611 = vmul.f32 %v1409, %v1607
      %1615 = vrot.lane.b32.xlu0 %v1609, 126
      %v1616 = vpop.permute.xlu0 %1615
      %1617 = vrot.lane.b32.xlu0 %v1610, 126
      %v1618 = vpop.permute.xlu0 %1617
      %1619 = vrot.lane.b32.xlu0 %v1611, 126
      %v1620 = vpop.permute.xlu0 %1619
      %v1621 = vsel %vm1143, %v1616, %v1618
      %v1622 = vsel %vm1143, %v1618, %v1620
      %v1626 = vadd.f32 %v1602, %v1621
      %v1627 = vadd.f32 %v1603, %v1622
      %v1628 = vadd.f32 %v1604, %v1620
      %s1629 = scalar_lea.vmem %s4, 3
      %v1630 = vld [vmem:[%s1629] ss:$8 sm:$0x3]
      %v1632 = vlaneseq
      %v1633 = vshrl.u32 %v1632, 7
      %v1634 = vsub.s32 0, %v1633
      %v1635 = vrot.slane %v1630, %v1634
      %v1636 = vlaneseq
      %v1637 = vshrl.u32 %v1636, 7
      %v1638 = vsub.s32 1, %v1637
      %v1639 = vrot.slane %v1630, %v1638
      %v1642 = vmul.f32 %v479, %v1635
      %v1643 = vmul.f32 %v480, %v1639
      %1644 = vst [vmem:[#allocation2 + $0x8] sm:$0xff] %v1642
      %1645 = vst [vmem:[#allocation2 + $0x10] sm:$0xff] %v1643
      %v1646 = vld [vmem:[#allocation2] sm:$0xff]
      %v1647 = vld [vmem:[#allocation2 + $0x8] sm:$0xff]
      %v1648 = vld [vmem:[#allocation2 + $0x10] sm:$0xff]
      %1649 = vset.pattern.permute.xlu0 3
      %1650 = vperm.xlu0 %1649, %v485
      %v1651 = vpop.permute.xlu0 %1650
      %v1653 = vmul.f32 %v1646, %v1651
      %v1654 = vmul.f32 %v1647, %v1651
      %v1655 = vmul.f32 %v1648, %v1651
      %1659 = vrot.lane.b32.xlu0 %v1653, 125
      %v1660 = vpop.permute.xlu0 %1659
      %1661 = vrot.lane.b32.xlu0 %v1654, 125
      %v1662 = vpop.permute.xlu0 %1661
      %1663 = vrot.lane.b32.xlu0 %v1655, 125
      %v1664 = vpop.permute.xlu0 %1663
      %vm1665 = vcmask 1022976
      %v1666 = vsel %vm1665, %v1660, %v1662
      %v1667 = vsel %vm1665, %v1662, %v1664
      %v1671 = vadd.f32 %v1626, %v1666
      %v1672 = vadd.f32 %v1627, %v1667
      %v1673 = vadd.f32 %v1628, %v1664
      %1674 = vset.pattern.permute.xlu0 12
      %1675 = vperm.xlu0 %1674, %v483
      %v1676 = vpop.permute.xlu0 %1675
      %v1678 = vmul.f32 %v1646, %v1676
      %v1679 = vmul.f32 %v1647, %v1676
      %v1680 = vmul.f32 %v1648, %v1676
      %1684 = vrot.lane.b32.xlu0 %v1678, 126
      %v1685 = vpop.permute.xlu0 %1684
      %1686 = vrot.lane.b32.xlu0 %v1679, 126
      %v1687 = vpop.permute.xlu0 %1686
      %1688 = vrot.lane.b32.xlu0 %v1680, 126
      %v1689 = vpop.permute.xlu0 %1688
      %v1690 = vsel %vm1143, %v1685, %v1687
      %v1691 = vsel %vm1143, %v1687, %v1689
      %v1695 = vadd.f32 %v1577, %v1690
      %v1696 = vadd.f32 %v1578, %v1691
      %v1697 = vadd.f32 %v1579, %v1689
      %1698 = vset.pattern.permute.xlu0 12
      %1699 = vperm.xlu0 %1698, %v485
      %v1700 = vpop.permute.xlu0 %1699
      %v1702 = vmul.f32 %v1646, %v1700
      %v1703 = vmul.f32 %v1647, %v1700
      %v1704 = vmul.f32 %v1648, %v1700
      %1708 = vrot.lane.b32.xlu0 %v1702, 109
      %v1709 = vpop.permute.xlu0 %1708
      %1710 = vrot.lane.b32.xlu0 %v1703, 109
      %v1711 = vpop.permute.xlu0 %1710
      %1712 = vrot.lane.b32.xlu0 %v1704, 109
      %v1713 = vpop.permute.xlu0 %1712
      %vm1714 = vcmask 891904
      %v1715 = vsel %vm1714, %v1709, %v1711
      %v1716 = vsel %vm1714, %v1711, %v1713
      %v1720 = vadd.f32 %v1671, %v1715
      %v1721 = vadd.f32 %v1672, %v1716
      %v1722 = vadd.f32 %v1673, %v1713
      %1723 = vset.pattern.permute.xlu0 21
      %1724 = vperm.xlu0 %1723, %v483
      %v1725 = vpop.permute.xlu0 %1724
      %v1727 = vmul.f32 %v1646, %v1725
      %v1728 = vmul.f32 %v1647, %v1725
      %v1729 = vmul.f32 %v1648, %v1725
      %1733 = vrot.lane.b32.xlu0 %v1727, 110
      %v1734 = vpop.permute.xlu0 %1733
      %1735 = vrot.lane.b32.xlu0 %v1728, 110
      %v1736 = vpop.permute.xlu0 %1735
      %1737 = vrot.lane.b32.xlu0 %v1729, 110
      %v1738 = vpop.permute.xlu0 %1737
      %v1739 = vsel %vm1192, %v1734, %v1736
      %v1740 = vsel %vm1192, %v1736, %v1738
      %v1744 = vadd.f32 %v1695, %v1739
      %v1745 = vadd.f32 %v1696, %v1740
      %v1746 = vadd.f32 %v1697, %v1738
      %1747 = vset.pattern.permute.xlu0 21
      %1748 = vperm.xlu0 %1747, %v485
      %v1749 = vpop.permute.xlu0 %1748
      %v1751 = vmul.f32 %v1646, %v1749
      %v1752 = vmul.f32 %v1647, %v1749
      %v1753 = vmul.f32 %v1648, %v1749
      %1757 = vrot.lane.b32.xlu0 %v1751, 93
      %v1758 = vpop.permute.xlu0 %1757
      %1759 = vrot.lane.b32.xlu0 %v1752, 93
      %v1760 = vpop.permute.xlu0 %1759
      %1761 = vrot.lane.b32.xlu0 %v1753, 93
      %v1762 = vpop.permute.xlu0 %1761
      %vm1763 = vcmask 760832
      %v1764 = vsel %vm1763, %v1758, %v1760
      %v1765 = vsel %vm1763, %v1760, %v1762
      %v1769 = vadd.f32 %v1720, %v1764
      %v1770 = vadd.f32 %v1721, %v1765
      %v1771 = vadd.f32 %v1722, %v1762
      %1772 = vset.pattern.permute.xlu0 21
      %1773 = vperm.xlu0 %1772, %v487
      %v1774 = vpop.permute.xlu0 %1773
      %v1776 = vmul.f32 %v1646, %v1774
      %v1777 = vmul.f32 %v1647, %v1774
      %v1778 = vmul.f32 %v1648, %v1774
      %1782 = vrot.lane.b32.xlu0 %v1776, 127
      %v1783 = vpop.permute.xlu0 %1782
      %1784 = vrot.lane.b32.xlu0 %v1777, 127
      %v1785 = vpop.permute.xlu0 %1784
      %1786 = vrot.lane.b32.xlu0 %v1778, 127
      %v1787 = vpop.permute.xlu0 %1786
      %v1788 = vsel %vm741, %v1783, %v1785
      %v1789 = vsel %vm741, %v1785, %v1787
      %v1793 = vadd.f32 %v1553, %v1788
      %v1794 = vadd.f32 %v1554, %v1789
      %v1795 = vadd.f32 %v1555, %v1787
      %1796 = vset.pattern.permute.xlu0 30
      %1797 = vperm.xlu0 %1796, %v483
      %v1798 = vpop.permute.xlu0 %1797
      %v1800 = vmul.f32 %v1646, %v1798
      %v1801 = vmul.f32 %v1647, %v1798
      %v1802 = vmul.f32 %v1648, %v1798
      %1806 = vrot.lane.b32.xlu0 %v1800, 94
      %v1807 = vpop.permute.xlu0 %1806
      %1808 = vrot.lane.b32.xlu0 %v1801, 94
      %v1809 = vpop.permute.xlu0 %1808
      %1810 = vrot.lane.b32.xlu0 %v1802, 94
      %v1811 = vpop.permute.xlu0 %1810
      %v1812 = vsel %vm1241, %v1807, %v1809
      %v1813 = vsel %vm1241, %v1809, %v1811
      %v1817 = vadd.f32 %v1744, %v1812
      %v1818 = vadd.f32 %v1745, %v1813
      %v1819 = vadd.f32 %v1746, %v1811
      %1820 = vset.pattern.permute.xlu0 30
      %1821 = vperm.xlu0 %1820, %v485
      %v1822 = vpop.permute.xlu0 %1821
      %v1824 = vmul.f32 %v1646, %v1822
      %v1825 = vmul.f32 %v1647, %v1822
      %v1826 = vmul.f32 %v1648, %v1822
      %1830 = vrot.lane.b32.xlu0 %v1824, 77
      %v1831 = vpop.permute.xlu0 %1830
      %1832 = vrot.lane.b32.xlu0 %v1825, 77
      %v1833 = vpop.permute.xlu0 %1832
      %1834 = vrot.lane.b32.xlu0 %v1826, 77
      %v1835 = vpop.permute.xlu0 %1834
      %vm1836 = vcmask 629760
      %v1837 = vsel %vm1836, %v1831, %v1833
      %v1838 = vsel %vm1836, %v1833, %v1835
      %v1842 = vadd.f32 %v1769, %v1837
      %v1843 = vadd.f32 %v1770, %v1838
      %v1844 = vadd.f32 %v1771, %v1835
      %1845 = vset.pattern.permute.xlu0 30
      %1846 = vperm.xlu0 %1845, %v487
      %v1847 = vpop.permute.xlu0 %1846
      %v1849 = vmul.f32 %v1646, %v1847
      %v1850 = vmul.f32 %v1647, %v1847
      %v1851 = vmul.f32 %v1648, %v1847
      %1855 = vrot.lane.b32.xlu0 %v1849, 111
      %v1856 = vpop.permute.xlu0 %1855
      %1857 = vrot.lane.b32.xlu0 %v1850, 111
      %v1858 = vpop.permute.xlu0 %1857
      %1859 = vrot.lane.b32.xlu0 %v1851, 111
      %v1860 = vpop.permute.xlu0 %1859
      %v1861 = vsel %vm777, %v1856, %v1858
      %v1862 = vsel %vm777, %v1858, %v1860
      %v1866 = vadd.f32 %v1793, %v1861
      %v1867 = vadd.f32 %v1794, %v1862
      %v1868 = vadd.f32 %v1795, %v1860
      %1869 = vset.pattern.permute.xlu0 39
      %1870 = vperm.xlu0 %1869, %v483
      %v1871 = vpop.permute.xlu0 %1870
      %v1873 = vmul.f32 %v1646, %v1871
      %v1874 = vmul.f32 %v1647, %v1871
      %v1875 = vmul.f32 %v1648, %v1871
      %1879 = vrot.lane.b32.xlu0 %v1873, 78
      %v1880 = vpop.permute.xlu0 %1879
      %1881 = vrot.lane.b32.xlu0 %v1874, 78
      %v1882 = vpop.permute.xlu0 %1881
      %1883 = vrot.lane.b32.xlu0 %v1875, 78
      %v1884 = vpop.permute.xlu0 %1883
      %v1885 = vsel %vm1301, %v1880, %v1882
      %v1886 = vsel %vm1301, %v1882, %v1884
      %v1890 = vadd.f32 %v1817, %v1885
      %v1891 = vadd.f32 %v1818, %v1886
      %v1892 = vadd.f32 %v1819, %v1884
      %1893 = vset.pattern.permute.xlu0 39
      %1894 = vperm.xlu0 %1893, %v485
      %v1895 = vpop.permute.xlu0 %1894
      %v1897 = vmul.f32 %v1646, %v1895
      %v1898 = vmul.f32 %v1647, %v1895
      %v1899 = vmul.f32 %v1648, %v1895
      %1903 = vrot.lane.b32.xlu0 %v1897, 61
      %v1904 = vpop.permute.xlu0 %1903
      %1905 = vrot.lane.b32.xlu0 %v1898, 61
      %v1906 = vpop.permute.xlu0 %1905
      %1907 = vrot.lane.b32.xlu0 %v1899, 61
      %v1908 = vpop.permute.xlu0 %1907
      %vm1909 = vcmask 498688
      %v1910 = vsel %vm1909, %v1904, %v1906
      %v1911 = vsel %vm1909, %v1906, %v1908
      %v1915 = vadd.f32 %v1842, %v1910
      %v1916 = vadd.f32 %v1843, %v1911
      %v1917 = vadd.f32 %v1844, %v1908
      %1918 = vset.pattern.permute.xlu0 39
      %1919 = vperm.xlu0 %1918, %v487
      %v1920 = vpop.permute.xlu0 %1919
      %v1922 = vmul.f32 %v1646, %v1920
      %v1923 = vmul.f32 %v1647, %v1920
      %v1924 = vmul.f32 %v1648, %v1920
      %1928 = vrot.lane.b32.xlu0 %v1922, 95
      %v1929 = vpop.permute.xlu0 %1928
      %1930 = vrot.lane.b32.xlu0 %v1923, 95
      %v1931 = vpop.permute.xlu0 %1930
      %1932 = vrot.lane.b32.xlu0 %v1924, 95
      %v1933 = vpop.permute.xlu0 %1932
      %v1934 = vsel %vm826, %v1929, %v1931
      %v1935 = vsel %vm826, %v1931, %v1933
      %v1939 = vadd.f32 %v1866, %v1934
      %v1940 = vadd.f32 %v1867, %v1935
      %v1941 = vadd.f32 %v1868, %v1933
      %v1942 = vld [vmem:[#allocation2 + $0x8] sm:$0xff]
      %v1943 = vld [vmem:[#allocation2 + $0x10] sm:$0xff]
      %v1944 = vld [vmem:[#allocation2 + $0x18] sm:$0xff]
      %1945 = vset.pattern.permute.xlu0 48
      %1946 = vperm.xlu0 %1945, %v483
      %v1947 = vpop.permute.xlu0 %1946
      %v1949 = vmul.f32 %v1942, %v1947
      %v1950 = vmul.f32 %v1943, %v1947
      %v1951 = vmul.f32 %v1944, %v1947
      %1955 = vrot.lane.b32.xlu0 %v1949, 62
      %v1956 = vpop.permute.xlu0 %1955
      %1957 = vrot.lane.b32.xlu0 %v1950, 62
      %v1958 = vpop.permute.xlu0 %1957
      %1959 = vrot.lane.b32.xlu0 %v1951, 62
      %v1960 = vpop.permute.xlu0 %1959
      %v1961 = vsel %vm1374, %v1956, %v1958
      %v1962 = vsel %vm1374, %v1958, %v1960
      %v1966 = vadd.f32 %v1890, %v1956
      %v1967 = vadd.f32 %v1891, %v1961
      %v1968 = vadd.f32 %v1892, %v1962
      %1969 = vset.pattern.permute.xlu0 48
      %1970 = vperm.xlu0 %1969, %v485
      %v1971 = vpop.permute.xlu0 %1970
      %v1973 = vmul.f32 %v1942, %v1971
      %v1974 = vmul.f32 %v1943, %v1971
      %v1975 = vmul.f32 %v1944, %v1971
      %1979 = vrot.lane.b32.xlu0 %v1973, 45
      %v1980 = vpop.permute.xlu0 %1979
      %1981 = vrot.lane.b32.xlu0 %v1974, 45
      %v1982 = vpop.permute.xlu0 %1981
      %1983 = vrot.lane.b32.xlu0 %v1975, 45
      %v1984 = vpop.permute.xlu0 %1983
      %vm1985 = vcmask 367616
      %v1986 = vsel %vm1985, %v1980, %v1982
      %v1987 = vsel %vm1985, %v1982, %v1984
      %v1991 = vadd.f32 %v1915, %v1980
      %v1992 = vadd.f32 %v1916, %v1986
      %v1993 = vadd.f32 %v1917, %v1987
      %1994 = vset.pattern.permute.xlu0 48
      %1995 = vperm.xlu0 %1994, %v487
      %v1996 = vpop.permute.xlu0 %1995
      %v1998 = vmul.f32 %v1942, %v1996
      %v1999 = vmul.f32 %v1943, %v1996
      %v2000 = vmul.f32 %v1944, %v1996
      %2004 = vrot.lane.b32.xlu0 %v1998, 79
      %v2005 = vpop.permute.xlu0 %2004
      %2006 = vrot.lane.b32.xlu0 %v1999, 79
      %v2007 = vpop.permute.xlu0 %2006
      %2008 = vrot.lane.b32.xlu0 %v2000, 79
      %v2009 = vpop.permute.xlu0 %2008
      %v2010 = vsel %vm875, %v2005, %v2007
      %v2011 = vsel %vm875, %v2007, %v2009
      %v2015 = vadd.f32 %v1939, %v2005
      %v2016 = vadd.f32 %v1940, %v2010
      %v2017 = vadd.f32 %v1941, %v2011
      %2018 = vset.pattern.permute.xlu0 57
      %2019 = vperm.xlu0 %2018, %v483
      %v2020 = vpop.permute.xlu0 %2019
      %v2022 = vmul.f32 %v1942, %v2020
      %v2023 = vmul.f32 %v1943, %v2020
      %v2024 = vmul.f32 %v1944, %v2020
      %2028 = vrot.lane.b32.xlu0 %v2022, 46
      %v2029 = vpop.permute.xlu0 %2028
      %2030 = vrot.lane.b32.xlu0 %v2023, 46
      %v2031 = vpop.permute.xlu0 %2030
      %2032 = vrot.lane.b32.xlu0 %v2024, 46
      %v2033 = vpop.permute.xlu0 %2032
      %v2034 = vsel %vm1450, %v2029, %v2031
      %v2035 = vsel %vm1450, %v2031, %v2033
      %v2039 = vadd.f32 %v1966, %v2029
      %v2040 = vadd.f32 %v1967, %v2034
      %v2041 = vadd.f32 %v1968, %v2035
      %2042 = vset.pattern.permute.xlu0 57
      %2043 = vperm.xlu0 %2042, %v485
      %v2044 = vpop.permute.xlu0 %2043
      %v2046 = vmul.f32 %v1942, %v2044
      %v2047 = vmul.f32 %v1943, %v2044
      %v2048 = vmul.f32 %v1944, %v2044
      %2052 = vrot.lane.b32.xlu0 %v2046, 29
      %v2053 = vpop.permute.xlu0 %2052
      %2054 = vrot.lane.b32.xlu0 %v2047, 29
      %v2055 = vpop.permute.xlu0 %2054
      %2056 = vrot.lane.b32.xlu0 %v2048, 29
      %v2057 = vpop.permute.xlu0 %2056
      %vm2058 = vcmask 236544
      %v2059 = vsel %vm2058, %v2053, %v2055
      %v2060 = vsel %vm2058, %v2055, %v2057
      %v2064 = vadd.f32 %v1991, %v2053
      %v2065 = vadd.f32 %v1992, %v2059
      %v2066 = vadd.f32 %v1993, %v2060
      %2067 = vset.pattern.permute.xlu0 57
      %2068 = vperm.xlu0 %2067, %v487
      %v2069 = vpop.permute.xlu0 %2068
      %v2071 = vmul.f32 %v1942, %v2069
      %v2072 = vmul.f32 %v1943, %v2069
      %v2073 = vmul.f32 %v1944, %v2069
      %2077 = vrot.lane.b32.xlu0 %v2071, 63
      %v2078 = vpop.permute.xlu0 %2077
      %2079 = vrot.lane.b32.xlu0 %v2072, 63
      %v2080 = vpop.permute.xlu0 %2079
      %2081 = vrot.lane.b32.xlu0 %v2073, 63
      %v2082 = vpop.permute.xlu0 %2081
      %v2083 = vsel %vm924, %v2078, %v2080
      %v2084 = vsel %vm924, %v2080, %v2082
      %v2088 = vadd.f32 %v2015, %v2078
      %v2089 = vadd.f32 %v2016, %v2083
      %v2090 = vadd.f32 %v2017, %v2084
      %2091 = vset.pattern.permute.xlu0 66
      %2092 = vperm.xlu0 %2091, %v483
      %v2093 = vpop.permute.xlu0 %2092
      %v2095 = vmul.f32 %v1942, %v2093
      %v2096 = vmul.f32 %v1943, %v2093
      %v2097 = vmul.f32 %v1944, %v2093
      %2101 = vrot.lane.b32.xlu0 %v2095, 30
      %v2102 = vpop.permute.xlu0 %2101
      %2103 = vrot.lane.b32.xlu0 %v2096, 30
      %v2104 = vpop.permute.xlu0 %2103
      %2105 = vrot.lane.b32.xlu0 %v2097, 30
      %v2106 = vpop.permute.xlu0 %2105
      %v2107 = vsel %vm1523, %v2102, %v2104
      %v2108 = vsel %vm1523, %v2104, %v2106
      %v2112 = vadd.f32 %v2039, %v2102
      %v2113 = vadd.f32 %v2040, %v2107
      %v2114 = vadd.f32 %v2041, %v2108
      %2115 = vset.pattern.permute.xlu0 66
      %2116 = vperm.xlu0 %2115, %v485
      %v2117 = vpop.permute.xlu0 %2116
      %v2119 = vmul.f32 %v1942, %v2117
      %v2120 = vmul.f32 %v1943, %v2117
      %v2121 = vmul.f32 %v1944, %v2117
      %2125 = vrot.lane.b32.xlu0 %v2119, 13
      %v2126 = vpop.permute.xlu0 %2125
      %2127 = vrot.lane.b32.xlu0 %v2120, 13
      %v2128 = vpop.permute.xlu0 %2127
      %2129 = vrot.lane.b32.xlu0 %v2121, 13
      %v2130 = vpop.permute.xlu0 %2129
      %vm2131 = vcmask 105472
      %v2132 = vsel %vm2131, %v2126, %v2128
      %v2133 = vsel %vm2131, %v2128, %v2130
      %v2137 = vadd.f32 %v2064, %v2126
      %v2138 = vadd.f32 %v2065, %v2132
      %v2139 = vadd.f32 %v2066, %v2133
      %2140 = vset.pattern.permute.xlu0 75
      %2141 = vperm.xlu0 %2140, %v485
      %v2142 = vpop.permute.xlu0 %2141
      %v2144 = vmul.f32 %v1942, %v2142
      %v2145 = vmul.f32 %v1943, %v2142
      %v2146 = vmul.f32 %v1944, %v2142
      %2150 = vrot.lane.b32.xlu0 %v2144, 125
      %v2151 = vpop.permute.xlu0 %2150
      %2152 = vrot.lane.b32.xlu0 %v2145, 125
      %v2153 = vpop.permute.xlu0 %2152
      %2154 = vrot.lane.b32.xlu0 %v2146, 125
      %v2155 = vpop.permute.xlu0 %2154
      %v2156 = vsel %vm1665, %v2151, %v2153
      %v2157 = vsel %vm1665, %v2153, %v2155
      %v2161 = vadd.f32 %v2137, %v2156
      %v2162 = vadd.f32 %v2138, %v2157
      %v2163 = vadd.f32 %v2139, %v2155
      %s2164 = scalar_lea.vmem %s4, 4
      %v2165 = vld [vmem:[%s2164] ss:$8 sm:$0x3]
      %v2167 = vlaneseq
      %v2168 = vshrl.u32 %v2167, 7
      %v2169 = vsub.s32 0, %v2168
      %v2170 = vrot.slane %v2165, %v2169
      %v2171 = vlaneseq
      %v2172 = vshrl.u32 %v2171, 7
      %v2173 = vsub.s32 1, %v2172
      %v2174 = vrot.slane %v2165, %v2173
      %v2177 = vmul.f32 %v479, %v2170
      %v2178 = vmul.f32 %v480, %v2174
      %2179 = vst [vmem:[#allocation2 + $0x8] sm:$0xff] %v2177
      %2180 = vst [vmem:[#allocation2 + $0x10] sm:$0xff] %v2178
      %v2181 = vld [vmem:[#allocation2] sm:$0xff]
      %v2182 = vld [vmem:[#allocation2 + $0x8] sm:$0xff]
      %v2183 = vld [vmem:[#allocation2 + $0x10] sm:$0xff]
      %2184 = vset.pattern.permute.xlu0 4
      %2185 = vperm.xlu0 %2184, %v485
      %v2186 = vpop.permute.xlu0 %2185
      %v2188 = vmul.f32 %v2181, %v2186
      %v2189 = vmul.f32 %v2182, %v2186
      %v2190 = vmul.f32 %v2183, %v2186
      %2194 = vrot.lane.b32.xlu0 %v2188, 124
      %v2195 = vpop.permute.xlu0 %2194
      %2196 = vrot.lane.b32.xlu0 %v2189, 124
      %v2197 = vpop.permute.xlu0 %2196
      %2198 = vrot.lane.b32.xlu0 %v2190, 124
      %v2199 = vpop.permute.xlu0 %2198
      %vm2200 = vcmask 1014784
      %v2201 = vsel %vm2200, %v2195, %v2197
      %v2202 = vsel %vm2200, %v2197, %v2199
      %v2206 = vadd.f32 %v2161, %v2201
      %v2207 = vadd.f32 %v2162, %v2202
      %v2208 = vadd.f32 %v2163, %v2199
      %2209 = vset.pattern.permute.xlu0 13
      %2210 = vperm.xlu0 %2209, %v483
      %v2211 = vpop.permute.xlu0 %2210
      %v2213 = vmul.f32 %v2181, %v2211
      %v2214 = vmul.f32 %v2182, %v2211
      %v2215 = vmul.f32 %v2183, %v2211
      %2219 = vrot.lane.b32.xlu0 %v2213, 125
      %v2220 = vpop.permute.xlu0 %2219
      %2221 = vrot.lane.b32.xlu0 %v2214, 125
      %v2222 = vpop.permute.xlu0 %2221
      %2223 = vrot.lane.b32.xlu0 %v2215, 125
      %v2224 = vpop.permute.xlu0 %2223
      %v2225 = vsel %vm1665, %v2220, %v2222
      %v2226 = vsel %vm1665, %v2222, %v2224
      %v2230 = vadd.f32 %v2112, %v2225
      %v2231 = vadd.f32 %v2113, %v2226
      %v2232 = vadd.f32 %v2114, %v2224
      %2233 = vset.pattern.permute.xlu0 13
      %2234 = vperm.xlu0 %2233, %v485
      %v2235 = vpop.permute.xlu0 %2234
      %v2237 = vmul.f32 %v2181, %v2235
      %v2238 = vmul.f32 %v2182, %v2235
      %v2239 = vmul.f32 %v2183, %v2235
      %2243 = vrot.lane.b32.xlu0 %v2237, 108
      %v2244 = vpop.permute.xlu0 %2243
      %2245 = vrot.lane.b32.xlu0 %v2238, 108
      %v2246 = vpop.permute.xlu0 %2245
      %2247 = vrot.lane.b32.xlu0 %v2239, 108
      %v2248 = vpop.permute.xlu0 %2247
      %vm2249 = vcmask 883712
      %v2250 = vsel %vm2249, %v2244, %v2246
      %v2251 = vsel %vm2249, %v2246, %v2248
      %v2255 = vadd.f32 %v2206, %v2250
      %v2256 = vadd.f32 %v2207, %v2251
      %v2257 = vadd.f32 %v2208, %v2248
      %2258 = vset.pattern.permute.xlu0 22
      %2259 = vperm.xlu0 %2258, %v483
      %v2260 = vpop.permute.xlu0 %2259
      %v2262 = vmul.f32 %v2181, %v2260
      %v2263 = vmul.f32 %v2182, %v2260
      %v2264 = vmul.f32 %v2183, %v2260
      %2268 = vrot.lane.b32.xlu0 %v2262, 109
      %v2269 = vpop.permute.xlu0 %2268
      %2270 = vrot.lane.b32.xlu0 %v2263, 109
      %v2271 = vpop.permute.xlu0 %2270
      %2272 = vrot.lane.b32.xlu0 %v2264, 109
      %v2273 = vpop.permute.xlu0 %2272
      %v2274 = vsel %vm1714, %v2269, %v2271
      %v2275 = vsel %vm1714, %v2271, %v2273
      %v2279 = vadd.f32 %v2230, %v2274
      %v2280 = vadd.f32 %v2231, %v2275
      %v2281 = vadd.f32 %v2232, %v2273
      %2282 = vset.pattern.permute.xlu0 22
      %2283 = vperm.xlu0 %2282, %v485
      %v2284 = vpop.permute.xlu0 %2283
      %v2286 = vmul.f32 %v2181, %v2284
      %v2287 = vmul.f32 %v2182, %v2284
      %v2288 = vmul.f32 %v2183, %v2284
      %2292 = vrot.lane.b32.xlu0 %v2286, 92
      %v2293 = vpop.permute.xlu0 %2292
      %2294 = vrot.lane.b32.xlu0 %v2287, 92
      %v2295 = vpop.permute.xlu0 %2294
      %2296 = vrot.lane.b32.xlu0 %v2288, 92
      %v2297 = vpop.permute.xlu0 %2296
      %vm2298 = vcmask 752640
      %v2299 = vsel %vm2298, %v2293, %v2295
      %v2300 = vsel %vm2298, %v2295, %v2297
      %v2304 = vadd.f32 %v2255, %v2299
      %v2305 = vadd.f32 %v2256, %v2300
      %v2306 = vadd.f32 %v2257, %v2297
      %2307 = vset.pattern.permute.xlu0 22
      %2308 = vperm.xlu0 %2307, %v487
      %v2309 = vpop.permute.xlu0 %2308
      %v2311 = vmul.f32 %v2181, %v2309
      %v2312 = vmul.f32 %v2182, %v2309
      %v2313 = vmul.f32 %v2183, %v2309
      %2317 = vrot.lane.b32.xlu0 %v2311, 126
      %v2318 = vpop.permute.xlu0 %2317
      %2319 = vrot.lane.b32.xlu0 %v2312, 126
      %v2320 = vpop.permute.xlu0 %2319
      %2321 = vrot.lane.b32.xlu0 %v2313, 126
      %v2322 = vpop.permute.xlu0 %2321
      %v2323 = vsel %vm1143, %v2318, %v2320
      %v2324 = vsel %vm1143, %v2320, %v2322
      %v2328 = vadd.f32 %v2088, %v2323
      %v2329 = vadd.f32 %v2089, %v2324
      %v2330 = vadd.f32 %v2090, %v2322
      %2331 = vset.pattern.permute.xlu0 31
      %2332 = vperm.xlu0 %2331, %v483
      %v2333 = vpop.permute.xlu0 %2332
      %v2335 = vmul.f32 %v2181, %v2333
      %v2336 = vmul.f32 %v2182, %v2333
      %v2337 = vmul.f32 %v2183, %v2333
      %2341 = vrot.lane.b32.xlu0 %v2335, 93
      %v2342 = vpop.permute.xlu0 %2341
      %2343 = vrot.lane.b32.xlu0 %v2336, 93
      %v2344 = vpop.permute.xlu0 %2343
      %2345 = vrot.lane.b32.xlu0 %v2337, 93
      %v2346 = vpop.permute.xlu0 %2345
      %v2347 = vsel %vm1763, %v2342, %v2344
      %v2348 = vsel %vm1763, %v2344, %v2346
      %v2352 = vadd.f32 %v2279, %v2347
      %v2353 = vadd.f32 %v2280, %v2348
      %v2354 = vadd.f32 %v2281, %v2346
      %2355 = vset.pattern.permute.xlu0 31
      %2356 = vperm.xlu0 %2355, %v485
      %v2357 = vpop.permute.xlu0 %2356
      %v2359 = vmul.f32 %v2181, %v2357
      %v2360 = vmul.f32 %v2182, %v2357
      %v2361 = vmul.f32 %v2183, %v2357
      %2365 = vrot.lane.b32.xlu0 %v2359, 76
      %v2366 = vpop.permute.xlu0 %2365
      %2367 = vrot.lane.b32.xlu0 %v2360, 76
      %v2368 = vpop.permute.xlu0 %2367
      %2369 = vrot.lane.b32.xlu0 %v2361, 76
      %v2370 = vpop.permute.xlu0 %2369
      %vm2371 = vcmask 621568
      %v2372 = vsel %vm2371, %v2366, %v2368
      %v2373 = vsel %vm2371, %v2368, %v2370
      %v2377 = vadd.f32 %v2304, %v2372
      %v2378 = vadd.f32 %v2305, %v2373
      %v2379 = vadd.f32 %v2306, %v2370
      %2380 = vset.pattern.permute.xlu0 31
      %2381 = vperm.xlu0 %2380, %v487
      %v2382 = vpop.permute.xlu0 %2381
      %v2384 = vmul.f32 %v2181, %v2382
      %v2385 = vmul.f32 %v2182, %v2382
      %v2386 = vmul.f32 %v2183, %v2382
      %2390 = vrot.lane.b32.xlu0 %v2384, 110
      %v2391 = vpop.permute.xlu0 %2390
      %2392 = vrot.lane.b32.xlu0 %v2385, 110
      %v2393 = vpop.permute.xlu0 %2392
      %2394 = vrot.lane.b32.xlu0 %v2386, 110
      %v2395 = vpop.permute.xlu0 %2394
      %v2396 = vsel %vm1192, %v2391, %v2393
      %v2397 = vsel %vm1192, %v2393, %v2395
      %v2401 = vadd.f32 %v2328, %v2396
      %v2402 = vadd.f32 %v2329, %v2397
      %v2403 = vadd.f32 %v2330, %v2395
      %2404 = vset.pattern.permute.xlu0 40
      %2405 = vperm.xlu0 %2404, %v483
      %v2406 = vpop.permute.xlu0 %2405
      %v2408 = vmul.f32 %v2182, %v2406
      %v2409 = vmul.f32 %v2183, %v2406
      %2412 = vrot.lane.b32.xlu0 %v2408, 77
      %v2413 = vpop.permute.xlu0 %2412
      %2414 = vrot.lane.b32.xlu0 %v2409, 77
      %v2415 = vpop.permute.xlu0 %2414
      %v2416 = vsel %vm1836, %v2413, %v2415
      %v2420 = vadd.f32 %v2352, %v2413
      %v2421 = vadd.f32 %v2353, %v2416
      %v2422 = vadd.f32 %v2354, %v2415
      %2423 = vset.pattern.permute.xlu0 40
      %2424 = vperm.xlu0 %2423, %v485
      %v2425 = vpop.permute.xlu0 %2424
      %v2427 = vmul.f32 %v2182, %v2425
      %v2428 = vmul.f32 %v2183, %v2425
      %2431 = vrot.lane.b32.xlu0 %v2427, 60
      %v2432 = vpop.permute.xlu0 %2431
      %2433 = vrot.lane.b32.xlu0 %v2428, 60
      %v2434 = vpop.permute.xlu0 %2433
      %vm2435 = vcmask 490496
      %v2436 = vsel %vm2435, %v2432, %v2434
      %v2440 = vadd.f32 %v2377, %v2432
      %v2441 = vadd.f32 %v2378, %v2436
      %v2442 = vadd.f32 %v2379, %v2434
      %2443 = vset.pattern.permute.xlu0 40
      %2444 = vperm.xlu0 %2443, %v487
      %v2445 = vpop.permute.xlu0 %2444
      %v2447 = vmul.f32 %v2182, %v2445
      %v2448 = vmul.f32 %v2183, %v2445
      %2451 = vrot.lane.b32.xlu0 %v2447, 94
      %v2452 = vpop.permute.xlu0 %2451
      %2453 = vrot.lane.b32.xlu0 %v2448, 94
      %v2454 = vpop.permute.xlu0 %2453
      %v2455 = vsel %vm1241, %v2452, %v2454
      %v2459 = vadd.f32 %v2401, %v2452
      %v2460 = vadd.f32 %v2402, %v2455
      %v2461 = vadd.f32 %v2403, %v2454
      %v2462 = vld [vmem:[#allocation2 + $0x8] sm:$0xff]
      %v2463 = vld [vmem:[#allocation2 + $0x10] sm:$0xff]
      %v2464 = vld [vmem:[#allocation2 + $0x18] sm:$0xff]
      %2465 = vset.pattern.permute.xlu0 49
      %2466 = vperm.xlu0 %2465, %v483
      %v2467 = vpop.permute.xlu0 %2466
      %v2469 = vmul.f32 %v2462, %v2467
      %v2470 = vmul.f32 %v2463, %v2467
      %v2471 = vmul.f32 %v2464, %v2467
      %2475 = vrot.lane.b32.xlu0 %v2469, 61
      %v2476 = vpop.permute.xlu0 %2475
      %2477 = vrot.lane.b32.xlu0 %v2470, 61
      %v2478 = vpop.permute.xlu0 %2477
      %2479 = vrot.lane.b32.xlu0 %v2471, 61
      %v2480 = vpop.permute.xlu0 %2479
      %v2481 = vsel %vm1909, %v2476, %v2478
      %v2482 = vsel %vm1909, %v2478, %v2480
      %v2486 = vadd.f32 %v2420, %v2476
      %v2487 = vadd.f32 %v2421, %v2481
      %v2488 = vadd.f32 %v2422, %v2482
      %2489 = vset.pattern.permute.xlu0 49
      %2490 = vperm.xlu0 %2489, %v485
      %v2491 = vpop.permute.xlu0 %2490
      %v2493 = vmul.f32 %v2462, %v2491
      %v2494 = vmul.f32 %v2463, %v2491
      %v2495 = vmul.f32 %v2464, %v2491
      %2499 = vrot.lane.b32.xlu0 %v2493, 44
      %v2500 = vpop.permute.xlu0 %2499
      %2501 = vrot.lane.b32.xlu0 %v2494, 44
      %v2502 = vpop.permute.xlu0 %2501
      %2503 = vrot.lane.b32.xlu0 %v2495, 44
      %v2504 = vpop.permute.xlu0 %2503
      %vm2505 = vcmask 359424
      %v2506 = vsel %vm2505, %v2500, %v2502
      %v2507 = vsel %vm2505, %v2502, %v2504
      %v2511 = vadd.f32 %v2440, %v2500
      %v2512 = vadd.f32 %v2441, %v2506
      %v2513 = vadd.f32 %v2442, %v2507
      %2514 = vset.pattern.permute.xlu0 49
      %2515 = vperm.xlu0 %2514, %v487
      %v2516 = vpop.permute.xlu0 %2515
      %v2518 = vmul.f32 %v2462, %v2516
      %v2519 = vmul.f32 %v2463, %v2516
      %v2520 = vmul.f32 %v2464, %v2516
      %2524 = vrot.lane.b32.xlu0 %v2518, 78
      %v2525 = vpop.permute.xlu0 %2524
      %2526 = vrot.lane.b32.xlu0 %v2519, 78
      %v2527 = vpop.permute.xlu0 %2526
      %2528 = vrot.lane.b32.xlu0 %v2520, 78
      %v2529 = vpop.permute.xlu0 %2528
      %v2530 = vsel %vm1301, %v2525, %v2527
      %v2531 = vsel %vm1301, %v2527, %v2529
      %v2535 = vadd.f32 %v2459, %v2525
      %v2536 = vadd.f32 %v2460, %v2530
      %v2537 = vadd.f32 %v2461, %v2531
      %2538 = vset.pattern.permute.xlu0 58
      %2539 = vperm.xlu0 %2538, %v483
      %v2540 = vpop.permute.xlu0 %2539
      %v2542 = vmul.f32 %v2462, %v2540
      %v2543 = vmul.f32 %v2463, %v2540
      %v2544 = vmul.f32 %v2464, %v2540
      %2548 = vrot.lane.b32.xlu0 %v2542, 45
      %v2549 = vpop.permute.xlu0 %2548
      %2550 = vrot.lane.b32.xlu0 %v2543, 45
      %v2551 = vpop.permute.xlu0 %2550
      %2552 = vrot.lane.b32.xlu0 %v2544, 45
      %v2553 = vpop.permute.xlu0 %2552
      %v2554 = vsel %vm1985, %v2549, %v2551
      %v2555 = vsel %vm1985, %v2551, %v2553
      %v2559 = vadd.f32 %v2486, %v2549
      %v2560 = vadd.f32 %v2487, %v2554
      %v2561 = vadd.f32 %v2488, %v2555
      %2562 = vset.pattern.permute.xlu0 58
      %2563 = vperm.xlu0 %2562, %v485
      %v2564 = vpop.permute.xlu0 %2563
      %v2566 = vmul.f32 %v2462, %v2564
      %v2567 = vmul.f32 %v2463, %v2564
      %v2568 = vmul.f32 %v2464, %v2564
      %2572 = vrot.lane.b32.xlu0 %v2566, 28
      %v2573 = vpop.permute.xlu0 %2572
      %2574 = vrot.lane.b32.xlu0 %v2567, 28
      %v2575 = vpop.permute.xlu0 %2574
      %2576 = vrot.lane.b32.xlu0 %v2568, 28
      %v2577 = vpop.permute.xlu0 %2576
      %vm2578 = vcmask 228352
      %v2579 = vsel %vm2578, %v2573, %v2575
      %v2580 = vsel %vm2578, %v2575, %v2577
      %v2584 = vadd.f32 %v2511, %v2573
      %v2585 = vadd.f32 %v2512, %v2579
      %v2586 = vadd.f32 %v2513, %v2580
      %2587 = vset.pattern.permute.xlu0 58
      %2588 = vperm.xlu0 %2587, %v487
      %v2589 = vpop.permute.xlu0 %2588
      %v2591 = vmul.f32 %v2462, %v2589
      %v2592 = vmul.f32 %v2463, %v2589
      %v2593 = vmul.f32 %v2464, %v2589
      %2597 = vrot.lane.b32.xlu0 %v2591, 62
      %v2598 = vpop.permute.xlu0 %2597
      %2599 = vrot.lane.b32.xlu0 %v2592, 62
      %v2600 = vpop.permute.xlu0 %2599
      %2601 = vrot.lane.b32.xlu0 %v2593, 62
      %v2602 = vpop.permute.xlu0 %2601
      %v2603 = vsel %vm1374, %v2598, %v2600
      %v2604 = vsel %vm1374, %v2600, %v2602
      %v2608 = vadd.f32 %v2535, %v2598
      %v2609 = vadd.f32 %v2536, %v2603
      %v2610 = vadd.f32 %v2537, %v2604
      %2611 = vset.pattern.permute.xlu0 67
      %2612 = vperm.xlu0 %2611, %v483
      %v2613 = vpop.permute.xlu0 %2612
      %v2615 = vmul.f32 %v2462, %v2613
      %v2616 = vmul.f32 %v2463, %v2613
      %v2617 = vmul.f32 %v2464, %v2613
      %2621 = vrot.lane.b32.xlu0 %v2615, 29
      %v2622 = vpop.permute.xlu0 %2621
      %2623 = vrot.lane.b32.xlu0 %v2616, 29
      %v2624 = vpop.permute.xlu0 %2623
      %2625 = vrot.lane.b32.xlu0 %v2617, 29
      %v2626 = vpop.permute.xlu0 %2625
      %v2627 = vsel %vm2058, %v2622, %v2624
      %v2628 = vsel %vm2058, %v2624, %v2626
      %v2632 = vadd.f32 %v2559, %v2622
      %v2633 = vadd.f32 %v2560, %v2627
      %v2634 = vadd.f32 %v2561, %v2628
      %2635 = vset.pattern.permute.xlu0 67
      %2636 = vperm.xlu0 %2635, %v485
      %v2637 = vpop.permute.xlu0 %2636
      %v2639 = vmul.f32 %v2462, %v2637
      %v2640 = vmul.f32 %v2463, %v2637
      %v2641 = vmul.f32 %v2464, %v2637
      %2645 = vrot.lane.b32.xlu0 %v2639, 12
      %v2646 = vpop.permute.xlu0 %2645
      %2647 = vrot.lane.b32.xlu0 %v2640, 12
      %v2648 = vpop.permute.xlu0 %2647
      %2649 = vrot.lane.b32.xlu0 %v2641, 12
      %v2650 = vpop.permute.xlu0 %2649
      %vm2651 = vcmask 97280
      %v2652 = vsel %vm2651, %v2646, %v2648
      %v2653 = vsel %vm2651, %v2648, %v2650
      %v2657 = vadd.f32 %v2584, %v2646
      %v2658 = vadd.f32 %v2585, %v2652
      %v2659 = vadd.f32 %v2586, %v2653
      %2660 = vset.pattern.permute.xlu0 76
      %2661 = vperm.xlu0 %2660, %v485
      %v2662 = vpop.permute.xlu0 %2661
      %v2664 = vmul.f32 %v2462, %v2662
      %v2665 = vmul.f32 %v2463, %v2662
      %v2666 = vmul.f32 %v2464, %v2662
      %2670 = vrot.lane.b32.xlu0 %v2664, 124
      %v2671 = vpop.permute.xlu0 %2670
      %2672 = vrot.lane.b32.xlu0 %v2665, 124
      %v2673 = vpop.permute.xlu0 %2672
      %2674 = vrot.lane.b32.xlu0 %v2666, 124
      %v2675 = vpop.permute.xlu0 %2674
      %v2676 = vsel %vm2200, %v2671, %v2673
      %v2677 = vsel %vm2200, %v2673, %v2675
      %v2681 = vadd.f32 %v2657, %v2676
      %v2682 = vadd.f32 %v2658, %v2677
      %v2683 = vadd.f32 %v2659, %v2675
      %s2684 = scalar_lea.vmem %s4, 5
      %v2685 = vld [vmem:[%s2684] ss:$8 sm:$0x3]
      %v2687 = vlaneseq
      %v2688 = vshrl.u32 %v2687, 7
      %v2689 = vsub.s32 0, %v2688
      %v2690 = vrot.slane %v2685, %v2689
      %v2691 = vlaneseq
      %v2692 = vshrl.u32 %v2691, 7
      %v2693 = vsub.s32 1, %v2692
      %v2694 = vrot.slane %v2685, %v2693
      %v2697 = vmul.f32 %v479, %v2690
      %v2698 = vmul.f32 %v480, %v2694
      %2699 = vst [vmem:[#allocation2 + $0x8] sm:$0xff] %v2697
      %2700 = vst [vmem:[#allocation2 + $0x10] sm:$0xff] %v2698
      %v2701 = vld [vmem:[#allocation2] sm:$0xff]
      %v2702 = vld [vmem:[#allocation2 + $0x8] sm:$0xff]
      %v2703 = vld [vmem:[#allocation2 + $0x10] sm:$0xff]
      %2704 = vset.pattern.permute.xlu0 5
      %2705 = vperm.xlu0 %2704, %v485
      %v2706 = vpop.permute.xlu0 %2705
      %v2708 = vmul.f32 %v2701, %v2706
      %v2709 = vmul.f32 %v2702, %v2706
      %v2710 = vmul.f32 %v2703, %v2706
      %2714 = vrot.lane.b32.xlu0 %v2708, 123
      %v2715 = vpop.permute.xlu0 %2714
      %2716 = vrot.lane.b32.xlu0 %v2709, 123
      %v2717 = vpop.permute.xlu0 %2716
      %2718 = vrot.lane.b32.xlu0 %v2710, 123
      %v2719 = vpop.permute.xlu0 %2718
      %vm2720 = vcmask 1006592
      %v2721 = vsel %vm2720, %v2715, %v2717
      %v2722 = vsel %vm2720, %v2717, %v2719
      %v2726 = vadd.f32 %v2681, %v2721
      %v2727 = vadd.f32 %v2682, %v2722
      %v2728 = vadd.f32 %v2683, %v2719
      %2729 = vset.pattern.permute.xlu0 14
      %2730 = vperm.xlu0 %2729, %v483
      %v2731 = vpop.permute.xlu0 %2730
      %v2733 = vmul.f32 %v2701, %v2731
      %v2734 = vmul.f32 %v2702, %v2731
      %v2735 = vmul.f32 %v2703, %v2731
      %2739 = vrot.lane.b32.xlu0 %v2733, 124
      %v2740 = vpop.permute.xlu0 %2739
      %2741 = vrot.lane.b32.xlu0 %v2734, 124
      %v2742 = vpop.permute.xlu0 %2741
      %2743 = vrot.lane.b32.xlu0 %v2735, 124
      %v2744 = vpop.permute.xlu0 %2743
      %v2745 = vsel %vm2200, %v2740, %v2742
      %v2746 = vsel %vm2200, %v2742, %v2744
      %v2750 = vadd.f32 %v2632, %v2745
      %v2751 = vadd.f32 %v2633, %v2746
      %v2752 = vadd.f32 %v2634, %v2744
      %2753 = vset.pattern.permute.xlu0 14
      %2754 = vperm.xlu0 %2753, %v485
      %v2755 = vpop.permute.xlu0 %2754
      %v2757 = vmul.f32 %v2701, %v2755
      %v2758 = vmul.f32 %v2702, %v2755
      %v2759 = vmul.f32 %v2703, %v2755
      %2763 = vrot.lane.b32.xlu0 %v2757, 107
      %v2764 = vpop.permute.xlu0 %2763
      %2765 = vrot.lane.b32.xlu0 %v2758, 107
      %v2766 = vpop.permute.xlu0 %2765
      %2767 = vrot.lane.b32.xlu0 %v2759, 107
      %v2768 = vpop.permute.xlu0 %2767
      %vm2769 = vcmask 875520
      %v2770 = vsel %vm2769, %v2764, %v2766
      %v2771 = vsel %vm2769, %v2766, %v2768
      %v2775 = vadd.f32 %v2726, %v2770
      %v2776 = vadd.f32 %v2727, %v2771
      %v2777 = vadd.f32 %v2728, %v2768
      %2778 = vset.pattern.permute.xlu0 23
      %2779 = vperm.xlu0 %2778, %v483
      %v2780 = vpop.permute.xlu0 %2779
      %v2782 = vmul.f32 %v2701, %v2780
      %v2783 = vmul.f32 %v2702, %v2780
      %v2784 = vmul.f32 %v2703, %v2780
      %2788 = vrot.lane.b32.xlu0 %v2782, 108
      %v2789 = vpop.permute.xlu0 %2788
      %2790 = vrot.lane.b32.xlu0 %v2783, 108
      %v2791 = vpop.permute.xlu0 %2790
      %2792 = vrot.lane.b32.xlu0 %v2784, 108
      %v2793 = vpop.permute.xlu0 %2792
      %v2794 = vsel %vm2249, %v2789, %v2791
      %v2795 = vsel %vm2249, %v2791, %v2793
      %v2799 = vadd.f32 %v2750, %v2794
      %v2800 = vadd.f32 %v2751, %v2795
      %v2801 = vadd.f32 %v2752, %v2793
      %2802 = vset.pattern.permute.xlu0 23
      %2803 = vperm.xlu0 %2802, %v485
      %v2804 = vpop.permute.xlu0 %2803
      %v2806 = vmul.f32 %v2701, %v2804
      %v2807 = vmul.f32 %v2702, %v2804
      %v2808 = vmul.f32 %v2703, %v2804
      %2812 = vrot.lane.b32.xlu0 %v2806, 91
      %v2813 = vpop.permute.xlu0 %2812
      %2814 = vrot.lane.b32.xlu0 %v2807, 91
      %v2815 = vpop.permute.xlu0 %2814
      %2816 = vrot.lane.b32.xlu0 %v2808, 91
      %v2817 = vpop.permute.xlu0 %2816
      %vm2818 = vcmask 744448
      %v2819 = vsel %vm2818, %v2813, %v2815
      %v2820 = vsel %vm2818, %v2815, %v2817
      %v2824 = vadd.f32 %v2775, %v2819
      %v2825 = vadd.f32 %v2776, %v2820
      %v2826 = vadd.f32 %v2777, %v2817
      %2827 = vset.pattern.permute.xlu0 23
      %2828 = vperm.xlu0 %2827, %v487
      %v2829 = vpop.permute.xlu0 %2828
      %v2831 = vmul.f32 %v2701, %v2829
      %v2832 = vmul.f32 %v2702, %v2829
      %v2833 = vmul.f32 %v2703, %v2829
      %2837 = vrot.lane.b32.xlu0 %v2831, 125
      %v2838 = vpop.permute.xlu0 %2837
      %2839 = vrot.lane.b32.xlu0 %v2832, 125
      %v2840 = vpop.permute.xlu0 %2839
      %2841 = vrot.lane.b32.xlu0 %v2833, 125
      %v2842 = vpop.permute.xlu0 %2841
      %v2843 = vsel %vm1665, %v2838, %v2840
      %v2844 = vsel %vm1665, %v2840, %v2842
      %v2848 = vadd.f32 %v2608, %v2843
      %v2849 = vadd.f32 %v2609, %v2844
      %v2850 = vadd.f32 %v2610, %v2842
      %2851 = vset.pattern.permute.xlu0 32
      %2852 = vperm.xlu0 %2851, %v483
      %v2853 = vpop.permute.xlu0 %2852
      %v2855 = vmul.f32 %v2701, %v2853
      %v2856 = vmul.f32 %v2702, %v2853
      %v2857 = vmul.f32 %v2703, %v2853
      %2861 = vrot.lane.b32.xlu0 %v2855, 92
      %v2862 = vpop.permute.xlu0 %2861
      %2863 = vrot.lane.b32.xlu0 %v2856, 92
      %v2864 = vpop.permute.xlu0 %2863
      %2865 = vrot.lane.b32.xlu0 %v2857, 92
      %v2866 = vpop.permute.xlu0 %2865
      %v2867 = vsel %vm2298, %v2862, %v2864
      %v2868 = vsel %vm2298, %v2864, %v2866
      %v2872 = vadd.f32 %v2799, %v2867
      %v2873 = vadd.f32 %v2800, %v2868
      %v2874 = vadd.f32 %v2801, %v2866
      %2875 = vset.pattern.permute.xlu0 32
      %2876 = vperm.xlu0 %2875, %v485
      %v2877 = vpop.permute.xlu0 %2876
      %v2879 = vmul.f32 %v2701, %v2877
      %v2880 = vmul.f32 %v2702, %v2877
      %v2881 = vmul.f32 %v2703, %v2877
      %2885 = vrot.lane.b32.xlu0 %v2879, 75
      %v2886 = vpop.permute.xlu0 %2885
      %2887 = vrot.lane.b32.xlu0 %v2880, 75
      %v2888 = vpop.permute.xlu0 %2887
      %2889 = vrot.lane.b32.xlu0 %v2881, 75
      %v2890 = vpop.permute.xlu0 %2889
      %vm2891 = vcmask 613376
      %v2892 = vsel %vm2891, %v2886, %v2888
      %v2893 = vsel %vm2891, %v2888, %v2890
      %v2897 = vadd.f32 %v2824, %v2892
      %v2898 = vadd.f32 %v2825, %v2893
      %v2899 = vadd.f32 %v2826, %v2890
      %2900 = vset.pattern.permute.xlu0 32
      %2901 = vperm.xlu0 %2900, %v487
      %v2902 = vpop.permute.xlu0 %2901
      %v2904 = vmul.f32 %v2701, %v2902
      %v2905 = vmul.f32 %v2702, %v2902
      %v2906 = vmul.f32 %v2703, %v2902
      %2910 = vrot.lane.b32.xlu0 %v2904, 109
      %v2911 = vpop.permute.xlu0 %2910
      %2912 = vrot.lane.b32.xlu0 %v2905, 109
      %v2913 = vpop.permute.xlu0 %2912
      %2914 = vrot.lane.b32.xlu0 %v2906, 109
      %v2915 = vpop.permute.xlu0 %2914
      %v2916 = vsel %vm1714, %v2911, %v2913
      %v2917 = vsel %vm1714, %v2913, %v2915
      %v2921 = vadd.f32 %v2848, %v2916
      %v2922 = vadd.f32 %v2849, %v2917
      %v2923 = vadd.f32 %v2850, %v2915
      %v2924 = vld [vmem:[#allocation2 + $0x8] sm:$0xff]
      %v2925 = vld [vmem:[#allocation2 + $0x10] sm:$0xff]
      %v2926 = vld [vmem:[#allocation2 + $0x18] sm:$0xff]
      %2927 = vset.pattern.permute.xlu0 41
      %2928 = vperm.xlu0 %2927, %v483
      %v2929 = vpop.permute.xlu0 %2928
      %v2931 = vmul.f32 %v2924, %v2929
      %v2932 = vmul.f32 %v2925, %v2929
      %v2933 = vmul.f32 %v2926, %v2929
      %2937 = vrot.lane.b32.xlu0 %v2931, 76
      %v2938 = vpop.permute.xlu0 %2937
      %2939 = vrot.lane.b32.xlu0 %v2932, 76
      %v2940 = vpop.permute.xlu0 %2939
      %2941 = vrot.lane.b32.xlu0 %v2933, 76
      %v2942 = vpop.permute.xlu0 %2941
      %v2943 = vsel %vm2371, %v2938, %v2940
      %v2944 = vsel %vm2371, %v2940, %v2942
      %v2948 = vadd.f32 %v2872, %v2938
      %v2949 = vadd.f32 %v2873, %v2943
      %v2950 = vadd.f32 %v2874, %v2944
      %2951 = vset.pattern.permute.xlu0 41
      %2952 = vperm.xlu0 %2951, %v485
      %v2953 = vpop.permute.xlu0 %2952
      %v2955 = vmul.f32 %v2924, %v2953
      %v2956 = vmul.f32 %v2925, %v2953
      %v2957 = vmul.f32 %v2926, %v2953
      %2961 = vrot.lane.b32.xlu0 %v2955, 59
      %v2962 = vpop.permute.xlu0 %2961
      %2963 = vrot.lane.b32.xlu0 %v2956, 59
      %v2964 = vpop.permute.xlu0 %2963
      %2965 = vrot.lane.b32.xlu0 %v2957, 59
      %v2966 = vpop.permute.xlu0 %2965
      %vm2967 = vcmask 482304
      %v2968 = vsel %vm2967, %v2962, %v2964
      %v2969 = vsel %vm2967, %v2964, %v2966
      %v2973 = vadd.f32 %v2897, %v2962
      %v2974 = vadd.f32 %v2898, %v2968
      %v2975 = vadd.f32 %v2899, %v2969
      %2976 = vset.pattern.permute.xlu0 41
      %2977 = vperm.xlu0 %2976, %v487
      %v2978 = vpop.permute.xlu0 %2977
      %v2980 = vmul.f32 %v2924, %v2978
      %v2981 = vmul.f32 %v2925, %v2978
      %v2982 = vmul.f32 %v2926, %v2978
      %2986 = vrot.lane.b32.xlu0 %v2980, 93
      %v2987 = vpop.permute.xlu0 %2986
      %2988 = vrot.lane.b32.xlu0 %v2981, 93
      %v2989 = vpop.permute.xlu0 %2988
      %2990 = vrot.lane.b32.xlu0 %v2982, 93
      %v2991 = vpop.permute.xlu0 %2990
      %v2992 = vsel %vm1763, %v2987, %v2989
      %v2993 = vsel %vm1763, %v2989, %v2991
      %v2997 = vadd.f32 %v2921, %v2987
      %v2998 = vadd.f32 %v2922, %v2992
      %v2999 = vadd.f32 %v2923, %v2993
      %3000 = vset.pattern.permute.xlu0 50
      %3001 = vperm.xlu0 %3000, %v483
      %v3002 = vpop.permute.xlu0 %3001
      %v3004 = vmul.f32 %v2924, %v3002
      %v3005 = vmul.f32 %v2925, %v3002
      %v3006 = vmul.f32 %v2926, %v3002
      %3010 = vrot.lane.b32.xlu0 %v3004, 60
      %v3011 = vpop.permute.xlu0 %3010
      %3012 = vrot.lane.b32.xlu0 %v3005, 60
      %v3013 = vpop.permute.xlu0 %3012
      %3014 = vrot.lane.b32.xlu0 %v3006, 60
      %v3015 = vpop.permute.xlu0 %3014
      %v3016 = vsel %vm2435, %v3011, %v3013
      %v3017 = vsel %vm2435, %v3013, %v3015
      %v3021 = vadd.f32 %v2948, %v3011
      %v3022 = vadd.f32 %v2949, %v3016
      %v3023 = vadd.f32 %v2950, %v3017
      %3024 = vset.pattern.permute.xlu0 50
      %3025 = vperm.xlu0 %3024, %v485
      %v3026 = vpop.permute.xlu0 %3025
      %v3028 = vmul.f32 %v2924, %v3026
      %v3029 = vmul.f32 %v2925, %v3026
      %v3030 = vmul.f32 %v2926, %v3026
      %3034 = vrot.lane.b32.xlu0 %v3028, 43
      %v3035 = vpop.permute.xlu0 %3034
      %3036 = vrot.lane.b32.xlu0 %v3029, 43
      %v3037 = vpop.permute.xlu0 %3036
      %3038 = vrot.lane.b32.xlu0 %v3030, 43
      %v3039 = vpop.permute.xlu0 %3038
      %vm3040 = vcmask 351232
      %v3041 = vsel %vm3040, %v3035, %v3037
      %v3042 = vsel %vm3040, %v3037, %v3039
      %v3046 = vadd.f32 %v2973, %v3035
      %v3047 = vadd.f32 %v2974, %v3041
      %v3048 = vadd.f32 %v2975, %v3042
      %3049 = vset.pattern.permute.xlu0 50
      %3050 = vperm.xlu0 %3049, %v487
      %v3051 = vpop.permute.xlu0 %3050
      %v3053 = vmul.f32 %v2924, %v3051
      %v3054 = vmul.f32 %v2925, %v3051
      %v3055 = vmul.f32 %v2926, %v3051
      %3059 = vrot.lane.b32.xlu0 %v3053, 77
      %v3060 = vpop.permute.xlu0 %3059
      %3061 = vrot.lane.b32.xlu0 %v3054, 77
      %v3062 = vpop.permute.xlu0 %3061
      %3063 = vrot.lane.b32.xlu0 %v3055, 77
      %v3064 = vpop.permute.xlu0 %3063
      %v3065 = vsel %vm1836, %v3060, %v3062
      %v3066 = vsel %vm1836, %v3062, %v3064
      %v3070 = vadd.f32 %v2997, %v3060
      %v3071 = vadd.f32 %v2998, %v3065
      %v3072 = vadd.f32 %v2999, %v3066
      %3073 = vset.pattern.permute.xlu0 59
      %3074 = vperm.xlu0 %3073, %v483
      %v3075 = vpop.permute.xlu0 %3074
      %v3077 = vmul.f32 %v2924, %v3075
      %v3078 = vmul.f32 %v2925, %v3075
      %v3079 = vmul.f32 %v2926, %v3075
      %3083 = vrot.lane.b32.xlu0 %v3077, 44
      %v3084 = vpop.permute.xlu0 %3083
      %3085 = vrot.lane.b32.xlu0 %v3078, 44
      %v3086 = vpop.permute.xlu0 %3085
      %3087 = vrot.lane.b32.xlu0 %v3079, 44
      %v3088 = vpop.permute.xlu0 %3087
      %v3089 = vsel %vm2505, %v3084, %v3086
      %v3090 = vsel %vm2505, %v3086, %v3088
      %v3094 = vadd.f32 %v3021, %v3084
      %v3095 = vadd.f32 %v3022, %v3089
      %v3096 = vadd.f32 %v3023, %v3090
      %3097 = vset.pattern.permute.xlu0 59
      %3098 = vperm.xlu0 %3097, %v485
      %v3099 = vpop.permute.xlu0 %3098
      %v3101 = vmul.f32 %v2924, %v3099
      %v3102 = vmul.f32 %v2925, %v3099
      %v3103 = vmul.f32 %v2926, %v3099
      %3107 = vrot.lane.b32.xlu0 %v3101, 27
      %v3108 = vpop.permute.xlu0 %3107
      %3109 = vrot.lane.b32.xlu0 %v3102, 27
      %v3110 = vpop.permute.xlu0 %3109
      %3111 = vrot.lane.b32.xlu0 %v3103, 27
      %v3112 = vpop.permute.xlu0 %3111
      %vm3113 = vcmask 220160
      %v3114 = vsel %vm3113, %v3108, %v3110
      %v3115 = vsel %vm3113, %v3110, %v3112
      %v3119 = vadd.f32 %v3046, %v3108
      %v3120 = vadd.f32 %v3047, %v3114
      %v3121 = vadd.f32 %v3048, %v3115
      %3122 = vset.pattern.permute.xlu0 59
      %3123 = vperm.xlu0 %3122, %v487
      %v3124 = vpop.permute.xlu0 %3123
      %v3126 = vmul.f32 %v2924, %v3124
      %v3127 = vmul.f32 %v2925, %v3124
      %v3128 = vmul.f32 %v2926, %v3124
      %3132 = vrot.lane.b32.xlu0 %v3126, 61
      %v3133 = vpop.permute.xlu0 %3132
      %3134 = vrot.lane.b32.xlu0 %v3127, 61
      %v3135 = vpop.permute.xlu0 %3134
      %3136 = vrot.lane.b32.xlu0 %v3128, 61
      %v3137 = vpop.permute.xlu0 %3136
      %v3138 = vsel %vm1909, %v3133, %v3135
      %v3139 = vsel %vm1909, %v3135, %v3137
      %v3143 = vadd.f32 %v3070, %v3133
      %v3144 = vadd.f32 %v3071, %v3138
      %v3145 = vadd.f32 %v3072, %v3139
      %3146 = vset.pattern.permute.xlu0 68
      %3147 = vperm.xlu0 %3146, %v483
      %v3148 = vpop.permute.xlu0 %3147
      %v3150 = vmul.f32 %v2924, %v3148
      %v3151 = vmul.f32 %v2925, %v3148
      %v3152 = vmul.f32 %v2926, %v3148
      %3156 = vrot.lane.b32.xlu0 %v3150, 28
      %v3157 = vpop.permute.xlu0 %3156
      %3158 = vrot.lane.b32.xlu0 %v3151, 28
      %v3159 = vpop.permute.xlu0 %3158
      %3160 = vrot.lane.b32.xlu0 %v3152, 28
      %v3161 = vpop.permute.xlu0 %3160
      %v3162 = vsel %vm2578, %v3157, %v3159
      %v3163 = vsel %vm2578, %v3159, %v3161
      %v3167 = vadd.f32 %v3094, %v3157
      %v3168 = vadd.f32 %v3095, %v3162
      %v3169 = vadd.f32 %v3096, %v3163
      %3170 = vset.pattern.permute.xlu0 68
      %3171 = vperm.xlu0 %3170, %v485
      %v3172 = vpop.permute.xlu0 %3171
      %v3174 = vmul.f32 %v2924, %v3172
      %v3175 = vmul.f32 %v2925, %v3172
      %v3176 = vmul.f32 %v2926, %v3172
      %3180 = vrot.lane.b32.xlu0 %v3174, 11
      %v3181 = vpop.permute.xlu0 %3180
      %3182 = vrot.lane.b32.xlu0 %v3175, 11
      %v3183 = vpop.permute.xlu0 %3182
      %3184 = vrot.lane.b32.xlu0 %v3176, 11
      %v3185 = vpop.permute.xlu0 %3184
      %vm3186 = vcmask 89088
      %v3187 = vsel %vm3186, %v3181, %v3183
      %v3188 = vsel %vm3186, %v3183, %v3185
      %v3192 = vadd.f32 %v3119, %v3181
      %v3193 = vadd.f32 %v3120, %v3187
      %v3194 = vadd.f32 %v3121, %v3188
      %3195 = vset.pattern.permute.xlu0 77
      %3196 = vperm.xlu0 %3195, %v485
      %v3197 = vpop.permute.xlu0 %3196
      %v3199 = vmul.f32 %v2924, %v3197
      %v3200 = vmul.f32 %v2925, %v3197
      %v3201 = vmul.f32 %v2926, %v3197
      %3205 = vrot.lane.b32.xlu0 %v3199, 123
      %v3206 = vpop.permute.xlu0 %3205
      %3207 = vrot.lane.b32.xlu0 %v3200, 123
      %v3208 = vpop.permute.xlu0 %3207
      %3209 = vrot.lane.b32.xlu0 %v3201, 123
      %v3210 = vpop.permute.xlu0 %3209
      %v3211 = vsel %vm2720, %v3206, %v3208
      %v3212 = vsel %vm2720, %v3208, %v3210
      %v3216 = vadd.f32 %v3192, %v3211
      %v3217 = vadd.f32 %v3193, %v3212
      %v3218 = vadd.f32 %v3194, %v3210
      %s3219 = scalar_lea.vmem %s4, 6
      %v3220 = vld [vmem:[%s3219] ss:$8 sm:$0x3]
      %v3222 = vlaneseq
      %v3223 = vshrl.u32 %v3222, 7
      %v3224 = vsub.s32 0, %v3223
      %v3225 = vrot.slane %v3220, %v3224
      %v3226 = vlaneseq
      %v3227 = vshrl.u32 %v3226, 7
      %v3228 = vsub.s32 1, %v3227
      %v3229 = vrot.slane %v3220, %v3228
      %v3232 = vmul.f32 %v479, %v3225
      %v3233 = vmul.f32 %v480, %v3229
      %3234 = vst [vmem:[#allocation2 + $0x8] sm:$0xff] %v3232
      %3235 = vst [vmem:[#allocation2 + $0x10] sm:$0xff] %v3233
      %v3236 = vld [vmem:[#allocation2] sm:$0xff]
      %v3237 = vld [vmem:[#allocation2 + $0x8] sm:$0xff]
      %v3238 = vld [vmem:[#allocation2 + $0x10] sm:$0xff]
      %3239 = vset.pattern.permute.xlu0 6
      %3240 = vperm.xlu0 %3239, %v485
      %v3241 = vpop.permute.xlu0 %3240
      %v3243 = vmul.f32 %v3236, %v3241
      %v3244 = vmul.f32 %v3237, %v3241
      %v3245 = vmul.f32 %v3238, %v3241
      %3249 = vrot.lane.b32.xlu0 %v3243, 122
      %v3250 = vpop.permute.xlu0 %3249
      %3251 = vrot.lane.b32.xlu0 %v3244, 122
      %v3252 = vpop.permute.xlu0 %3251
      %3253 = vrot.lane.b32.xlu0 %v3245, 122
      %v3254 = vpop.permute.xlu0 %3253
      %vm3255 = vcmask 998400
      %v3256 = vsel %vm3255, %v3250, %v3252
      %v3257 = vsel %vm3255, %v3252, %v3254
      %v3261 = vadd.f32 %v3216, %v3256
      %v3262 = vadd.f32 %v3217, %v3257
      %v3263 = vadd.f32 %v3218, %v3254
      %3264 = vset.pattern.permute.xlu0 15
      %3265 = vperm.xlu0 %3264, %v483
      %v3266 = vpop.permute.xlu0 %3265
      %v3268 = vmul.f32 %v3236, %v3266
      %v3269 = vmul.f32 %v3237, %v3266
      %v3270 = vmul.f32 %v3238, %v3266
      %3274 = vrot.lane.b32.xlu0 %v3268, 123
      %v3275 = vpop.permute.xlu0 %3274
      %3276 = vrot.lane.b32.xlu0 %v3269, 123
      %v3277 = vpop.permute.xlu0 %3276
      %3278 = vrot.lane.b32.xlu0 %v3270, 123
      %v3279 = vpop.permute.xlu0 %3278
      %v3280 = vsel %vm2720, %v3275, %v3277
      %v3281 = vsel %vm2720, %v3277, %v3279
      %v3285 = vadd.f32 %v3167, %v3280
      %v3286 = vadd.f32 %v3168, %v3281
      %v3287 = vadd.f32 %v3169, %v3279
      %3288 = vset.pattern.permute.xlu0 15
      %3289 = vperm.xlu0 %3288, %v485
      %v3290 = vpop.permute.xlu0 %3289
      %v3292 = vmul.f32 %v3236, %v3290
      %v3293 = vmul.f32 %v3237, %v3290
      %v3294 = vmul.f32 %v3238, %v3290
      %3298 = vrot.lane.b32.xlu0 %v3292, 106
      %v3299 = vpop.permute.xlu0 %3298
      %3300 = vrot.lane.b32.xlu0 %v3293, 106
      %v3301 = vpop.permute.xlu0 %3300
      %3302 = vrot.lane.b32.xlu0 %v3294, 106
      %v3303 = vpop.permute.xlu0 %3302
      %vm3304 = vcmask 867328
      %v3305 = vsel %vm3304, %v3299, %v3301
      %v3306 = vsel %vm3304, %v3301, %v3303
      %v3310 = vadd.f32 %v3261, %v3305
      %v3311 = vadd.f32 %v3262, %v3306
      %v3312 = vadd.f32 %v3263, %v3303
      %3313 = vset.pattern.permute.xlu0 24
      %3314 = vperm.xlu0 %3313, %v483
      %v3315 = vpop.permute.xlu0 %3314
      %v3317 = vmul.f32 %v3236, %v3315
      %v3318 = vmul.f32 %v3237, %v3315
      %v3319 = vmul.f32 %v3238, %v3315
      %3323 = vrot.lane.b32.xlu0 %v3317, 107
      %v3324 = vpop.permute.xlu0 %3323
      %3325 = vrot.lane.b32.xlu0 %v3318, 107
      %v3326 = vpop.permute.xlu0 %3325
      %3327 = vrot.lane.b32.xlu0 %v3319, 107
      %v3328 = vpop.permute.xlu0 %3327
      %v3329 = vsel %vm2769, %v3324, %v3326
      %v3330 = vsel %vm2769, %v3326, %v3328
      %v3334 = vadd.f32 %v3285, %v3329
      %v3335 = vadd.f32 %v3286, %v3330
      %v3336 = vadd.f32 %v3287, %v3328
      %3337 = vset.pattern.permute.xlu0 24
      %3338 = vperm.xlu0 %3337, %v485
      %v3339 = vpop.permute.xlu0 %3338
      %v3341 = vmul.f32 %v3236, %v3339
      %v3342 = vmul.f32 %v3237, %v3339
      %v3343 = vmul.f32 %v3238, %v3339
      %3347 = vrot.lane.b32.xlu0 %v3341, 90
      %v3348 = vpop.permute.xlu0 %3347
      %3349 = vrot.lane.b32.xlu0 %v3342, 90
      %v3350 = vpop.permute.xlu0 %3349
      %3351 = vrot.lane.b32.xlu0 %v3343, 90
      %v3352 = vpop.permute.xlu0 %3351
      %vm3353 = vcmask 736256
      %v3354 = vsel %vm3353, %v3348, %v3350
      %v3355 = vsel %vm3353, %v3350, %v3352
      %v3359 = vadd.f32 %v3310, %v3354
      %v3360 = vadd.f32 %v3311, %v3355
      %v3361 = vadd.f32 %v3312, %v3352
      %3362 = vset.pattern.permute.xlu0 24
      %3363 = vperm.xlu0 %3362, %v487
      %v3364 = vpop.permute.xlu0 %3363
      %v3366 = vmul.f32 %v3236, %v3364
      %v3367 = vmul.f32 %v3237, %v3364
      %v3368 = vmul.f32 %v3238, %v3364
      %3372 = vrot.lane.b32.xlu0 %v3366, 124
      %v3373 = vpop.permute.xlu0 %3372
      %3374 = vrot.lane.b32.xlu0 %v3367, 124
      %v3375 = vpop.permute.xlu0 %3374
      %3376 = vrot.lane.b32.xlu0 %v3368, 124
      %v3377 = vpop.permute.xlu0 %3376
      %v3378 = vsel %vm2200, %v3373, %v3375
      %v3379 = vsel %vm2200, %v3375, %v3377
      %v3383 = vadd.f32 %v3143, %v3378
      %v3384 = vadd.f32 %v3144, %v3379
      %v3385 = vadd.f32 %v3145, %v3377
      %3386 = vset.pattern.permute.xlu0 33
      %3387 = vperm.xlu0 %3386, %v483
      %v3388 = vpop.permute.xlu0 %3387
      %v3390 = vmul.f32 %v3236, %v3388
      %v3391 = vmul.f32 %v3237, %v3388
      %v3392 = vmul.f32 %v3238, %v3388
      %3396 = vrot.lane.b32.xlu0 %v3390, 91
      %v3397 = vpop.permute.xlu0 %3396
      %3398 = vrot.lane.b32.xlu0 %v3391, 91
      %v3399 = vpop.permute.xlu0 %3398
      %3400 = vrot.lane.b32.xlu0 %v3392, 91
      %v3401 = vpop.permute.xlu0 %3400
      %v3402 = vsel %vm2818, %v3397, %v3399
      %v3403 = vsel %vm2818, %v3399, %v3401
      %v3407 = vadd.f32 %v3334, %v3402
      %v3408 = vadd.f32 %v3335, %v3403
      %v3409 = vadd.f32 %v3336, %v3401
      %3410 = vset.pattern.permute.xlu0 33
      %3411 = vperm.xlu0 %3410, %v485
      %v3412 = vpop.permute.xlu0 %3411
      %v3414 = vmul.f32 %v3236, %v3412
      %v3415 = vmul.f32 %v3237, %v3412
      %v3416 = vmul.f32 %v3238, %v3412
      %3420 = vrot.lane.b32.xlu0 %v3414, 74
      %v3421 = vpop.permute.xlu0 %3420
      %3422 = vrot.lane.b32.xlu0 %v3415, 74
      %v3423 = vpop.permute.xlu0 %3422
      %3424 = vrot.lane.b32.xlu0 %v3416, 74
      %v3425 = vpop.permute.xlu0 %3424
      %vm3426 = vcmask 605184
      %v3427 = vsel %vm3426, %v3421, %v3423
      %v3428 = vsel %vm3426, %v3423, %v3425
      %v3432 = vadd.f32 %v3359, %v3427
      %v3433 = vadd.f32 %v3360, %v3428
      %v3434 = vadd.f32 %v3361, %v3425
      %3435 = vset.pattern.permute.xlu0 33
      %3436 = vperm.xlu0 %3435, %v487
      %v3437 = vpop.permute.xlu0 %3436
      %v3439 = vmul.f32 %v3236, %v3437
      %v3440 = vmul.f32 %v3237, %v3437
      %v3441 = vmul.f32 %v3238, %v3437
      %3445 = vrot.lane.b32.xlu0 %v3439, 108
      %v3446 = vpop.permute.xlu0 %3445
      %3447 = vrot.lane.b32.xlu0 %v3440, 108
      %v3448 = vpop.permute.xlu0 %3447
      %3449 = vrot.lane.b32.xlu0 %v3441, 108
      %v3450 = vpop.permute.xlu0 %3449
      %v3451 = vsel %vm2249, %v3446, %v3448
      %v3452 = vsel %vm2249, %v3448, %v3450
      %v3456 = vadd.f32 %v3383, %v3451
      %v3457 = vadd.f32 %v3384, %v3452
      %v3458 = vadd.f32 %v3385, %v3450
      %v3459 = vld [vmem:[#allocation2 + $0x8] sm:$0xff]
      %v3460 = vld [vmem:[#allocation2 + $0x10] sm:$0xff]
      %v3461 = vld [vmem:[#allocation2 + $0x18] sm:$0xff]
      %3462 = vset.pattern.permute.xlu0 42
      %3463 = vperm.xlu0 %3462, %v483
      %v3464 = vpop.permute.xlu0 %3463
      %v3466 = vmul.f32 %v3459, %v3464
      %v3467 = vmul.f32 %v3460, %v3464
      %v3468 = vmul.f32 %v3461, %v3464
      %3472 = vrot.lane.b32.xlu0 %v3466, 75
      %v3473 = vpop.permute.xlu0 %3472
      %3474 = vrot.lane.b32.xlu0 %v3467, 75
      %v3475 = vpop.permute.xlu0 %3474
      %3476 = vrot.lane.b32.xlu0 %v3468, 75
      %v3477 = vpop.permute.xlu0 %3476
      %v3478 = vsel %vm2891, %v3473, %v3475
      %v3479 = vsel %vm2891, %v3475, %v3477
      %v3483 = vadd.f32 %v3407, %v3473
      %v3484 = vadd.f32 %v3408, %v3478
      %v3485 = vadd.f32 %v3409, %v3479
      %3486 = vset.pattern.permute.xlu0 42
      %3487 = vperm.xlu0 %3486, %v485
      %v3488 = vpop.permute.xlu0 %3487
      %v3490 = vmul.f32 %v3459, %v3488
      %v3491 = vmul.f32 %v3460, %v3488
      %v3492 = vmul.f32 %v3461, %v3488
      %3496 = vrot.lane.b32.xlu0 %v3490, 58
      %v3497 = vpop.permute.xlu0 %3496
      %3498 = vrot.lane.b32.xlu0 %v3491, 58
      %v3499 = vpop.permute.xlu0 %3498
      %3500 = vrot.lane.b32.xlu0 %v3492, 58
      %v3501 = vpop.permute.xlu0 %3500
      %vm3502 = vcmask 474112
      %v3503 = vsel %vm3502, %v3497, %v3499
      %v3504 = vsel %vm3502, %v3499, %v3501
      %v3508 = vadd.f32 %v3432, %v3497
      %v3509 = vadd.f32 %v3433, %v3503
      %v3510 = vadd.f32 %v3434, %v3504
      %3511 = vset.pattern.permute.xlu0 42
      %3512 = vperm.xlu0 %3511, %v487
      %v3513 = vpop.permute.xlu0 %3512
      %v3515 = vmul.f32 %v3459, %v3513
      %v3516 = vmul.f32 %v3460, %v3513
      %v3517 = vmul.f32 %v3461, %v3513
      %3521 = vrot.lane.b32.xlu0 %v3515, 92
      %v3522 = vpop.permute.xlu0 %3521
      %3523 = vrot.lane.b32.xlu0 %v3516, 92
      %v3524 = vpop.permute.xlu0 %3523
      %3525 = vrot.lane.b32.xlu0 %v3517, 92
      %v3526 = vpop.permute.xlu0 %3525
      %v3527 = vsel %vm2298, %v3522, %v3524
      %v3528 = vsel %vm2298, %v3524, %v3526
      %v3532 = vadd.f32 %v3456, %v3522
      %v3533 = vadd.f32 %v3457, %v3527
      %v3534 = vadd.f32 %v3458, %v3528
      %3535 = vset.pattern.permute.xlu0 51
      %3536 = vperm.xlu0 %3535, %v483
      %v3537 = vpop.permute.xlu0 %3536
      %v3539 = vmul.f32 %v3459, %v3537
      %v3540 = vmul.f32 %v3460, %v3537
      %v3541 = vmul.f32 %v3461, %v3537
      %3545 = vrot.lane.b32.xlu0 %v3539, 59
      %v3546 = vpop.permute.xlu0 %3545
      %3547 = vrot.lane.b32.xlu0 %v3540, 59
      %v3548 = vpop.permute.xlu0 %3547
      %3549 = vrot.lane.b32.xlu0 %v3541, 59
      %v3550 = vpop.permute.xlu0 %3549
      %v3551 = vsel %vm2967, %v3546, %v3548
      %v3552 = vsel %vm2967, %v3548, %v3550
      %v3556 = vadd.f32 %v3483, %v3546
      %v3557 = vadd.f32 %v3484, %v3551
      %v3558 = vadd.f32 %v3485, %v3552
      %3559 = vset.pattern.permute.xlu0 51
      %3560 = vperm.xlu0 %3559, %v485
      %v3561 = vpop.permute.xlu0 %3560
      %v3563 = vmul.f32 %v3459, %v3561
      %v3564 = vmul.f32 %v3460, %v3561
      %v3565 = vmul.f32 %v3461, %v3561
      %3569 = vrot.lane.b32.xlu0 %v3563, 42
      %v3570 = vpop.permute.xlu0 %3569
      %3571 = vrot.lane.b32.xlu0 %v3564, 42
      %v3572 = vpop.permute.xlu0 %3571
      %3573 = vrot.lane.b32.xlu0 %v3565, 42
      %v3574 = vpop.permute.xlu0 %3573
      %vm3575 = vcmask 343040
      %v3576 = vsel %vm3575, %v3570, %v3572
      %v3577 = vsel %vm3575, %v3572, %v3574
      %v3581 = vadd.f32 %v3508, %v3570
      %v3582 = vadd.f32 %v3509, %v3576
      %v3583 = vadd.f32 %v3510, %v3577
      %3584 = vset.pattern.permute.xlu0 51
      %3585 = vperm.xlu0 %3584, %v487
      %v3586 = vpop.permute.xlu0 %3585
      %v3588 = vmul.f32 %v3459, %v3586
      %v3589 = vmul.f32 %v3460, %v3586
      %v3590 = vmul.f32 %v3461, %v3586
      %3594 = vrot.lane.b32.xlu0 %v3588, 76
      %v3595 = vpop.permute.xlu0 %3594
      %3596 = vrot.lane.b32.xlu0 %v3589, 76
      %v3597 = vpop.permute.xlu0 %3596
      %3598 = vrot.lane.b32.xlu0 %v3590, 76
      %v3599 = vpop.permute.xlu0 %3598
      %v3600 = vsel %vm2371, %v3595, %v3597
      %v3601 = vsel %vm2371, %v3597, %v3599
      %v3605 = vadd.f32 %v3532, %v3595
      %v3606 = vadd.f32 %v3533, %v3600
      %v3607 = vadd.f32 %v3534, %v3601
      %3608 = vset.pattern.permute.xlu0 60
      %3609 = vperm.xlu0 %3608, %v483
      %v3610 = vpop.permute.xlu0 %3609
      %v3612 = vmul.f32 %v3459, %v3610
      %v3613 = vmul.f32 %v3460, %v3610
      %v3614 = vmul.f32 %v3461, %v3610
      %3618 = vrot.lane.b32.xlu0 %v3612, 43
      %v3619 = vpop.permute.xlu0 %3618
      %3620 = vrot.lane.b32.xlu0 %v3613, 43
      %v3621 = vpop.permute.xlu0 %3620
      %3622 = vrot.lane.b32.xlu0 %v3614, 43
      %v3623 = vpop.permute.xlu0 %3622
      %v3624 = vsel %vm3040, %v3619, %v3621
      %v3625 = vsel %vm3040, %v3621, %v3623
      %v3629 = vadd.f32 %v3556, %v3619
      %v3630 = vadd.f32 %v3557, %v3624
      %v3631 = vadd.f32 %v3558, %v3625
      %3632 = vset.pattern.permute.xlu0 60
      %3633 = vperm.xlu0 %3632, %v485
      %v3634 = vpop.permute.xlu0 %3633
      %v3636 = vmul.f32 %v3459, %v3634
      %v3637 = vmul.f32 %v3460, %v3634
      %v3638 = vmul.f32 %v3461, %v3634
      %3642 = vrot.lane.b32.xlu0 %v3636, 26
      %v3643 = vpop.permute.xlu0 %3642
      %3644 = vrot.lane.b32.xlu0 %v3637, 26
      %v3645 = vpop.permute.xlu0 %3644
      %3646 = vrot.lane.b32.xlu0 %v3638, 26
      %v3647 = vpop.permute.xlu0 %3646
      %vm3648 = vcmask 211968
      %v3649 = vsel %vm3648, %v3643, %v3645
      %v3650 = vsel %vm3648, %v3645, %v3647
      %v3654 = vadd.f32 %v3581, %v3643
      %v3655 = vadd.f32 %v3582, %v3649
      %v3656 = vadd.f32 %v3583, %v3650
      %3657 = vset.pattern.permute.xlu0 60
      %3658 = vperm.xlu0 %3657, %v487
      %v3659 = vpop.permute.xlu0 %3658
      %v3661 = vmul.f32 %v3459, %v3659
      %v3662 = vmul.f32 %v3460, %v3659
      %v3663 = vmul.f32 %v3461, %v3659
      %3667 = vrot.lane.b32.xlu0 %v3661, 60
      %v3668 = vpop.permute.xlu0 %3667
      %3669 = vrot.lane.b32.xlu0 %v3662, 60
      %v3670 = vpop.permute.xlu0 %3669
      %3671 = vrot.lane.b32.xlu0 %v3663, 60
      %v3672 = vpop.permute.xlu0 %3671
      %v3673 = vsel %vm2435, %v3668, %v3670
      %v3674 = vsel %vm2435, %v3670, %v3672
      %v3678 = vadd.f32 %v3605, %v3668
      %v3679 = vadd.f32 %v3606, %v3673
      %v3680 = vadd.f32 %v3607, %v3674
      %3681 = vset.pattern.permute.xlu0 69
      %3682 = vperm.xlu0 %3681, %v483
      %v3683 = vpop.permute.xlu0 %3682
      %v3685 = vmul.f32 %v3459, %v3683
      %v3686 = vmul.f32 %v3460, %v3683
      %v3687 = vmul.f32 %v3461, %v3683
      %3691 = vrot.lane.b32.xlu0 %v3685, 27
      %v3692 = vpop.permute.xlu0 %3691
      %3693 = vrot.lane.b32.xlu0 %v3686, 27
      %v3694 = vpop.permute.xlu0 %3693
      %3695 = vrot.lane.b32.xlu0 %v3687, 27
      %v3696 = vpop.permute.xlu0 %3695
      %v3697 = vsel %vm3113, %v3692, %v3694
      %v3698 = vsel %vm3113, %v3694, %v3696
      %v3702 = vadd.f32 %v3629, %v3692
      %v3703 = vadd.f32 %v3630, %v3697
      %v3704 = vadd.f32 %v3631, %v3698
      %3705 = vset.pattern.permute.xlu0 69
      %3706 = vperm.xlu0 %3705, %v485
      %v3707 = vpop.permute.xlu0 %3706
      %v3709 = vmul.f32 %v3459, %v3707
      %v3710 = vmul.f32 %v3460, %v3707
      %v3711 = vmul.f32 %v3461, %v3707
      %3715 = vrot.lane.b32.xlu0 %v3709, 10
      %v3716 = vpop.permute.xlu0 %3715
      %3717 = vrot.lane.b32.xlu0 %v3710, 10
      %v3718 = vpop.permute.xlu0 %3717
      %3719 = vrot.lane.b32.xlu0 %v3711, 10
      %v3720 = vpop.permute.xlu0 %3719
      %vm3721 = vcmask 80896
      %v3722 = vsel %vm3721, %v3716, %v3718
      %v3723 = vsel %vm3721, %v3718, %v3720
      %v3727 = vadd.f32 %v3654, %v3716
      %v3728 = vadd.f32 %v3655, %v3722
      %v3729 = vadd.f32 %v3656, %v3723
      %3730 = vset.pattern.permute.xlu0 78
      %3731 = vperm.xlu0 %3730, %v485
      %v3732 = vpop.permute.xlu0 %3731
      %v3734 = vmul.f32 %v3459, %v3732
      %v3735 = vmul.f32 %v3460, %v3732
      %v3736 = vmul.f32 %v3461, %v3732
      %3740 = vrot.lane.b32.xlu0 %v3734, 122
      %v3741 = vpop.permute.xlu0 %3740
      %3742 = vrot.lane.b32.xlu0 %v3735, 122
      %v3743 = vpop.permute.xlu0 %3742
      %3744 = vrot.lane.b32.xlu0 %v3736, 122
      %v3745 = vpop.permute.xlu0 %3744
      %v3746 = vsel %vm3255, %v3741, %v3743
      %v3747 = vsel %vm3255, %v3743, %v3745
      %v3751 = vadd.f32 %v3727, %v3746
      %v3752 = vadd.f32 %v3728, %v3747
      %v3753 = vadd.f32 %v3729, %v3745
      %s3754 = scalar_lea.vmem %s4, 7
      %v3755 = vld [vmem:[%s3754] ss:$8 sm:$0x3]
      %v3757 = vlaneseq
      %v3758 = vshrl.u32 %v3757, 7
      %v3759 = vsub.s32 0, %v3758
      %v3760 = vrot.slane %v3755, %v3759
      %v3761 = vlaneseq
      %v3762 = vshrl.u32 %v3761, 7
      %v3763 = vsub.s32 1, %v3762
      %v3764 = vrot.slane %v3755, %v3763
      %v3767 = vmul.f32 %v479, %v3760
      %v3768 = vmul.f32 %v480, %v3764
      %3769 = vst [vmem:[#allocation2 + $0x8] sm:$0xff] %v3767
      %3770 = vst [vmem:[#allocation2 + $0x10] sm:$0xff] %v3768
      %v3771 = vld [vmem:[#allocation2] sm:$0xff]
      %v3772 = vld [vmem:[#allocation2 + $0x8] sm:$0xff]
      %v3773 = vld [vmem:[#allocation2 + $0x10] sm:$0xff]
      %3774 = vset.pattern.permute.xlu0 7
      %3775 = vperm.xlu0 %3774, %v485
      %v3776 = vpop.permute.xlu0 %3775
      %v3778 = vmul.f32 %v3771, %v3776
      %v3779 = vmul.f32 %v3772, %v3776
      %v3780 = vmul.f32 %v3773, %v3776
      %3784 = vrot.lane.b32.xlu0 %v3778, 121
      %v3785 = vpop.permute.xlu0 %3784
      %3786 = vrot.lane.b32.xlu0 %v3779, 121
      %v3787 = vpop.permute.xlu0 %3786
      %3788 = vrot.lane.b32.xlu0 %v3780, 121
      %v3789 = vpop.permute.xlu0 %3788
      %vm3790 = vcmask 990208
      %v3791 = vsel %vm3790, %v3785, %v3787
      %v3792 = vsel %vm3790, %v3787, %v3789
      %v3796 = vadd.f32 %v3751, %v3791
      %v3797 = vadd.f32 %v3752, %v3792
      %v3798 = vadd.f32 %v3753, %v3789
      %3799 = vset.pattern.permute.xlu0 16
      %3800 = vperm.xlu0 %3799, %v483
      %v3801 = vpop.permute.xlu0 %3800
      %v3803 = vmul.f32 %v3771, %v3801
      %v3804 = vmul.f32 %v3772, %v3801
      %v3805 = vmul.f32 %v3773, %v3801
      %3809 = vrot.lane.b32.xlu0 %v3803, 122
      %v3810 = vpop.permute.xlu0 %3809
      %3811 = vrot.lane.b32.xlu0 %v3804, 122
      %v3812 = vpop.permute.xlu0 %3811
      %3813 = vrot.lane.b32.xlu0 %v3805, 122
      %v3814 = vpop.permute.xlu0 %3813
      %v3815 = vsel %vm3255, %v3810, %v3812
      %v3816 = vsel %vm3255, %v3812, %v3814
      %v3820 = vadd.f32 %v3702, %v3815
      %v3821 = vadd.f32 %v3703, %v3816
      %v3822 = vadd.f32 %v3704, %v3814
      %3823 = vset.pattern.permute.xlu0 16
      %3824 = vperm.xlu0 %3823, %v485
      %v3825 = vpop.permute.xlu0 %3824
      %v3827 = vmul.f32 %v3771, %v3825
      %v3828 = vmul.f32 %v3772, %v3825
      %v3829 = vmul.f32 %v3773, %v3825
      %3833 = vrot.lane.b32.xlu0 %v3827, 105
      %v3834 = vpop.permute.xlu0 %3833
      %3835 = vrot.lane.b32.xlu0 %v3828, 105
      %v3836 = vpop.permute.xlu0 %3835
      %3837 = vrot.lane.b32.xlu0 %v3829, 105
      %v3838 = vpop.permute.xlu0 %3837
      %vm3839 = vcmask 859136
      %v3840 = vsel %vm3839, %v3834, %v3836
      %v3841 = vsel %vm3839, %v3836, %v3838
      %v3845 = vadd.f32 %v3796, %v3840
      %v3846 = vadd.f32 %v3797, %v3841
      %v3847 = vadd.f32 %v3798, %v3838
      %3848 = vset.pattern.permute.xlu0 25
      %3849 = vperm.xlu0 %3848, %v483
      %v3850 = vpop.permute.xlu0 %3849
      %v3852 = vmul.f32 %v3771, %v3850
      %v3853 = vmul.f32 %v3772, %v3850
      %v3854 = vmul.f32 %v3773, %v3850
      %3858 = vrot.lane.b32.xlu0 %v3852, 106
      %v3859 = vpop.permute.xlu0 %3858
      %3860 = vrot.lane.b32.xlu0 %v3853, 106
      %v3861 = vpop.permute.xlu0 %3860
      %3862 = vrot.lane.b32.xlu0 %v3854, 106
      %v3863 = vpop.permute.xlu0 %3862
      %v3864 = vsel %vm3304, %v3859, %v3861
      %v3865 = vsel %vm3304, %v3861, %v3863
      %v3869 = vadd.f32 %v3820, %v3864
      %v3870 = vadd.f32 %v3821, %v3865
      %v3871 = vadd.f32 %v3822, %v3863
      %3872 = vset.pattern.permute.xlu0 25
      %3873 = vperm.xlu0 %3872, %v485
      %v3874 = vpop.permute.xlu0 %3873
      %v3876 = vmul.f32 %v3771, %v3874
      %v3877 = vmul.f32 %v3772, %v3874
      %v3878 = vmul.f32 %v3773, %v3874
      %3882 = vrot.lane.b32.xlu0 %v3876, 89
      %v3883 = vpop.permute.xlu0 %3882
      %3884 = vrot.lane.b32.xlu0 %v3877, 89
      %v3885 = vpop.permute.xlu0 %3884
      %3886 = vrot.lane.b32.xlu0 %v3878, 89
      %v3887 = vpop.permute.xlu0 %3886
      %vm3888 = vcmask 728064
      %v3889 = vsel %vm3888, %v3883, %v3885
      %v3890 = vsel %vm3888, %v3885, %v3887
      %v3894 = vadd.f32 %v3845, %v3889
      %v3895 = vadd.f32 %v3846, %v3890
      %v3896 = vadd.f32 %v3847, %v3887
      %3897 = vset.pattern.permute.xlu0 34
      %3898 = vperm.xlu0 %3897, %v483
      %v3899 = vpop.permute.xlu0 %3898
      %v3901 = vmul.f32 %v3771, %v3899
      %v3902 = vmul.f32 %v3772, %v3899
      %v3903 = vmul.f32 %v3773, %v3899
      %3907 = vrot.lane.b32.xlu0 %v3901, 90
      %v3908 = vpop.permute.xlu0 %3907
      %3909 = vrot.lane.b32.xlu0 %v3902, 90
      %v3910 = vpop.permute.xlu0 %3909
      %3911 = vrot.lane.b32.xlu0 %v3903, 90
      %v3912 = vpop.permute.xlu0 %3911
      %v3913 = vsel %vm3353, %v3908, %v3910
      %v3914 = vsel %vm3353, %v3910, %v3912
      %v3918 = vadd.f32 %v3869, %v3913
      %v3919 = vadd.f32 %v3870, %v3914
      %v3920 = vadd.f32 %v3871, %v3912
      %3921 = vset.pattern.permute.xlu0 34
      %3922 = vperm.xlu0 %3921, %v485
      %v3923 = vpop.permute.xlu0 %3922
      %v3925 = vmul.f32 %v3771, %v3923
      %v3926 = vmul.f32 %v3772, %v3923
      %v3927 = vmul.f32 %v3773, %v3923
      %3931 = vrot.lane.b32.xlu0 %v3925, 73
      %v3932 = vpop.permute.xlu0 %3931
      %3933 = vrot.lane.b32.xlu0 %v3926, 73
      %v3934 = vpop.permute.xlu0 %3933
      %3935 = vrot.lane.b32.xlu0 %v3927, 73
      %v3936 = vpop.permute.xlu0 %3935
      %vm3937 = vcmask 596992
      %v3938 = vsel %vm3937, %v3932, %v3934
      %v3939 = vsel %vm3937, %v3934, %v3936
      %v3943 = vadd.f32 %v3894, %v3938
      %v3944 = vadd.f32 %v3895, %v3939
      %v3945 = vadd.f32 %v3896, %v3936
      %v3946 = vld [vmem:[#allocation2 + $0x8] sm:$0xff]
      %v3947 = vld [vmem:[#allocation2 + $0x10] sm:$0xff]
      %v3948 = vld [vmem:[#allocation2 + $0x18] sm:$0xff]
      %3949 = vset.pattern.permute.xlu0 43
      %3950 = vperm.xlu0 %3949, %v483
      %v3951 = vpop.permute.xlu0 %3950
      %v3953 = vmul.f32 %v3946, %v3951
      %v3954 = vmul.f32 %v3947, %v3951
      %v3955 = vmul.f32 %v3948, %v3951
      %3959 = vrot.lane.b32.xlu0 %v3953, 74
      %v3960 = vpop.permute.xlu0 %3959
      %3961 = vrot.lane.b32.xlu0 %v3954, 74
      %v3962 = vpop.permute.xlu0 %3961
      %3963 = vrot.lane.b32.xlu0 %v3955, 74
      %v3964 = vpop.permute.xlu0 %3963
      %v3965 = vsel %vm3426, %v3960, %v3962
      %v3966 = vsel %vm3426, %v3962, %v3964
      %v3970 = vadd.f32 %v3918, %v3960
      %v3971 = vadd.f32 %v3919, %v3965
      %v3972 = vadd.f32 %v3920, %v3966
      %3973 = vset.pattern.permute.xlu0 43
      %3974 = vperm.xlu0 %3973, %v485
      %v3975 = vpop.permute.xlu0 %3974
      %v3977 = vmul.f32 %v3946, %v3975
      %v3978 = vmul.f32 %v3947, %v3975
      %v3979 = vmul.f32 %v3948, %v3975
      %3983 = vrot.lane.b32.xlu0 %v3977, 57
      %v3984 = vpop.permute.xlu0 %3983
      %3985 = vrot.lane.b32.xlu0 %v3978, 57
      %v3986 = vpop.permute.xlu0 %3985
      %3987 = vrot.lane.b32.xlu0 %v3979, 57
      %v3988 = vpop.permute.xlu0 %3987
      %vm3989 = vcmask 465920
      %v3990 = vsel %vm3989, %v3984, %v3986
      %v3991 = vsel %vm3989, %v3986, %v3988
      %v3995 = vadd.f32 %v3943, %v3984
      %v3996 = vadd.f32 %v3944, %v3990
      %v3997 = vadd.f32 %v3945, %v3991
      %3998 = vset.pattern.permute.xlu0 52
      %3999 = vperm.xlu0 %3998, %v483
      %v4000 = vpop.permute.xlu0 %3999
      %v4002 = vmul.f32 %v3946, %v4000
      %v4003 = vmul.f32 %v3947, %v4000
      %v4004 = vmul.f32 %v3948, %v4000
      %4008 = vrot.lane.b32.xlu0 %v4002, 58
      %v4009 = vpop.permute.xlu0 %4008
      %4010 = vrot.lane.b32.xlu0 %v4003, 58
      %v4011 = vpop.permute.xlu0 %4010
      %4012 = vrot.lane.b32.xlu0 %v4004, 58
      %v4013 = vpop.permute.xlu0 %4012
      %v4014 = vsel %vm3502, %v4009, %v4011
      %v4015 = vsel %vm3502, %v4011, %v4013
      %v4019 = vadd.f32 %v3970, %v4009
      %v4020 = vadd.f32 %v3971, %v4014
      %v4021 = vadd.f32 %v3972, %v4015
      %4022 = vset.pattern.permute.xlu0 52
      %4023 = vperm.xlu0 %4022, %v485
      %v4024 = vpop.permute.xlu0 %4023
      %v4026 = vmul.f32 %v3946, %v4024
      %v4027 = vmul.f32 %v3947, %v4024
      %v4028 = vmul.f32 %v3948, %v4024
      %4032 = vrot.lane.b32.xlu0 %v4026, 41
      %v4033 = vpop.permute.xlu0 %4032
      %4034 = vrot.lane.b32.xlu0 %v4027, 41
      %v4035 = vpop.permute.xlu0 %4034
      %4036 = vrot.lane.b32.xlu0 %v4028, 41
      %v4037 = vpop.permute.xlu0 %4036
      %vm4038 = vcmask 334848
      %v4039 = vsel %vm4038, %v4033, %v4035
      %v4040 = vsel %vm4038, %v4035, %v4037
      %v4044 = vadd.f32 %v3995, %v4033
      %v4045 = vadd.f32 %v3996, %v4039
      %v4046 = vadd.f32 %v3997, %v4040
      %4047 = vset.pattern.permute.xlu0 61
      %4048 = vperm.xlu0 %4047, %v483
      %v4049 = vpop.permute.xlu0 %4048
      %v4051 = vmul.f32 %v3946, %v4049
      %v4052 = vmul.f32 %v3947, %v4049
      %v4053 = vmul.f32 %v3948, %v4049
      %4057 = vrot.lane.b32.xlu0 %v4051, 42
      %v4058 = vpop.permute.xlu0 %4057
      %4059 = vrot.lane.b32.xlu0 %v4052, 42
      %v4060 = vpop.permute.xlu0 %4059
      %4061 = vrot.lane.b32.xlu0 %v4053, 42
      %v4062 = vpop.permute.xlu0 %4061
      %v4063 = vsel %vm3575, %v4058, %v4060
      %v4064 = vsel %vm3575, %v4060, %v4062
      %v4068 = vadd.f32 %v4019, %v4058
      %v4069 = vadd.f32 %v4020, %v4063
      %v4070 = vadd.f32 %v4021, %v4064
      %4071 = vset.pattern.permute.xlu0 61
      %4072 = vperm.xlu0 %4071, %v485
      %v4073 = vpop.permute.xlu0 %4072
      %v4075 = vmul.f32 %v3946, %v4073
      %v4076 = vmul.f32 %v3947, %v4073
      %v4077 = vmul.f32 %v3948, %v4073
      %4081 = vrot.lane.b32.xlu0 %v4075, 25
      %v4082 = vpop.permute.xlu0 %4081
      %4083 = vrot.lane.b32.xlu0 %v4076, 25
      %v4084 = vpop.permute.xlu0 %4083
      %4085 = vrot.lane.b32.xlu0 %v4077, 25
      %v4086 = vpop.permute.xlu0 %4085
      %vm4087 = vcmask 203776
      %v4088 = vsel %vm4087, %v4082, %v4084
      %v4089 = vsel %vm4087, %v4084, %v4086
      %v4093 = vadd.f32 %v4044, %v4082
      %v4094 = vadd.f32 %v4045, %v4088
      %v4095 = vadd.f32 %v4046, %v4089
      %4096 = vset.pattern.permute.xlu0 70
      %4097 = vperm.xlu0 %4096, %v483
      %v4098 = vpop.permute.xlu0 %4097
      %v4100 = vmul.f32 %v3946, %v4098
      %v4101 = vmul.f32 %v3947, %v4098
      %v4102 = vmul.f32 %v3948, %v4098
      %4106 = vrot.lane.b32.xlu0 %v4100, 26
      %v4107 = vpop.permute.xlu0 %4106
      %4108 = vrot.lane.b32.xlu0 %v4101, 26
      %v4109 = vpop.permute.xlu0 %4108
      %4110 = vrot.lane.b32.xlu0 %v4102, 26
      %v4111 = vpop.permute.xlu0 %4110
      %v4112 = vsel %vm3648, %v4107, %v4109
      %v4113 = vsel %vm3648, %v4109, %v4111
      %v4117 = vadd.f32 %v4068, %v4107
      %v4118 = vadd.f32 %v4069, %v4112
      %v4119 = vadd.f32 %v4070, %v4113
      %4120 = vset.pattern.permute.xlu0 70
      %4121 = vperm.xlu0 %4120, %v485
      %v4122 = vpop.permute.xlu0 %4121
      %v4124 = vmul.f32 %v3946, %v4122
      %v4125 = vmul.f32 %v3947, %v4122
      %v4126 = vmul.f32 %v3948, %v4122
      %4130 = vrot.lane.b32.xlu0 %v4124, 9
      %v4131 = vpop.permute.xlu0 %4130
      %4132 = vrot.lane.b32.xlu0 %v4125, 9
      %v4133 = vpop.permute.xlu0 %4132
      %4134 = vrot.lane.b32.xlu0 %v4126, 9
      %v4135 = vpop.permute.xlu0 %4134
      %vm4136 = vcmask 72704
      %v4137 = vsel %vm4136, %v4131, %v4133
      %v4138 = vsel %vm4136, %v4133, %v4135
      %v4142 = vadd.f32 %v4093, %v4131
      %v4143 = vadd.f32 %v4094, %v4137
      %v4144 = vadd.f32 %v4095, %v4138
      %4145 = vset.pattern.permute.xlu0 79
      %4146 = vperm.xlu0 %4145, %v485
      %v4147 = vpop.permute.xlu0 %4146
      %v4149 = vmul.f32 %v3946, %v4147
      %v4150 = vmul.f32 %v3947, %v4147
      %v4151 = vmul.f32 %v3948, %v4147
      %4155 = vrot.lane.b32.xlu0 %v4149, 121
      %v4156 = vpop.permute.xlu0 %4155
      %4157 = vrot.lane.b32.xlu0 %v4150, 121
      %v4158 = vpop.permute.xlu0 %4157
      %4159 = vrot.lane.b32.xlu0 %v4151, 121
      %v4160 = vpop.permute.xlu0 %4159
      %v4161 = vsel %vm3790, %v4156, %v4158
      %v4162 = vsel %vm3790, %v4158, %v4160
      %v4166 = vadd.f32 %v4142, %v4161
      %v4167 = vadd.f32 %v4143, %v4162
      %v4168 = vadd.f32 %v4144, %v4160
      %s4169 = scalar_lea.vmem %s4, 16
      %v4170 = vld [vmem:[%s4169] ss:$8 sm:$0x3]
      %v4172 = vlaneseq
      %v4173 = vshrl.u32 %v4172, 7
      %v4174 = vsub.s32 0, %v4173
      %v4175 = vrot.slane %v4170, %v4174
      %v4176 = vlaneseq
      %v4177 = vshrl.u32 %v4176, 7
      %v4178 = vsub.s32 1, %v4177
      %v4179 = vrot.slane %v4170, %v4178
      %v4182 = vmul.f32 %v479, %v4175
      %v4183 = vmul.f32 %v480, %v4179
      %4184 = vst [vmem:[#allocation2 + $0x8] sm:$0xff] %v4182
      %4185 = vst [vmem:[#allocation2 + $0x10] sm:$0xff] %v4183
      %v4186 = vld [vmem:[#allocation2] sm:$0xff]
      %v4187 = vld [vmem:[#allocation2 + $0x8] sm:$0xff]
      %v4188 = vld [vmem:[#allocation2 + $0x10] sm:$0xff]
      %4189 = vset.pattern.permute.xlu0 8
      %4190 = vperm.xlu0 %4189, %v485
      %v4191 = vpop.permute.xlu0 %4190
      %v4193 = vmul.f32 %v4186, %v4191
      %v4194 = vmul.f32 %v4187, %v4191
      %v4195 = vmul.f32 %v4188, %v4191
      %4199 = vrot.lane.b32.xlu0 %v4193, 120
      %v4200 = vpop.permute.xlu0 %4199
      %4201 = vrot.lane.b32.xlu0 %v4194, 120
      %v4202 = vpop.permute.xlu0 %4201
      %4203 = vrot.lane.b32.xlu0 %v4195, 120
      %v4204 = vpop.permute.xlu0 %4203
      %vm4205 = vcmask 982016
      %v4206 = vsel %vm4205, %v4200, %v4202
      %v4207 = vsel %vm4205, %v4202, %v4204
      %v4211 = vadd.f32 %v4166, %v4206
      %v4212 = vadd.f32 %v4167, %v4207
      %v4213 = vadd.f32 %v4168, %v4204
      %4214 = vset.pattern.permute.xlu0 17
      %4215 = vperm.xlu0 %4214, %v485
      %v4216 = vpop.permute.xlu0 %4215
      %v4218 = vmul.f32 %v4186, %v4216
      %v4219 = vmul.f32 %v4187, %v4216
      %v4220 = vmul.f32 %v4188, %v4216
      %4224 = vrot.lane.b32.xlu0 %v4218, 104
      %v4225 = vpop.permute.xlu0 %4224
      %4226 = vrot.lane.b32.xlu0 %v4219, 104
      %v4227 = vpop.permute.xlu0 %4226
      %4228 = vrot.lane.b32.xlu0 %v4220, 104
      %v4229 = vpop.permute.xlu0 %4228
      %vm4230 = vcmask 850944
      %v4231 = vsel %vm4230, %v4225, %v4227
      %v4232 = vsel %vm4230, %v4227, %v4229
      %v4236 = vadd.f32 %v4211, %v4231
      %v4237 = vadd.f32 %v4212, %v4232
      %v4238 = vadd.f32 %v4213, %v4229
      %4239 = vset.pattern.permute.xlu0 26
      %4240 = vperm.xlu0 %4239, %v485
      %v4241 = vpop.permute.xlu0 %4240
      %v4243 = vmul.f32 %v4186, %v4241
      %v4244 = vmul.f32 %v4187, %v4241
      %v4245 = vmul.f32 %v4188, %v4241
      %4249 = vrot.lane.b32.xlu0 %v4243, 88
      %v4250 = vpop.permute.xlu0 %4249
      %4251 = vrot.lane.b32.xlu0 %v4244, 88
      %v4252 = vpop.permute.xlu0 %4251
      %4253 = vrot.lane.b32.xlu0 %v4245, 88
      %v4254 = vpop.permute.xlu0 %4253
      %vm4255 = vcmask 719872
      %v4256 = vsel %vm4255, %v4250, %v4252
      %v4257 = vsel %vm4255, %v4252, %v4254
      %v4261 = vadd.f32 %v4236, %v4256
      %v4262 = vadd.f32 %v4237, %v4257
      %v4263 = vadd.f32 %v4238, %v4254
      %4264 = vset.pattern.permute.xlu0 35
      %4265 = vperm.xlu0 %4264, %v485
      %v4266 = vpop.permute.xlu0 %4265
      %v4268 = vmul.f32 %v4186, %v4266
      %v4269 = vmul.f32 %v4187, %v4266
      %v4270 = vmul.f32 %v4188, %v4266
      %4274 = vrot.lane.b32.xlu0 %v4268, 72
      %v4275 = vpop.permute.xlu0 %4274
      %4276 = vrot.lane.b32.xlu0 %v4269, 72
      %v4277 = vpop.permute.xlu0 %4276
      %4278 = vrot.lane.b32.xlu0 %v4270, 72
      %v4279 = vpop.permute.xlu0 %4278
      %vm4280 = vcmask 588800
      %v4281 = vsel %vm4280, %v4275, %v4277
      %v4282 = vsel %vm4280, %v4277, %v4279
      %v4286 = vadd.f32 %v4261, %v4281
      %v4287 = vadd.f32 %v4262, %v4282
      %v4288 = vadd.f32 %v4263, %v4279
      %v4289 = vld [vmem:[#allocation2 + $0x8] sm:$0xff]
      %v4290 = vld [vmem:[#allocation2 + $0x10] sm:$0xff]
      %v4291 = vld [vmem:[#allocation2 + $0x18] sm:$0xff]
      %4292 = vset.pattern.permute.xlu0 44
      %4293 = vperm.xlu0 %4292, %v485
      %v4294 = vpop.permute.xlu0 %4293
      %v4296 = vmul.f32 %v4289, %v4294
      %v4297 = vmul.f32 %v4290, %v4294
      %v4298 = vmul.f32 %v4291, %v4294
      %4302 = vrot.lane.b32.xlu0 %v4296, 56
      %v4303 = vpop.permute.xlu0 %4302
      %4304 = vrot.lane.b32.xlu0 %v4297, 56
      %v4305 = vpop.permute.xlu0 %4304
      %4306 = vrot.lane.b32.xlu0 %v4298, 56
      %v4307 = vpop.permute.xlu0 %4306
      %vm4308 = vcmask 457728
      %v4309 = vsel %vm4308, %v4303, %v4305
      %v4310 = vsel %vm4308, %v4305, %v4307
      %v4314 = vadd.f32 %v4286, %v4303
      %v4315 = vadd.f32 %v4287, %v4309
      %v4316 = vadd.f32 %v4288, %v4310
      %4317 = vset.pattern.permute.xlu0 53
      %4318 = vperm.xlu0 %4317, %v485
      %v4319 = vpop.permute.xlu0 %4318
      %v4321 = vmul.f32 %v4289, %v4319
      %v4322 = vmul.f32 %v4290, %v4319
      %v4323 = vmul.f32 %v4291, %v4319
      %4327 = vrot.lane.b32.xlu0 %v4321, 40
      %v4328 = vpop.permute.xlu0 %4327
      %4329 = vrot.lane.b32.xlu0 %v4322, 40
      %v4330 = vpop.permute.xlu0 %4329
      %4331 = vrot.lane.b32.xlu0 %v4323, 40
      %v4332 = vpop.permute.xlu0 %4331
      %vm4333 = vcmask 326656
      %v4334 = vsel %vm4333, %v4328, %v4330
      %v4335 = vsel %vm4333, %v4330, %v4332
      %v4339 = vadd.f32 %v4314, %v4328
      %v4340 = vadd.f32 %v4315, %v4334
      %v4341 = vadd.f32 %v4316, %v4335
      %4342 = vset.pattern.permute.xlu0 62
      %4343 = vperm.xlu0 %4342, %v485
      %v4344 = vpop.permute.xlu0 %4343
      %v4346 = vmul.f32 %v4289, %v4344
      %v4347 = vmul.f32 %v4290, %v4344
      %v4348 = vmul.f32 %v4291, %v4344
      %4352 = vrot.lane.b32.xlu0 %v4346, 24
      %v4353 = vpop.permute.xlu0 %4352
      %4354 = vrot.lane.b32.xlu0 %v4347, 24
      %v4355 = vpop.permute.xlu0 %4354
      %4356 = vrot.lane.b32.xlu0 %v4348, 24
      %v4357 = vpop.permute.xlu0 %4356
      %vm4358 = vcmask 195584
      %v4359 = vsel %vm4358, %v4353, %v4355
      %v4360 = vsel %vm4358, %v4355, %v4357
      %v4364 = vadd.f32 %v4339, %v4353
      %v4365 = vadd.f32 %v4340, %v4359
      %v4366 = vadd.f32 %v4341, %v4360
      %4367 = vset.pattern.permute.xlu0 71
      %4368 = vperm.xlu0 %4367, %v485
      %v4369 = vpop.permute.xlu0 %4368
      %v4371 = vmul.f32 %v4289, %v4369
      %v4372 = vmul.f32 %v4290, %v4369
      %v4373 = vmul.f32 %v4291, %v4369
      %4377 = vrot.lane.b32.xlu0 %v4371, 8
      %v4378 = vpop.permute.xlu0 %4377
      %4379 = vrot.lane.b32.xlu0 %v4372, 8
      %v4380 = vpop.permute.xlu0 %4379
      %4381 = vrot.lane.b32.xlu0 %v4373, 8
      %v4382 = vpop.permute.xlu0 %4381
      %vm4383 = vcmask 64512
      %v4384 = vsel %vm4383, %v4378, %v4380
      %v4385 = vsel %vm4383, %v4380, %v4382
      %v4389 = vadd.f32 %v4364, %v4378
      %v4390 = vadd.f32 %v4365, %v4384
      %v4391 = vadd.f32 %v4366, %v4385
      %4392 = vset.pattern.permute.xlu0 80
      %4393 = vperm.xlu0 %4392, %v485
      %v4394 = vpop.permute.xlu0 %4393
      %v4396 = vmul.f32 %v4289, %v4394
      %v4397 = vmul.f32 %v4290, %v4394
      %v4398 = vmul.f32 %v4291, %v4394
      %4402 = vrot.lane.b32.xlu0 %v4396, 120
      %v4403 = vpop.permute.xlu0 %4402
      %4404 = vrot.lane.b32.xlu0 %v4397, 120
      %v4405 = vpop.permute.xlu0 %4404
      %4406 = vrot.lane.b32.xlu0 %v4398, 120
      %v4407 = vpop.permute.xlu0 %4406
      %v4408 = vsel %vm4205, %v4403, %v4405
      %v4409 = vsel %vm4205, %v4405, %v4407
      %v4413 = vadd.f32 %v4389, %v4408
      %v4414 = vadd.f32 %v4390, %v4409
      %v4415 = vadd.f32 %v4391, %v4407
      %v4416 = vld [vmem:[%s5] sm:$0xf]
      %v4417 = vpack.c.bf16 %v4117, %v4117
      %v4418 = vpack.c.bf16 %v4118, %v4118
      %v4419 = vpack.c.bf16 %v4119, %v4119
      %v4420 = vld [vmem:[%s6] sm:$0xff]
      %4422 = vset.pattern.permute.xlu0 0
      %4423 = vperm.xlu0 %4422, %v4420
      %v4424 = vpop.permute.xlu0 %4423
      %4429 = vrot.lane.b32.xlu0 %v4417, 51
      %v4430 = vpop.permute.xlu0 %4429
      %4431 = vrot.lane.b32.xlu0 %v4418, 51
      %v4432 = vpop.permute.xlu0 %4431
      %4433 = vrot.lane.b32.xlu0 %v4419, 51
      %v4434 = vpop.permute.xlu0 %4433
      %vm4435 = vcmask 416768
      %v4436 = vsel %vm4435, %v4430, %v4432
      %v4437 = vsel %vm4435, %v4432, %v4434
      %v4439 = vsel %vm4383, %v4416, 0
      %vm4441 = vcmask 1043456
      %v4443 = vsel %vm4441, %v4436, 0
      %v4446 = vsel %vm4441, %v4437, 0
      %4448 = vmatprep.subr.bf16.mxu0 0
      %4449 = vmatpush1.bf16.msra.mxu0 0
      %4450 = vmatprep.subr.bf16.mxu0 0
      %4451 = vmatpush1.bf16.msra.mxu0 0
      %4452 = vmatprep.subr.bf16.mxu0 0
      %4453 = vmatpush1.bf16.msra.mxu0 0
      %4454 = vmatprep.subr.bf16.mxu0 0
      %4455 = vmatpush1.bf16.msra.mxu0 0
      %4456 = vmatprep.subr.bf16.mxu0 0
      %4457 = vmatpush1.bf16.msra.mxu0 0
      %4458 = vmatprep.subr.bf16.mxu0 0
      %4459 = vmatpush1.bf16.msra.mxu0 0
      %4460 = vmatprep.subr.bf16.mxu0 0
      %4461 = vmatpush1.bf16.msra.mxu0 0
      %4462 = vmatprep.subr.bf16.mxu0 %v4446
      %4463 = vmatpush1.bf16.msra.mxu0 %v4443
      %4464 = vmatprep.subr.bf16.mxu0 0
      %4465 = vmatpush2.bf16.msra.mxu0 0
      %4466 = vmatprep.subr.bf16.mxu0 0
      %4467 = vmatpush2.bf16.msra.mxu0 0
      %4468 = vmatprep.subr.bf16.mxu0 0
      %4469 = vmatpush2.bf16.msra.mxu0 0
      %4470 = vmatprep.subr.bf16.mxu0 0
      %4471 = vmatpush2.bf16.msra.mxu0 0
      %4472 = vmatprep.subr.bf16.mxu0 0
      %4473 = vmatpush2.bf16.msra.mxu0 0
      %4474 = vmatprep.subr.bf16.mxu0 0
      %4475 = vmatpush2.bf16.msra.mxu0 0
      %4476 = vmatprep.subr.bf16.mxu0 0
      %4477 = vmatpush2.bf16.msra.mxu0 0
      %4478 = vmatprep.subr.bf16.mxu0 0
      %4479 = vmatpush2.bf16.msra.mxu0 0
      %4480 = vmatprep.mubr.bf16.mxu0 0
      %4481 = vmatmul.mubr.bf16.gmra.mxu0 %v4439
      %v4482 = vpop.f32.mrf.mxu0
      %v4483 = vadd.f32 %v4424, %v4482
      %v4484 = vpop.f32.mrf.mxu0
      %v4485 = vadd.f32 %v4424, %v4484
      %v4486 = vpop.f32.mrf.mxu0
      %v4487 = vpop.f32.mrf.mxu0
      %4488 = vdwg.mxu0
      %v4489 = vmax.f32 %v4483, 0.0
      %v4490 = vmax.f32 %v4485, 0.0
      %v4491 = vpack.c.bf16 %v4489, %v4489
      %v4492 = vpack.c.bf16 %v4490, %v4490
      %v4495 = vunpack.c.l.b16 %v4491
      %v4496 = vunpack.c.l.b16 %v4492
      %v4497 = vpack.c.b16 %v4496, %v4495
      %4499 = vst [vmem:[#allocation3] sm:$0xff] %v4497
      %s4500 = scalar_lea.vmem %s5, 4
      %v4501 = vld [vmem:[%s4500] sm:$0xf]
      %v4502 = vpack.c.bf16 %v4413, %v4413
      %v4503 = vpack.c.bf16 %v4414, %v4414
      %v4504 = vpack.c.bf16 %v4415, %v4415
      %s4505 = scalar_lea.vmem %s6, 8
      %v4506 = vld [vmem:[%s4505] sm:$0xff]
      %4508 = vset.pattern.permute.xlu0 0
      %4509 = vperm.xlu0 %4508, %v4506
      %v4510 = vpop.permute.xlu0 %4509
      %4515 = vrot.lane.b32.xlu0 %v4502, 68
      %v4516 = vpop.permute.xlu0 %4515
      %4517 = vrot.lane.b32.xlu0 %v4503, 68
      %v4518 = vpop.permute.xlu0 %4517
      %4519 = vrot.lane.b32.xlu0 %v4504, 68
      %v4520 = vpop.permute.xlu0 %4519
      %vm4521 = vcmask 556032
      %v4522 = vsel %vm4521, %v4516, %v4518
      %v4523 = vsel %vm4521, %v4518, %v4520
      %v4525 = vsel %vm4383, %v4501, 0
      %v4528 = vsel %vm4441, %v4522, 0
      %v4531 = vsel %vm4441, %v4523, 0
      %4533 = vmatprep.subr.bf16.mxu0 0
      %4534 = vmatpush1.bf16.msra.mxu0 0
      %4535 = vmatprep.subr.bf16.mxu0 0
      %4536 = vmatpush1.bf16.msra.mxu0 0
      %4537 = vmatprep.subr.bf16.mxu0 0
      %4538 = vmatpush1.bf16.msra.mxu0 0
      %4539 = vmatprep.subr.bf16.mxu0 0
      %4540 = vmatpush1.bf16.msra.mxu0 0
      %4541 = vmatprep.subr.bf16.mxu0 0
      %4542 = vmatpush1.bf16.msra.mxu0 0
      %4543 = vmatprep.subr.bf16.mxu0 0
      %4544 = vmatpush1.bf16.msra.mxu0 0
      %4545 = vmatprep.subr.bf16.mxu0 0
      %4546 = vmatpush1.bf16.msra.mxu0 0
      %4547 = vmatprep.subr.bf16.mxu0 %v4531
      %4548 = vmatpush1.bf16.msra.mxu0 %v4528
      %4549 = vmatprep.subr.bf16.mxu0 0
      %4550 = vmatpush2.bf16.msra.mxu0 0
      %4551 = vmatprep.subr.bf16.mxu0 0
      %4552 = vmatpush2.bf16.msra.mxu0 0
      %4553 = vmatprep.subr.bf16.mxu0 0
      %4554 = vmatpush2.bf16.msra.mxu0 0
      %4555 = vmatprep.subr.bf16.mxu0 0
      %4556 = vmatpush2.bf16.msra.mxu0 0
      %4557 = vmatprep.subr.bf16.mxu0 0
      %4558 = vmatpush2.bf16.msra.mxu0 0
      %4559 = vmatprep.subr.bf16.mxu0 0
      %4560 = vmatpush2.bf16.msra.mxu0 0
      %4561 = vmatprep.subr.bf16.mxu0 0
      %4562 = vmatpush2.bf16.msra.mxu0 0
      %4563 = vmatprep.subr.bf16.mxu0 0
      %4564 = vmatpush2.bf16.msra.mxu0 0
      %4565 = vmatprep.mubr.bf16.mxu0 0
      %4566 = vmatmul.mubr.bf16.gmra.mxu0 %v4525
      %v4567 = vpop.f32.mrf.mxu0
      %v4568 = vadd.f32 %v4510, %v4567
      %v4569 = vpop.f32.mrf.mxu0
      %v4570 = vadd.f32 %v4510, %v4569
      %v4571 = vpop.f32.mrf.mxu0
      %v4572 = vpop.f32.mrf.mxu0
      %4573 = vdwg.mxu0
      %v4574 = vmax.f32 %v4568, 0.0
      %v4575 = vmax.f32 %v4570, 0.0
      %v4576 = vpack.c.bf16 %v4574, %v4574
      %v4577 = vpack.c.bf16 %v4575, %v4575
      %v4580 = vunpack.c.l.b16 %v4576
      %v4581 = vunpack.c.l.b16 %v4577
      %v4582 = vpack.c.b16 %v4581, %v4580
      %4584 = vst [vmem:[#allocation3 + $0x8] sm:$0xff] %v4582
      %s4585 = scalar_lea.vmem %s5, 8
      %v4586 = vld [vmem:[%s4585] sm:$0xf]
      %v4587 = vpack.c.bf16 %v3678, %v3678
      %v4588 = vpack.c.bf16 %v3679, %v3679
      %v4589 = vpack.c.bf16 %v3680, %v3680
      %s4590 = scalar_lea.vmem %s6, 16
      %v4591 = vld [vmem:[%s4590] sm:$0xff]
      %4593 = vset.pattern.permute.xlu0 0
      %4594 = vperm.xlu0 %4593, %v4591
      %v4595 = vpop.permute.xlu0 %4594
      %4600 = vrot.lane.b32.xlu0 %v4587, 34
      %v4601 = vpop.permute.xlu0 %4600
      %4602 = vrot.lane.b32.xlu0 %v4588, 34
      %v4603 = vpop.permute.xlu0 %4602
      %4604 = vrot.lane.b32.xlu0 %v4589, 34
      %v4605 = vpop.permute.xlu0 %4604
      %vm4606 = vcmask 277504
      %v4607 = vsel %vm4606, %v4601, %v4603
      %v4608 = vsel %vm4606, %v4603, %v4605
      %v4610 = vsel %vm4383, %v4586, 0
      %v4613 = vsel %vm4441, %v4607, 0
      %v4616 = vsel %vm4441, %v4608, 0
      %4618 = vmatprep.subr.bf16.mxu0 0
      %4619 = vmatpush1.bf16.msra.mxu0 0
      %4620 = vmatprep.subr.bf16.mxu0 0
      %4621 = vmatpush1.bf16.msra.mxu0 0
      %4622 = vmatprep.subr.bf16.mxu0 0
      %4623 = vmatpush1.bf16.msra.mxu0 0
      %4624 = vmatprep.subr.bf16.mxu0 0
      %4625 = vmatpush1.bf16.msra.mxu0 0
      %4626 = vmatprep.subr.bf16.mxu0 0
      %4627 = vmatpush1.bf16.msra.mxu0 0
      %4628 = vmatprep.subr.bf16.mxu0 0
      %4629 = vmatpush1.bf16.msra.mxu0 0
      %4630 = vmatprep.subr.bf16.mxu0 0
      %4631 = vmatpush1.bf16.msra.mxu0 0
      %4632 = vmatprep.subr.bf16.mxu0 %v4616
      %4633 = vmatpush1.bf16.msra.mxu0 %v4613
      %4634 = vmatprep.subr.bf16.mxu0 0
      %4635 = vmatpush2.bf16.msra.mxu0 0
      %4636 = vmatprep.subr.bf16.mxu0 0
      %4637 = vmatpush2.bf16.msra.mxu0 0
      %4638 = vmatprep.subr.bf16.mxu0 0
      %4639 = vmatpush2.bf16.msra.mxu0 0
      %4640 = vmatprep.subr.bf16.mxu0 0
      %4641 = vmatpush2.bf16.msra.mxu0 0
      %4642 = vmatprep.subr.bf16.mxu0 0
      %4643 = vmatpush2.bf16.msra.mxu0 0
      %4644 = vmatprep.subr.bf16.mxu0 0
      %4645 = vmatpush2.bf16.msra.mxu0 0
      %4646 = vmatprep.subr.bf16.mxu0 0
      %4647 = vmatpush2.bf16.msra.mxu0 0
      %4648 = vmatprep.subr.bf16.mxu0 0
      %4649 = vmatpush2.bf16.msra.mxu0 0
      %4650 = vmatprep.mubr.bf16.mxu0 0
      %4651 = vmatmul.mubr.bf16.gmra.mxu0 %v4610
      %v4652 = vpop.f32.mrf.mxu0
      %v4653 = vadd.f32 %v4595, %v4652
      %v4654 = vpop.f32.mrf.mxu0
      %v4655 = vadd.f32 %v4595, %v4654
      %v4656 = vpop.f32.mrf.mxu0
      %v4657 = vpop.f32.mrf.mxu0
      %4658 = vdwg.mxu0
      %v4659 = vmax.f32 %v4653, 0.0
      %v4660 = vmax.f32 %v4655, 0.0
      %v4661 = vpack.c.bf16 %v4659, %v4659
      %v4662 = vpack.c.bf16 %v4660, %v4660
      %v4665 = vunpack.c.l.b16 %v4661
      %v4666 = vunpack.c.l.b16 %v4662
      %v4667 = vpack.c.b16 %v4666, %v4665
      %4669 = vst [vmem:[#allocation3 + $0x10] sm:$0xff] %v4667
      %v4670 = vld [vmem:[%s7] sm:$0xf]
      %v4671 = vld [vmem:[%s7 + $0x4] sm:$0xf]
      %v4672 = vld [vmem:[%s7 + $0x8] sm:$0xf]
      %v4673 = vld [vmem:[%s7 + $0xc] sm:$0xf]
      %v4674 = vld [vmem:[%s7 + $0x10] sm:$0x3]
      %v4675 = vld [vmem:[#allocation3] sm:$0xff]
      %v4676 = vld [vmem:[#allocation3 + $0x8] sm:$0xff]
      %v4677 = vld [vmem:[#allocation3 + $0x10] sm:$0xff]
      %v4678 = vld [vmem:[%s8] sm:$0xff]
      %v4679 = vld [vmem:[%s8 + $0x8] sm:$0xff]
      %v4680 = vld [vmem:[%s8 + $0x10] sm:$0xff]
      %v4681 = vld [vmem:[%s8 + $0x18] sm:$0xff]
      %v4682 = vld [vmem:[%s8 + $0x20] sm:$0xf]
      %4684 = vset.pattern.permute.xlu0 0
      %4685 = vperm.xlu0 %4684, %v4678
      %v4686 = vpop.permute.xlu0 %4685
      %4689 = vset.pattern.permute.xlu0 0
      %4690 = vperm.xlu0 %4689, %v4679
      %v4691 = vpop.permute.xlu0 %4690
      %4694 = vset.pattern.permute.xlu0 0
      %4695 = vperm.xlu0 %4694, %v4680
      %v4696 = vpop.permute.xlu0 %4695
      %4699 = vset.pattern.permute.xlu0 0
      %4700 = vperm.xlu0 %4699, %v4681
      %v4701 = vpop.permute.xlu0 %4700
      %4704 = vset.pattern.permute.xlu0 0
      %4705 = vperm.xlu0 %4704, %v4682
      %v4706 = vpop.permute.xlu0 %4705
      %v4713 = vunpack.c.l.b16 %v4670
      %v4714 = vunpack.c.l.b16 %v4671
      %v4715 = vunpack.c.l.b16 %v4672
      %v4716 = vunpack.c.l.b16 %v4673
      %v4717 = vunpack.c.l.b16 %v4674
      %v4718 = vpack.c.b16 %v4714, %v4713
      %v4719 = vpack.c.b16 %v4716, %v4715
      %v4720 = vpack.c.b16 %v4717, %v4717
      %v4724 = vunpack.c.l.b16 %v4675
      %v4725 = vunpack.c.h.b16 %v4675
      %v4726 = vunpack.c.l.b16 %v4676
      %v4727 = vunpack.c.h.b16 %v4676
      %v4728 = vunpack.c.l.b16 %v4677
      %v4729 = vunpack.c.h.b16 %v4677
      %v4730 = vpack.c.b16 %v4726, %v4724
      %v4731 = vpack.c.b16 %v4727, %v4725
      %v4732 = vpack.c.b16 %v4728, %v4728
      %v4733 = vpack.c.b16 %v4729, %v4729
      %v4737 = vsel %vm4358, %v4718, 0
      %v4740 = vsel %vm4358, %v4719, 0
      %v4743 = vsel %vm4358, %v4720, 0
      %v4746 = vsel %vm4441, %v4732, 0
      %v4749 = vsel %vm4441, %v4733, 0
      %4751 = vmatprep.subr.bf16.mxu0 0
      %4752 = vmatpush1.bf16.msra.mxu0 0
      %4753 = vmatprep.subr.bf16.mxu0 0
      %4754 = vmatpush1.bf16.msra.mxu0 0
      %4755 = vmatprep.subr.bf16.mxu0 0
      %4756 = vmatpush1.bf16.msra.mxu0 0
      %4757 = vmatprep.subr.bf16.mxu0 0
      %4758 = vmatpush1.bf16.msra.mxu0 0
      %4759 = vmatprep.subr.bf16.mxu0 0
      %4760 = vmatpush1.bf16.msra.mxu0 0
      %4761 = vmatprep.subr.bf16.mxu0 0
      %4762 = vmatpush1.bf16.msra.mxu0 0
      %4763 = vmatprep.subr.bf16.mxu0 %v4749
      %4764 = vmatpush1.bf16.msra.mxu0 %v4746
      %4765 = vmatprep.subr.bf16.mxu0 %v4731
      %4766 = vmatpush1.bf16.msra.mxu0 %v4730
      %4767 = vmatprep.subr.bf16.mxu0 0
      %4768 = vmatpush2.bf16.msra.mxu0 0
      %4769 = vmatprep.subr.bf16.mxu0 0
      %4770 = vmatpush2.bf16.msra.mxu0 0
      %4771 = vmatprep.subr.bf16.mxu0 0
      %4772 = vmatpush2.bf16.msra.mxu0 0
      %4773 = vmatprep.subr.bf16.mxu0 0
      %4774 = vmatpush2.bf16.msra.mxu0 0
      %4775 = vmatprep.subr.bf16.mxu0 0
      %4776 = vmatpush2.bf16.msra.mxu0 0
      %4777 = vmatprep.subr.bf16.mxu0 0
      %4778 = vmatpush2.bf16.msra.mxu0 0
      %4779 = vmatprep.subr.bf16.mxu0 0
      %4780 = vmatpush2.bf16.msra.mxu0 0
      %4781 = vmatprep.subr.bf16.mxu0 0
      %4782 = vmatpush2.bf16.msra.mxu0 0
      %4783 = vmatprep.mubr.bf16.mxu0 0
      %4784 = vmatmul.mubr.bf16.gmra.mxu0 %v4737
      %v4785 = vpop.f32.mrf.mxu0
      %v4786 = vadd.f32 %v4686, %v4785
      %v4787 = vpop.f32.mrf.mxu0
      %v4788 = vadd.f32 %v4686, %v4787
      %v4789 = vpop.f32.mrf.mxu0
      %v4790 = vadd.f32 %v4691, %v4789
      %v4791 = vpop.f32.mrf.mxu0
      %v4792 = vadd.f32 %v4691, %v4791
      %4793 = vmatprep.mubr.bf16.mxu0 0
      %4794 = vmatmul.mubr.bf16.gmra.mxu0 %v4740
      %v4795 = vpop.f32.mrf.mxu0
      %v4796 = vadd.f32 %v4696, %v4795
      %v4797 = vpop.f32.mrf.mxu0
      %v4798 = vadd.f32 %v4696, %v4797
      %v4799 = vpop.f32.mrf.mxu0
      %v4800 = vadd.f32 %v4701, %v4799
      %v4801 = vpop.f32.mrf.mxu0
      %v4802 = vadd.f32 %v4701, %v4801
      %4803 = vmatprep.mubr.bf16.mxu0 0
      %4804 = vmatmul.mubr.bf16.gmra.mxu0 %v4743
      %v4805 = vpop.f32.mrf.mxu0
      %v4806 = vadd.f32 %v4706, %v4805
      %v4807 = vpop.f32.mrf.mxu0
      %v4808 = vadd.f32 %v4706, %v4807
      %v4809 = vpop.f32.mrf.mxu0
      %v4810 = vpop.f32.mrf.mxu0
      %4811 = vdwg.mxu0
      %v4812 = vadd.f32 %v4786, %v4788
      %4813 = vadd.xlane.f32.xlu0 %v4812
      %v4814 = vpop.xlane.xlu0 %4813
      %v4815 = vadd.f32 %v4790, %v4792
      %4816 = vadd.xlane.f32.xlu0 %v4815
      %v4817 = vpop.xlane.xlu0 %4816
      %v4818 = vadd.f32 %v4796, %v4798
      %4819 = vadd.xlane.f32.xlu0 %v4818
      %v4820 = vpop.xlane.xlu0 %4819
      %v4821 = vadd.f32 %v4800, %v4802
      %4822 = vadd.xlane.f32.xlu0 %v4821
      %v4823 = vpop.xlane.xlu0 %4822
      %v4824 = vsel %vm4441, %v4806, 0.0
      %v4825 = vsel %vm4441, %v4808, 0.0
      %v4826 = vadd.f32 %v4824, %v4825
      %4827 = vadd.xlane.f32.xlu0 %v4826
      %v4828 = vpop.xlane.xlu0 %4827
      %v4829 = vld [vmem:[%s11] sm:$0xff]
      %v4830 = vld [vmem:[%s11 + $0x8] sm:$0xff]
      %v4831 = vld [vmem:[%s11 + $0x10] sm:$0xff]
      %v4832 = vld [vmem:[%s11 + $0x18] sm:$0xff]
      %v4833 = vld [vmem:[%s11 + $0x20] sm:$0xf]
      %v4834 = vmul.f32 %v4814, %v4829
      %v4835 = vmul.f32 %v4817, %v4830
      %v4836 = vmul.f32 %v4820, %v4831
      %v4837 = vmul.f32 %v4823, %v4832
      %v4838 = vmul.f32 %v4828, %v4833
      %vm4839 = vcmask 7168
      %v4840 = vsel %vm4839, %v4834, 0.0
      %v4841 = vsel %vm4839, %v4835, 0.0
      %v4842 = vadd.f32 %v4840, %v4841
      %v4843 = vsel %vm4839, %v4836, 0.0
      %v4844 = vadd.f32 %v4842, %v4843
      %v4845 = vsel %vm4839, %v4837, 0.0
      %v4846 = vadd.f32 %v4844, %v4845
      %vm4847 = vcmask 3072
      %v4848 = vsel %vm4847, %v4838, 0.0
      %v4849 = vadd.f32 %v4846, %v4848
      %4850 = vadd.xlane.f32.xlu0 %v4849
      %v4851 = vpop.xlane.xlu0 %4850
      %v4852 = vrot.slane %v4851, 4
      %v4853 = vadd.f32 %v4851, %v4852
      %v4854 = vrot.slane %v4853, 2
      %v4855 = vadd.f32 %v4853, %v4854
      %v4856 = vrot.slane %v4855, 1
      %v4857 = vadd.f32 %v4855, %v4856
      %s4858 = vtos %v4857
      %v4859 = vrcp.pop 2304.0
      %s4860 = vtos %v4859
      %s4861 = smul.f32 %s4858, %s4860
      %v4862 = vstv %s4861
      %v4863 = vmul.f32 %v4829, %v4862
      %v4864 = vmul.f32 %v4830, %v4862
      %v4865 = vmul.f32 %v4831, %v4862
      %v4866 = vmul.f32 %v4832, %v4862
      %v4867 = vmul.f32 %v4833, %v4862
      %v4868 = vadd.f32 %v4863, 0.0
      %v4869 = vadd.f32 %v4864, 0.0
      %v4870 = vadd.f32 %v4865, 0.0
      %v4871 = vadd.f32 %v4866, 0.0
      %v4872 = vadd.f32 %v4867, 0.0
      %4878 = vrot.lane.b32.xlu0 %v4834, 127
      %v4879 = vpop.permute.xlu0 %4878
      %4880 = vrot.lane.b32.xlu0 %v4835, 127
      %v4881 = vpop.permute.xlu0 %4880
      %4882 = vrot.lane.b32.xlu0 %v4836, 127
      %v4883 = vpop.permute.xlu0 %4882
      %4884 = vrot.lane.b32.xlu0 %v4837, 127
      %v4885 = vpop.permute.xlu0 %4884
      %4886 = vrot.lane.b32.xlu0 %v4838, 127
      %v4887 = vpop.permute.xlu0 %4886
      %v4893 = vsel %vm4839, %v4879, 0.0
      %v4894 = vsel %vm4839, %v4881, 0.0
      %v4895 = vadd.f32 %v4893, %v4894
      %v4896 = vsel %vm4839, %v4883, 0.0
      %v4897 = vadd.f32 %v4895, %v4896
      %v4898 = vsel %vm4839, %v4885, 0.0
      %v4899 = vadd.f32 %v4897, %v4898
      %v4900 = vsel %vm4847, %v4887, 0.0
      %v4901 = vadd.f32 %v4899, %v4900
      %4902 = vadd.xlane.f32.xlu0 %v4901
      %v4903 = vpop.xlane.xlu0 %4902
      %v4904 = vrot.slane %v4903, 4
      %v4905 = vadd.f32 %v4903, %v4904
      %v4906 = vrot.slane %v4905, 2
      %v4907 = vadd.f32 %v4905, %v4906
      %v4908 = vrot.slane %v4907, 1
      %v4909 = vadd.f32 %v4907, %v4908
      %s4910 = vtos %v4909
      %v4911 = vrcp.pop 2304.0
      %s4912 = vtos %v4911
      %s4913 = smul.f32 %s4910, %s4912
      %v4914 = vstv %s4913
      %v4915 = vmul.f32 %v4829, %v4914
      %v4916 = vmul.f32 %v4830, %v4914
      %v4917 = vmul.f32 %v4831, %v4914
      %v4918 = vmul.f32 %v4832, %v4914
      %v4919 = vmul.f32 %v4833, %v4914
      %4925 = vrot.lane.b32.xlu0 %v4915, 127
      %v4926 = vpop.permute.xlu0 %4925
      %4927 = vrot.lane.b32.xlu0 %v4916, 127
      %v4928 = vpop.permute.xlu0 %4927
      %4929 = vrot.lane.b32.xlu0 %v4917, 127
      %v4930 = vpop.permute.xlu0 %4929
      %4931 = vrot.lane.b32.xlu0 %v4918, 127
      %v4932 = vpop.permute.xlu0 %4931
      %4933 = vrot.lane.b32.xlu0 %v4919, 127
      %v4934 = vpop.permute.xlu0 %4933
      %v4940 = vadd.f32 %v4868, %v4926
      %v4941 = vadd.f32 %v4869, %v4928
      %v4942 = vadd.f32 %v4870, %v4930
      %v4943 = vadd.f32 %v4871, %v4932
      %v4944 = vadd.f32 %v4872, %v4934
      %4945 = vrot.lane.b32.xlu0 %v4834, 126
      %v4946 = vpop.permute.xlu0 %4945
      %4947 = vrot.lane.b32.xlu0 %v4835, 126
      %v4948 = vpop.permute.xlu0 %4947
      %4949 = vrot.lane.b32.xlu0 %v4836, 126
      %v4950 = vpop.permute.xlu0 %4949
      %4951 = vrot.lane.b32.xlu0 %v4837, 126
      %v4952 = vpop.permute.xlu0 %4951
      %4953 = vrot.lane.b32.xlu0 %v4838, 126
      %v4954 = vpop.permute.xlu0 %4953
      %v4960 = vsel %vm4839, %v4946, 0.0
      %v4961 = vsel %vm4839, %v4948, 0.0
      %v4962 = vadd.f32 %v4960, %v4961
      %v4963 = vsel %vm4839, %v4950, 0.0
      %v4964 = vadd.f32 %v4962, %v4963
      %v4965 = vsel %vm4839, %v4952, 0.0
      %v4966 = vadd.f32 %v4964, %v4965
      %v4967 = vsel %vm4847, %v4954, 0.0
      %v4968 = vadd.f32 %v4966, %v4967
      %4969 = vadd.xlane.f32.xlu0 %v4968
      %v4970 = vpop.xlane.xlu0 %4969
      %v4971 = vrot.slane %v4970, 4
      %v4972 = vadd.f32 %v4970, %v4971
      %v4973 = vrot.slane %v4972, 2
      %v4974 = vadd.f32 %v4972, %v4973
      %v4975 = vrot.slane %v4974, 1
      %v4976 = vadd.f32 %v4974, %v4975
      %s4977 = vtos %v4976
      %v4978 = vrcp.pop 2304.0
      %s4979 = vtos %v4978
      %s4980 = smul.f32 %s4977, %s4979
      %v4981 = vstv %s4980
      %v4982 = vmul.f32 %v4829, %v4981
      %v4983 = vmul.f32 %v4830, %v4981
      %v4984 = vmul.f32 %v4831, %v4981
      %v4985 = vmul.f32 %v4832, %v4981
      %v4986 = vmul.f32 %v4833, %v4981
      %4992 = vrot.lane.b32.xlu0 %v4982, 126
      %v4993 = vpop.permute.xlu0 %4992
      %4994 = vrot.lane.b32.xlu0 %v4983, 126
      %v4995 = vpop.permute.xlu0 %4994
      %4996 = vrot.lane.b32.xlu0 %v4984, 126
      %v4997 = vpop.permute.xlu0 %4996
      %4998 = vrot.lane.b32.xlu0 %v4985, 126
      %v4999 = vpop.permute.xlu0 %4998
      %5000 = vrot.lane.b32.xlu0 %v4986, 126
      %v5001 = vpop.permute.xlu0 %5000
      %v5007 = vadd.f32 %v4940, %v4993
      %v5008 = vadd.f32 %v4941, %v4995
      %v5009 = vadd.f32 %v4942, %v4997
      %v5010 = vadd.f32 %v4943, %v4999
      %v5011 = vadd.f32 %v4944, %v5001
      %5012 = vrot.lane.b32.xlu0 %v4834, 125
      %v5013 = vpop.permute.xlu0 %5012
      %5014 = vrot.lane.b32.xlu0 %v4835, 125
      %v5015 = vpop.permute.xlu0 %5014
      %5016 = vrot.lane.b32.xlu0 %v4836, 125
      %v5017 = vpop.permute.xlu0 %5016
      %5018 = vrot.lane.b32.xlu0 %v4837, 125
      %v5019 = vpop.permute.xlu0 %5018
      %5020 = vrot.lane.b32.xlu0 %v4838, 125
      %v5021 = vpop.permute.xlu0 %5020
      %v5027 = vsel %vm4839, %v5013, 0.0
      %v5028 = vsel %vm4839, %v5015, 0.0
      %v5029 = vadd.f32 %v5027, %v5028
      %v5030 = vsel %vm4839, %v5017, 0.0
      %v5031 = vadd.f32 %v5029, %v5030
      %v5032 = vsel %vm4839, %v5019, 0.0
      %v5033 = vadd.f32 %v5031, %v5032
      %v5034 = vsel %vm4847, %v5021, 0.0
      %v5035 = vadd.f32 %v5033, %v5034
      %5036 = vadd.xlane.f32.xlu0 %v5035
      %v5037 = vpop.xlane.xlu0 %5036
      %v5038 = vrot.slane %v5037, 4
      %v5039 = vadd.f32 %v5037, %v5038
      %v5040 = vrot.slane %v5039, 2
      %v5041 = vadd.f32 %v5039, %v5040
      %v5042 = vrot.slane %v5041, 1
      %v5043 = vadd.f32 %v5041, %v5042
      %s5044 = vtos %v5043
      %v5045 = vrcp.pop 2304.0
      %s5046 = vtos %v5045
      %s5047 = smul.f32 %s5044, %s5046
      %v5048 = vstv %s5047
      %v5049 = vmul.f32 %v4829, %v5048
      %v5050 = vmul.f32 %v4830, %v5048
      %v5051 = vmul.f32 %v4831, %v5048
      %v5052 = vmul.f32 %v4832, %v5048
      %v5053 = vmul.f32 %v4833, %v5048
      %5059 = vrot.lane.b32.xlu0 %v5049, 125
      %v5060 = vpop.permute.xlu0 %5059
      %5061 = vrot.lane.b32.xlu0 %v5050, 125
      %v5062 = vpop.permute.xlu0 %5061
      %5063 = vrot.lane.b32.xlu0 %v5051, 125
      %v5064 = vpop.permute.xlu0 %5063
      %5065 = vrot.lane.b32.xlu0 %v5052, 125
      %v5066 = vpop.permute.xlu0 %5065
      %5067 = vrot.lane.b32.xlu0 %v5053, 125
      %v5068 = vpop.permute.xlu0 %5067
      %v5074 = vadd.f32 %v5007, %v5060
      %v5075 = vadd.f32 %v5008, %v5062
      %v5076 = vadd.f32 %v5009, %v5064
      %v5077 = vadd.f32 %v5010, %v5066
      %v5078 = vadd.f32 %v5011, %v5068
      %5080 = vset.pattern.permute.xlu0 0
      %5081 = vperm.xlu0 %5080, %v5074
      %v5082 = vpop.permute.xlu0 %5081
      %5085 = vset.pattern.permute.xlu0 0
      %5086 = vperm.xlu0 %5085, %v5075
      %v5087 = vpop.permute.xlu0 %5086
      %5090 = vset.pattern.permute.xlu0 0
      %5091 = vperm.xlu0 %5090, %v5076
      %v5092 = vpop.permute.xlu0 %5091
      %5095 = vset.pattern.permute.xlu0 0
      %5096 = vperm.xlu0 %5095, %v5077
      %v5097 = vpop.permute.xlu0 %5096
      %5100 = vset.pattern.permute.xlu0 0
      %5101 = vperm.xlu0 %5100, %v5078
      %v5102 = vpop.permute.xlu0 %5101
      %v5104 = vsub.f32 %v4786, %v5082
      %v5105 = vsub.f32 %v4788, %v5082
      %v5106 = vsub.f32 %v4790, %v5087
      %v5107 = vsub.f32 %v4792, %v5087
      %v5108 = vsub.f32 %v4796, %v5092
      %v5109 = vsub.f32 %v4798, %v5092
      %v5110 = vsub.f32 %v4800, %v5097
      %v5111 = vsub.f32 %v4802, %v5097
      %v5112 = vsub.f32 %v4806, %v5102
      %v5113 = vsub.f32 %v4808, %v5102
      %v5114 = vmul.f32 %v5104, %v5104
      %v5115 = vmul.f32 %v5105, %v5105
      %v5116 = vmul.f32 %v5106, %v5106
      %v5117 = vmul.f32 %v5107, %v5107
      %v5118 = vmul.f32 %v5108, %v5108
      %v5119 = vmul.f32 %v5109, %v5109
      %v5120 = vmul.f32 %v5110, %v5110
      %v5121 = vmul.f32 %v5111, %v5111
      %v5122 = vmul.f32 %v5112, %v5112
      %v5123 = vmul.f32 %v5113, %v5113
      %v5124 = vadd.f32 %v5114, %v5115
      %5125 = vadd.xlane.f32.xlu0 %v5124
      %v5126 = vpop.xlane.xlu0 %5125
      %v5127 = vadd.f32 %v5116, %v5117
      %5128 = vadd.xlane.f32.xlu0 %v5127
      %v5129 = vpop.xlane.xlu0 %5128
      %v5130 = vadd.f32 %v5118, %v5119
      %5131 = vadd.xlane.f32.xlu0 %v5130
      %v5132 = vpop.xlane.xlu0 %5131
      %v5133 = vadd.f32 %v5120, %v5121
      %5134 = vadd.xlane.f32.xlu0 %v5133
      %v5135 = vpop.xlane.xlu0 %5134
      %v5136 = vsel %vm4441, %v5122, 0.0
      %v5137 = vsel %vm4441, %v5123, 0.0
      %v5138 = vadd.f32 %v5136, %v5137
      %5139 = vadd.xlane.f32.xlu0 %v5138
      %v5140 = vpop.xlane.xlu0 %5139
      %v5141 = vmul.f32 %v5126, %v4829
      %v5142 = vmul.f32 %v5129, %v4830
      %v5143 = vmul.f32 %v5132, %v4831
      %v5144 = vmul.f32 %v5135, %v4832
      %v5145 = vmul.f32 %v5140, %v4833
      %v5146 = vsel %vm4839, %v5141, 0.0
      %v5147 = vsel %vm4839, %v5142, 0.0
      %v5148 = vadd.f32 %v5146, %v5147
      %v5149 = vsel %vm4839, %v5143, 0.0
      %v5150 = vadd.f32 %v5148, %v5149
      %v5151 = vsel %vm4839, %v5144, 0.0
      %v5152 = vadd.f32 %v5150, %v5151
      %v5153 = vsel %vm4847, %v5145, 0.0
      %v5154 = vadd.f32 %v5152, %v5153
      %5155 = vadd.xlane.f32.xlu0 %v5154
      %v5156 = vpop.xlane.xlu0 %5155
      %v5157 = vrot.slane %v5156, 4
      %v5158 = vadd.f32 %v5156, %v5157
      %v5159 = vrot.slane %v5158, 2
      %v5160 = vadd.f32 %v5158, %v5159
      %v5161 = vrot.slane %v5160, 1
      %v5162 = vadd.f32 %v5160, %v5161
      %s5163 = vtos %v5162
      %v5164 = vrcp.pop 2304.0
      %s5165 = vtos %v5164
      %s5166 = smul.f32 %s5163, %s5165
      %s5167 = sadd.f32 %s5166, 1e-05
      %v5168 = vstv %s5167
      %v5169 = vrsqrt.pop %v5168
      %s5170 = vtos %v5169
      %v5171 = vstv %s5170
      %v5172 = vmul.f32 %v4829, %v5171
      %v5173 = vmul.f32 %v4830, %v5171
      %v5174 = vmul.f32 %v4831, %v5171
      %v5175 = vmul.f32 %v4832, %v5171
      %v5176 = vmul.f32 %v4833, %v5171
      %v5177 = vadd.f32 %v5172, 0.0
      %v5178 = vadd.f32 %v5173, 0.0
      %v5179 = vadd.f32 %v5174, 0.0
      %v5180 = vadd.f32 %v5175, 0.0
      %v5181 = vadd.f32 %v5176, 0.0
      %5187 = vrot.lane.b32.xlu0 %v5141, 127
      %v5188 = vpop.permute.xlu0 %5187
      %5189 = vrot.lane.b32.xlu0 %v5142, 127
      %v5190 = vpop.permute.xlu0 %5189
      %5191 = vrot.lane.b32.xlu0 %v5143, 127
      %v5192 = vpop.permute.xlu0 %5191
      %5193 = vrot.lane.b32.xlu0 %v5144, 127
      %v5194 = vpop.permute.xlu0 %5193
      %5195 = vrot.lane.b32.xlu0 %v5145, 127
      %v5196 = vpop.permute.xlu0 %5195
      %v5202 = vsel %vm4839, %v5188, 0.0
      %v5203 = vsel %vm4839, %v5190, 0.0
      %v5204 = vadd.f32 %v5202, %v5203
      %v5205 = vsel %vm4839, %v5192, 0.0
      %v5206 = vadd.f32 %v5204, %v5205
      %v5207 = vsel %vm4839, %v5194, 0.0
      %v5208 = vadd.f32 %v5206, %v5207
      %v5209 = vsel %vm4847, %v5196, 0.0
      %v5210 = vadd.f32 %v5208, %v5209
      %5211 = vadd.xlane.f32.xlu0 %v5210
      %v5212 = vpop.xlane.xlu0 %5211
      %v5213 = vrot.slane %v5212, 4
      %v5214 = vadd.f32 %v5212, %v5213
      %v5215 = vrot.slane %v5214, 2
      %v5216 = vadd.f32 %v5214, %v5215
      %v5217 = vrot.slane %v5216, 1
      %v5218 = vadd.f32 %v5216, %v5217
      %s5219 = vtos %v5218
      %v5220 = vrcp.pop 2304.0
      %s5221 = vtos %v5220
      %s5222 = smul.f32 %s5219, %s5221
      %s5223 = sadd.f32 %s5222, 1e-05
      %v5224 = vstv %s5223
      %v5225 = vrsqrt.pop %v5224
      %s5226 = vtos %v5225
      %v5227 = vstv %s5226
      %v5228 = vmul.f32 %v4829, %v5227
      %v5229 = vmul.f32 %v4830, %v5227
      %v5230 = vmul.f32 %v4831, %v5227
      %v5231 = vmul.f32 %v4832, %v5227
      %v5232 = vmul.f32 %v4833, %v5227
      %5238 = vrot.lane.b32.xlu0 %v5228, 127
      %v5239 = vpop.permute.xlu0 %5238
      %5240 = vrot.lane.b32.xlu0 %v5229, 127
      %v5241 = vpop.permute.xlu0 %5240
      %5242 = vrot.lane.b32.xlu0 %v5230, 127
      %v5243 = vpop.permute.xlu0 %5242
      %5244 = vrot.lane.b32.xlu0 %v5231, 127
      %v5245 = vpop.permute.xlu0 %5244
      %5246 = vrot.lane.b32.xlu0 %v5232, 127
      %v5247 = vpop.permute.xlu0 %5246
      %v5253 = vadd.f32 %v5177, %v5239
      %v5254 = vadd.f32 %v5178, %v5241
      %v5255 = vadd.f32 %v5179, %v5243
      %v5256 = vadd.f32 %v5180, %v5245
      %v5257 = vadd.f32 %v5181, %v5247
      %5258 = vrot.lane.b32.xlu0 %v5141, 126
      %v5259 = vpop.permute.xlu0 %5258
      %5260 = vrot.lane.b32.xlu0 %v5142, 126
      %v5261 = vpop.permute.xlu0 %5260
      %5262 = vrot.lane.b32.xlu0 %v5143, 126
      %v5263 = vpop.permute.xlu0 %5262
      %5264 = vrot.lane.b32.xlu0 %v5144, 126
      %v5265 = vpop.permute.xlu0 %5264
      %5266 = vrot.lane.b32.xlu0 %v5145, 126
      %v5267 = vpop.permute.xlu0 %5266
      %v5273 = vsel %vm4839, %v5259, 0.0
      %v5274 = vsel %vm4839, %v5261, 0.0
      %v5275 = vadd.f32 %v5273, %v5274
      %v5276 = vsel %vm4839, %v5263, 0.0
      %v5277 = vadd.f32 %v5275, %v5276
      %v5278 = vsel %vm4839, %v5265, 0.0
      %v5279 = vadd.f32 %v5277, %v5278
      %v5280 = vsel %vm4847, %v5267, 0.0
      %v5281 = vadd.f32 %v5279, %v5280
      %5282 = vadd.xlane.f32.xlu0 %v5281
      %v5283 = vpop.xlane.xlu0 %5282
      %v5284 = vrot.slane %v5283, 4
      %v5285 = vadd.f32 %v5283, %v5284
      %v5286 = vrot.slane %v5285, 2
      %v5287 = vadd.f32 %v5285, %v5286
      %v5288 = vrot.slane %v5287, 1
      %v5289 = vadd.f32 %v5287, %v5288
      %s5290 = vtos %v5289
      %v5291 = vrcp.pop 2304.0
      %s5292 = vtos %v5291
      %s5293 = smul.f32 %s5290, %s5292
      %s5294 = sadd.f32 %s5293, 1e-05
      %v5295 = vstv %s5294
      %v5296 = vrsqrt.pop %v5295
      %s5297 = vtos %v5296
      %v5298 = vstv %s5297
      %v5299 = vmul.f32 %v4829, %v5298
      %v5300 = vmul.f32 %v4830, %v5298
      %v5301 = vmul.f32 %v4831, %v5298
      %v5302 = vmul.f32 %v4832, %v5298
      %v5303 = vmul.f32 %v4833, %v5298
      %5309 = vrot.lane.b32.xlu0 %v5299, 126
      %v5310 = vpop.permute.xlu0 %5309
      %5311 = vrot.lane.b32.xlu0 %v5300, 126
      %v5312 = vpop.permute.xlu0 %5311
      %5313 = vrot.lane.b32.xlu0 %v5301, 126
      %v5314 = vpop.permute.xlu0 %5313
      %5315 = vrot.lane.b32.xlu0 %v5302, 126
      %v5316 = vpop.permute.xlu0 %5315
      %5317 = vrot.lane.b32.xlu0 %v5303, 126
      %v5318 = vpop.permute.xlu0 %5317
      %v5324 = vadd.f32 %v5253, %v5310
      %v5325 = vadd.f32 %v5254, %v5312
      %v5326 = vadd.f32 %v5255, %v5314
      %v5327 = vadd.f32 %v5256, %v5316
      %v5328 = vadd.f32 %v5257, %v5318
      %5329 = vrot.lane.b32.xlu0 %v5141, 125
      %v5330 = vpop.permute.xlu0 %5329
      %5331 = vrot.lane.b32.xlu0 %v5142, 125
      %v5332 = vpop.permute.xlu0 %5331
      %5333 = vrot.lane.b32.xlu0 %v5143, 125
      %v5334 = vpop.permute.xlu0 %5333
      %5335 = vrot.lane.b32.xlu0 %v5144, 125
      %v5336 = vpop.permute.xlu0 %5335
      %5337 = vrot.lane.b32.xlu0 %v5145, 125
      %v5338 = vpop.permute.xlu0 %5337
      %v5344 = vsel %vm4839, %v5330, 0.0
      %v5345 = vsel %vm4839, %v5332, 0.0
      %v5346 = vadd.f32 %v5344, %v5345
      %v5347 = vsel %vm4839, %v5334, 0.0
      %v5348 = vadd.f32 %v5346, %v5347
      %v5349 = vsel %vm4839, %v5336, 0.0
      %v5350 = vadd.f32 %v5348, %v5349
      %v5351 = vsel %vm4847, %v5338, 0.0
      %v5352 = vadd.f32 %v5350, %v5351
      %5353 = vadd.xlane.f32.xlu0 %v5352
      %v5354 = vpop.xlane.xlu0 %5353
      %v5355 = vrot.slane %v5354, 4
      %v5356 = vadd.f32 %v5354, %v5355
      %v5357 = vrot.slane %v5356, 2
      %v5358 = vadd.f32 %v5356, %v5357
      %v5359 = vrot.slane %v5358, 1
      %v5360 = vadd.f32 %v5358, %v5359
      %s5361 = vtos %v5360
      %v5362 = vrcp.pop 2304.0
      %s5363 = vtos %v5362
      %s5364 = smul.f32 %s5361, %s5363
      %s5365 = sadd.f32 %s5364, 1e-05
      %v5366 = vstv %s5365
      %v5367 = vrsqrt.pop %v5366
      %s5368 = vtos %v5367
      %v5369 = vstv %s5368
      %v5370 = vmul.f32 %v4829, %v5369
      %v5371 = vmul.f32 %v4830, %v5369
      %v5372 = vmul.f32 %v4831, %v5369
      %v5373 = vmul.f32 %v4832, %v5369
      %v5374 = vmul.f32 %v4833, %v5369
      %5380 = vrot.lane.b32.xlu0 %v5370, 125
      %v5381 = vpop.permute.xlu0 %5380
      %5382 = vrot.lane.b32.xlu0 %v5371, 125
      %v5383 = vpop.permute.xlu0 %5382
      %5384 = vrot.lane.b32.xlu0 %v5372, 125
      %v5385 = vpop.permute.xlu0 %5384
      %5386 = vrot.lane.b32.xlu0 %v5373, 125
      %v5387 = vpop.permute.xlu0 %5386
      %5388 = vrot.lane.b32.xlu0 %v5374, 125
      %v5389 = vpop.permute.xlu0 %5388
      %v5395 = vadd.f32 %v5324, %v5381
      %v5396 = vadd.f32 %v5325, %v5383
      %v5397 = vadd.f32 %v5326, %v5385
      %v5398 = vadd.f32 %v5327, %v5387
      %v5399 = vadd.f32 %v5328, %v5389
      %5401 = vset.pattern.permute.xlu0 0
      %5402 = vperm.xlu0 %5401, %v5395
      %v5403 = vpop.permute.xlu0 %5402
      %5406 = vset.pattern.permute.xlu0 0
      %5407 = vperm.xlu0 %5406, %v5396
      %v5408 = vpop.permute.xlu0 %5407
      %5411 = vset.pattern.permute.xlu0 0
      %5412 = vperm.xlu0 %5411, %v5397
      %v5413 = vpop.permute.xlu0 %5412
      %5416 = vset.pattern.permute.xlu0 0
      %5417 = vperm.xlu0 %5416, %v5398
      %v5418 = vpop.permute.xlu0 %5417
      %5421 = vset.pattern.permute.xlu0 0
      %5422 = vperm.xlu0 %5421, %v5399
      %v5423 = vpop.permute.xlu0 %5422
      %v5425 = vmul.f32 %v5104, %v5403
      %v5426 = vmul.f32 %v5105, %v5403
      %v5427 = vmul.f32 %v5106, %v5408
      %v5428 = vmul.f32 %v5107, %v5408
      %v5429 = vmul.f32 %v5108, %v5413
      %v5430 = vmul.f32 %v5109, %v5413
      %v5431 = vmul.f32 %v5110, %v5418
      %v5432 = vmul.f32 %v5111, %v5418
      %v5433 = vmul.f32 %v5112, %v5423
      %v5434 = vmul.f32 %v5113, %v5423
      %v5435 = vld [vmem:[%s9] sm:$0xff]
      %v5436 = vld [vmem:[%s9 + $0x8] sm:$0xff]
      %v5437 = vld [vmem:[%s9 + $0x10] sm:$0xff]
      %v5438 = vld [vmem:[%s9 + $0x18] sm:$0xff]
      %v5439 = vld [vmem:[%s9 + $0x20] sm:$0xf]
      %5441 = vset.pattern.permute.xlu0 0
      %5442 = vperm.xlu0 %5441, %v5435
      %v5443 = vpop.permute.xlu0 %5442
      %5446 = vset.pattern.permute.xlu0 0
      %5447 = vperm.xlu0 %5446, %v5436
      %v5448 = vpop.permute.xlu0 %5447
      %5451 = vset.pattern.permute.xlu0 0
      %5452 = vperm.xlu0 %5451, %v5437
      %v5453 = vpop.permute.xlu0 %5452
      %5456 = vset.pattern.permute.xlu0 0
      %5457 = vperm.xlu0 %5456, %v5438
      %v5458 = vpop.permute.xlu0 %5457
      %5461 = vset.pattern.permute.xlu0 0
      %5462 = vperm.xlu0 %5461, %v5439
      %v5463 = vpop.permute.xlu0 %5462
      %v5465 = vmul.f32 %v5425, %v5443
      %v5466 = vmul.f32 %v5426, %v5443
      %v5467 = vmul.f32 %v5427, %v5448
      %v5468 = vmul.f32 %v5428, %v5448
      %v5469 = vmul.f32 %v5429, %v5453
      %v5470 = vmul.f32 %v5430, %v5453
      %v5471 = vmul.f32 %v5431, %v5458
      %v5472 = vmul.f32 %v5432, %v5458
      %v5473 = vmul.f32 %v5433, %v5463
      %v5474 = vmul.f32 %v5434, %v5463
      %v5475 = vld [vmem:[%s10] sm:$0xff]
      %v5476 = vld [vmem:[%s10 + $0x8] sm:$0xff]
      %v5477 = vld [vmem:[%s10 + $0x10] sm:$0xff]
      %v5478 = vld [vmem:[%s10 + $0x18] sm:$0xff]
      %v5479 = vld [vmem:[%s10 + $0x20] sm:$0xf]
      %5481 = vset.pattern.permute.xlu0 0
      %5482 = vperm.xlu0 %5481, %v5475
      %v5483 = vpop.permute.xlu0 %5482
      %5486 = vset.pattern.permute.xlu0 0
      %5487 = vperm.xlu0 %5486, %v5476
      %v5488 = vpop.permute.xlu0 %5487
      %5491 = vset.pattern.permute.xlu0 0
      %5492 = vperm.xlu0 %5491, %v5477
      %v5493 = vpop.permute.xlu0 %5492
      %5496 = vset.pattern.permute.xlu0 0
      %5497 = vperm.xlu0 %5496, %v5478
      %v5498 = vpop.permute.xlu0 %5497
      %5501 = vset.pattern.permute.xlu0 0
      %5502 = vperm.xlu0 %5501, %v5479
      %v5503 = vpop.permute.xlu0 %5502
      %v5505 = vadd.f32 %v5465, %v5483
      %v5506 = vadd.f32 %v5466, %v5483
      %v5507 = vadd.f32 %v5467, %v5488
      %v5508 = vadd.f32 %v5468, %v5488
      %v5509 = vadd.f32 %v5469, %v5493
      %v5510 = vadd.f32 %v5470, %v5493
      %v5511 = vadd.f32 %v5471, %v5498
      %v5512 = vadd.f32 %v5472, %v5498
      %v5513 = vadd.f32 %v5473, %v5503
      %v5514 = vadd.f32 %v5474, %v5503
      %5515 = vst [vmem:[%s413] sm:$0xff] %v5505
      %5516 = vst [vmem:[%s413 + $0x8] sm:$0xff] %v5506
      %5517 = vst [vmem:[%s413 + $0x10] sm:$0xff] %v5507
      %5518 = vst [vmem:[%s413 + $0x18] sm:$0xff] %v5508
      %5519 = vst [vmem:[%s413 + $0x20] sm:$0xff] %v5509
      %5520 = vst [vmem:[%s413 + $0x28] sm:$0xff] %v5510
      %5521 = vst [vmem:[%s413 + $0x30] sm:$0xff] %v5511
      %5522 = vst [vmem:[%s413 + $0x38] sm:$0xff] %v5512
      %5523 = vst [vmem:[%s413 + $0x40] sm:$0xf] %v5513
      %5524 = vst [vmem:[%s413 + $0x48] sm:$0xf] %v5514
      %p5525 = scmp.lt.s32.totalorder %s23, 1
      %s5526 = scalar_select %p5525, %s23, 1
      %s5527 = smul.addr %s5526, 10
      %s5528 = smul.addr %s5527, 8
      %s5529 = scalar_lea.vmem %s12, %s5528
      // Predicated region
      $region69: #{tpu_custom_call.1} parent=67 // pred_check
        %p5530 = pneg %p298
      $region70: #{tpu_custom_call.1} parent=67 // pred_check_branch
        %5532 = sbr.rel (%p5530) target = $region72
      $region71: #{tpu_custom_call.1} parent=67 // pred_region
        _
      $region72: #{tpu_custom_call.1} parent=67 // pred_fallthru
        _
    $region68: #{tpu_custom_call.1} parent=5 // pred_fallthru
      _
    %p5533 = scmp.le.s32.totalorder 2, %s18
    // Predicated region
    $region73: #{tpu_custom_call.1} parent=5 // pred_check
      %p5534 = pneg %p5533
    $region74: #{tpu_custom_call.1} parent=5 // pred_check_branch
      %5536 = sbr.rel (%p5534) target = $region76
    $region75: #{tpu_custom_call.1} parent=5 // pred_region
      %s5537 = ssub.s32 %s18, 2
      // Predicated region
      $region77: #{tpu_custom_call.1} parent=75 // pred_check
        %p5538 = pneg %p304
      $region78: #{tpu_custom_call.1} parent=75 // pred_check_branch
        %5540 = sbr.rel (%p5538) target = $region80
      $region79: #{tpu_custom_call.1} parent=75 // pred_region
        %p5541 = scmp.lt.s32.totalorder %s24, 1
        %s5542 = scalar_select %p5541, %s24, 1
        %s5543 = smul.addr %s5542, 10
        %s5544 = smul.addr %s5543, 8
        %s5545 = scalar_lea.vmem %s12, %s5544
      $region80: #{tpu_custom_call.1} parent=75 // pred_fallthru
        _
    $region76: #{tpu_custom_call.1} parent=5 // pred_fallthru
      _
  $region6: #{tpu_custom_call.1} parent=0 // loop_footer
    %s22 = sadd.s32 1, %s18
  $region7: #{tpu_custom_call.1} parent=0 // loop_footer_branch
    %17 = sbr.rel target = $region3
  $region8: #{tpu_custom_call.1} parent=0 // loop_exit
    _

</llo_original>
